<compile_context>
chip_gen: v6e
topology: v6e:2x2x1
jax: 0.10.0
libtpu: 0.0.40
codegen_flags: <defaults>
</compile_context>

<pallas_src>
import jax
import jax.numpy as jnp
from jax import lax
from jax.experimental import pallas as pl
from jax.experimental.pallas import tpu as pltpu  # noqa: F401  (TPU backend)

# Keep all XLA-side matmuls (reference, weight folding) at full f32 so the f32 MXU
# matmuls inside the kernel compare cleanly against the reference.
jax.config.update("jax_default_matmul_precision", "highest")

N = 128        # number of points returned by backbone .slice()
F_IN = 16      # dataset.feature_dimension
F_AUG = F_IN + 1            # + ones column carrying the folded bias
K_PAD = 24                  # F_AUG rounded up to a sublane multiple (8)
C = 32         # option.backbone_out_dim
H = 128        # hidden channels inside each head
NH = 4         # heads: classification, baseline_dir, approach_dir, grasp_offset
OUT_W = 8      # packed output rows: cls(1) | baseline(3) | approach(3) | offset(1)


def graspnet_kernel(xT_ref, w1T_ref, w2T_ref, b2T_ref, out_ref):
    # Fused first layers of all four heads (nn.Dropout(p=0.3) is identity in eval).
    # Backbone linear + its bias + all head-1 biases are folded into w1T at pack
    # time; the ones row of xT carries the bias term.
    hT = jnp.dot(w1T_ref[...], xT_ref[...],
                 preferred_element_type=jnp.float32)                       # (4H, N)
    # Fused second layers via block-diagonal W2 (transposed): packed (8, N) result.
    yT = jnp.dot(w2T_ref[...], hT,
                 preferred_element_type=jnp.float32) + b2T_ref[...]        # (8, N)

    cls  = yT[0:1, :]
    base = yT[1:4, :]
    app  = yT[4:7, :]
    off  = yT[7:8, :]

    eps2 = 1e-24  # matches F.normalize's clamp_min(1e-12) on the norm
    # Lane-dense Gram-Schmidt: each row is a full (1, N) vreg row; all "sums over 3
    # components" are unrolled 3-term VPU adds, and rsqrt runs on the EUP.
    b_nrm2 = (base[0:1] * base[0:1] + base[1:2] * base[1:2]
              + base[2:3] * base[2:3])
    base_n = base * lax.rsqrt(jnp.maximum(b_nrm2, eps2))                   # (3, N)

    dot = (base_n[0:1] * app[0:1] + base_n[1:2] * app[1:2]
           + base_n[2:3] * app[2:3])                                       # (1, N)
    app_o = app - dot * base_n
    a_nrm2 = (app_o[0:1] * app_o[0:1] + app_o[1:2] * app_o[1:2]
              + app_o[2:3] * app_o[2:3])
    app_n = app_o * lax.rsqrt(jnp.maximum(a_nrm2, eps2))                   # (3, N)

    # Single dense (8, N) store: rows = [cls | baseline_n | approach_n | offset].
    out_ref[...] = jnp.concatenate([cls, base_n, app_n, off], axis=0)


def graspnet_forward(x_in, packed):
    """x_in: [N, F_IN] point features.  packed: (w1T, w2T, b2T)."""
    w1T, w2T, b2T = packed
    n = x_in.shape[0]

    # Augment with a ones column (bias fold), zero-pad the contraction dim to K_PAD,
    # and transpose so points live on lanes.  All done by XLA outside the kernel.
    x_aug = jnp.concatenate([x_in, jnp.ones((n, 1), x_in.dtype)], axis=1)   # (N, F_AUG)
    x_aug = jnp.pad(x_aug, ((0, 0), (0, K_PAD - F_AUG)))                    # (N, K_PAD)
    xT = x_aug.T                                                            # (K_PAD, N)

    flops = 2 * n * (K_PAD * NH * H + NH * H * OUT_W)
    bytes_accessed = 4 * (xT.size + w1T.size + w2T.size + b2T.size + OUT_W * n)

    out = pl.pallas_call(
        graspnet_kernel,
        out_shape=jax.ShapeDtypeStruct((OUT_W, n), jnp.float32),
        cost_estimate=pl.CostEstimate(
            flops=flops,
            transcendentals=2 * n,           # two rsqrt per point
            bytes_accessed=bytes_accessed),
    )(xT, w1T, w2T, b2T)

    # Packed rows: 0 = cls, 1:4 = baseline_dir, 4:7 = approach_dir, 7 = offset.
    class_logits = out[0:1, :].T            # (N, 1)
    baseline_dir = out[1:4, :].T            # (N, 3)
    approach_dir = out[4:7, :].T            # (N, 3)
    grasp_offset = out[7:8, :].T            # (N, 1)
    # Module return order: (class_logits, approach_dir, baseline_dir, grasp_offset).
    return class_logits, approach_dir, baseline_dir, grasp_offset


def init_params(key):
    ks = jax.random.split(key, 20)
    s = 0.1

    def w(k, shape):
        return jax.random.normal(k, shape, dtype=jnp.float32) * s

    return {
        # backbone stand-in (dense per-point linear, see TODO above)
        "wb": w(ks[0], (F_IN, C)), "bb": w(ks[1], (1, C)),
        # classification_head: Conv1d(C->128,k=1), Dropout, Conv1d(128->1,k=1)
        "wc1": w(ks[2], (C, H)), "bc1": w(ks[3], (1, H)),
        "wc2": w(ks[4], (H, 1)), "bc2": w(ks[5], (1, 1)),
        # baseline_dir_head: C->128->3
        "wd1": w(ks[6], (C, H)), "bd1": w(ks[7], (1, H)),
        "wd2": w(ks[8], (H, 3)), "bd2": w(ks[9], (1, 3)),
        # approach_dir_head: C->128->3
        "wa1": w(ks[10], (C, H)), "ba1": w(ks[11], (1, H)),
        "wa2": w(ks[12], (H, 3)), "ba2": w(ks[13], (1, 3)),
        # grasp_offset_head: C->128->1
        "wo1": w(ks[14], (C, H)), "bo1": w(ks[15], (1, H)),
        "wo2": w(ks[16], (H, 1)), "bo2": w(ks[17], (1, 1)),
    }


def pack_params(p):
    """Pack the 18 per-head arrays (+ backbone stand-in) into 3 kernel slabs."""
    # Fused first layers: columns = [cls | baseline | approach | offset]  -> (C, 4H)
    w1cat = jnp.concatenate([p["wc1"], p["wd1"], p["wa1"], p["wo1"]], axis=1)
    b1cat = jnp.concatenate([p["bc1"], p["bd1"], p["ba1"], p["bo1"]], axis=1)
    # Fold the backbone linear:  x@Wb@W1 + bb@W1 + b1  ==  [x | 1] @ [[Wb@W1],[bb@W1+b1]]
    w1f = p["wb"] @ w1cat                                   # (F_IN, 4H)
    b1f = p["bb"] @ w1cat + b1cat                           # (1, 4H)  (bias row)
    w1aug = jnp.concatenate([w1f, b1f], axis=0)             # (F_AUG, 4H)
    w1aug = jnp.pad(w1aug, ((0, K_PAD - F_AUG), (0, 0)))    # (K_PAD, 4H), zero pad rows
    w1T = w1aug.T                                           # (4H, K_PAD)

    # Fused second layers: block-diagonal (4H, 8), then transpose -> (8, 4H)
    w2 = jnp.zeros((NH * H, OUT_W), jnp.float32)
    w2 = w2.at[0 * H:1 * H, 0:1].set(p["wc2"])
    w2 = w2.at[1 * H:2 * H, 1:4].set(p["wd2"])
    w2 = w2.at[2 * H:3 * H, 4:7].set(p["wa2"])
    w2 = w2.at[3 * H:4 * H, 7:8].set(p["wo2"])
    w2T = w2.T                                              # (8, 4H)

    b2 = jnp.concatenate([p["bc2"], p["bd2"], p["ba2"], p["bo2"]], axis=1)  # (1, 8)
    b2T = jnp.broadcast_to(b2.T, (OUT_W, N))                # (8, N) lane-dense bias
    return w1T, w2T, b2T


def graspnet_reference(x_in, p):
    """Plain-JAX reference mirroring the PyTorch forward (eval mode)."""
    x = x_in @ p["wb"] + p["bb"]
    head = lambda w1, b1, w2, b2: (x @ w1 + b1) @ w2 + b2
    cls  = head(p["wc1"], p["bc1"], p["wc2"], p["bc2"])
    base = head(p["wd1"], p["bd1"], p["wd2"], p["bd2"])
    app  = head(p["wa1"], p["ba1"], p["wa2"], p["ba2"])
    off  = head(p["wo1"], p["bo1"], p["wo2"], p["bo2"])
    eps = 1e-12
    base_n = base / jnp.maximum(jnp.linalg.norm(base, axis=-1, keepdims=True), eps)
    dot = jnp.sum(base_n * app, axis=-1, keepdims=True)
    app_o = app - dot * base_n
    app_n = app_o / jnp.maximum(jnp.linalg.norm(app_o, axis=-1, keepdims=True), eps)
    # PyTorch return order: (class_logits, approach_dir, baseline_dir, grasp_offset)
    return cls, app_n, base_n, off


if __name__ == "__main__":
    key = jax.random.PRNGKey(0)
    k_x, k_p = jax.random.split(key)
    x_in = jax.random.normal(k_x, (N, F_IN), dtype=jnp.float32)
    params = init_params(k_p)
    packed = pack_params(params)

    outs = graspnet_forward(x_in, packed)
    outs = jax.block_until_ready(outs)

    refs = graspnet_reference(x_in, params)
    names = ("class_logits", "approach_dir", "baseline_dir", "grasp_offset")
    for name, o, r in zip(names, outs, refs):
        assert o.shape == r.shape, (name, o.shape, r.shape)
        err = float(jnp.max(jnp.abs(o - r)))
        assert jnp.allclose(o, r, atol=1e-3, rtol=1e-3), (name, err)

    print("KERNEL_OK")
</pallas_src>

<mosaic_0001>
module attributes {stable_mosaic.version = 11 : i64} {
  func.func @graspnet_kernel(%arg0: memref<24x128xf32, #tpu.memory_space<vmem>>, %arg1: memref<512x24xf32, #tpu.memory_space<vmem>>, %arg2: memref<8x512xf32, #tpu.memory_space<vmem>>, %arg3: memref<8x128xf32, #tpu.memory_space<vmem>>, %arg4: memref<8x128xf32, #tpu.memory_space<vmem>>) attributes {dimension_semantics = [], scalar_prefetch = 0 : i64, scratch_operands = 0 : i64, tpu.core_type = #tpu.core_type<tc>} {
    %c0 = arith.constant 0 : index
    %c0_0 = arith.constant 0 : index
    %0 = vector.load %arg1[%c0, %c0_0] : memref<512x24xf32, #tpu.memory_space<vmem>>, vector<512x24xf32>
    %c0_1 = arith.constant 0 : index
    %c0_2 = arith.constant 0 : index
    %1 = vector.load %arg0[%c0_1, %c0_2] : memref<24x128xf32, #tpu.memory_space<vmem>>, vector<24x128xf32>
    %cst = arith.constant dense<0.000000e+00> : vector<512x128xf32>
    %2 = tpu.matmul %0, %1, %cst {dimension_numbers = #tpu.dot_dimension_numbers<[1], [0], [0], [1], [0, 0, 1, 1], [], []>, precision = #tpu.contract_precision<fp32>} : vector<512x24xf32>, vector<24x128xf32>, vector<512x128xf32> -> vector<512x128xf32>
    %c0_3 = arith.constant 0 : index
    %c0_4 = arith.constant 0 : index
    %3 = vector.load %arg2[%c0_3, %c0_4] : memref<8x512xf32, #tpu.memory_space<vmem>>, vector<8x512xf32>
    %cst_5 = arith.constant dense<0.000000e+00> : vector<8x128xf32>
    %4 = tpu.matmul %3, %2, %cst_5 {dimension_numbers = #tpu.dot_dimension_numbers<[1], [0], [0], [1], [0, 0, 1, 1], [], []>, precision = #tpu.contract_precision<fp32>} : vector<8x512xf32>, vector<512x128xf32>, vector<8x128xf32> -> vector<8x128xf32>
    %c0_6 = arith.constant 0 : index
    %c0_7 = arith.constant 0 : index
    %5 = vector.load %arg3[%c0_6, %c0_7] : memref<8x128xf32, #tpu.memory_space<vmem>>, vector<8x128xf32>
    %6 = arith.addf %4, %5 : vector<8x128xf32>
    %7 = vector.extract_strided_slice %6 {offsets = [0, 0], sizes = [1, 128], strides = [1, 1]} : vector<8x128xf32> to vector<1x128xf32>
    %8 = vector.extract_strided_slice %6 {offsets = [1, 0], sizes = [3, 128], strides = [1, 1]} : vector<8x128xf32> to vector<3x128xf32>
    %9 = vector.extract_strided_slice %6 {offsets = [4, 0], sizes = [3, 128], strides = [1, 1]} : vector<8x128xf32> to vector<3x128xf32>
    %10 = vector.extract_strided_slice %6 {offsets = [7, 0], sizes = [1, 128], strides = [1, 1]} : vector<8x128xf32> to vector<1x128xf32>
    %11 = vector.extract_strided_slice %8 {offsets = [0, 0], sizes = [1, 128], strides = [1, 1]} : vector<3x128xf32> to vector<1x128xf32>
    %12 = vector.extract_strided_slice %8 {offsets = [0, 0], sizes = [1, 128], strides = [1, 1]} : vector<3x128xf32> to vector<1x128xf32>
    %13 = arith.mulf %11, %12 : vector<1x128xf32>
    %14 = vector.extract_strided_slice %8 {offsets = [1, 0], sizes = [1, 128], strides = [1, 1]} : vector<3x128xf32> to vector<1x128xf32>
    %15 = vector.extract_strided_slice %8 {offsets = [1, 0], sizes = [1, 128], strides = [1, 1]} : vector<3x128xf32> to vector<1x128xf32>
    %16 = arith.mulf %14, %15 : vector<1x128xf32>
    %17 = arith.addf %13, %16 : vector<1x128xf32>
    %18 = vector.extract_strided_slice %8 {offsets = [2, 0], sizes = [1, 128], strides = [1, 1]} : vector<3x128xf32> to vector<1x128xf32>
    %19 = vector.extract_strided_slice %8 {offsets = [2, 0], sizes = [1, 128], strides = [1, 1]} : vector<3x128xf32> to vector<1x128xf32>
    %20 = arith.mulf %18, %19 : vector<1x128xf32>
    %21 = arith.addf %17, %20 : vector<1x128xf32>
    %cst_8 = arith.constant 1.000000e-24 : f32
    %22 = vector.broadcast %cst_8 : f32 to vector<1x128xf32>
    %23 = arith.maximumf %21, %22 : vector<1x128xf32>
    %24 = math.rsqrt %23 : vector<1x128xf32>
    %25 = vector.broadcast %24 : vector<1x128xf32> to vector<3x128xf32>
    %26 = arith.mulf %8, %25 : vector<3x128xf32>
    %27 = vector.extract_strided_slice %26 {offsets = [0, 0], sizes = [1, 128], strides = [1, 1]} : vector<3x128xf32> to vector<1x128xf32>
    %28 = vector.extract_strided_slice %9 {offsets = [0, 0], sizes = [1, 128], strides = [1, 1]} : vector<3x128xf32> to vector<1x128xf32>
    %29 = arith.mulf %27, %28 : vector<1x128xf32>
    %30 = vector.extract_strided_slice %26 {offsets = [1, 0], sizes = [1, 128], strides = [1, 1]} : vector<3x128xf32> to vector<1x128xf32>
    %31 = vector.extract_strided_slice %9 {offsets = [1, 0], sizes = [1, 128], strides = [1, 1]} : vector<3x128xf32> to vector<1x128xf32>
    %32 = arith.mulf %30, %31 : vector<1x128xf32>
    %33 = arith.addf %29, %32 : vector<1x128xf32>
    %34 = vector.extract_strided_slice %26 {offsets = [2, 0], sizes = [1, 128], strides = [1, 1]} : vector<3x128xf32> to vector<1x128xf32>
    %35 = vector.extract_strided_slice %9 {offsets = [2, 0], sizes = [1, 128], strides = [1, 1]} : vector<3x128xf32> to vector<1x128xf32>
    %36 = arith.mulf %34, %35 : vector<1x128xf32>
    %37 = arith.addf %33, %36 : vector<1x128xf32>
    %38 = vector.broadcast %37 : vector<1x128xf32> to vector<3x128xf32>
    %39 = arith.mulf %38, %26 : vector<3x128xf32>
    %40 = arith.subf %9, %39 : vector<3x128xf32>
    %41 = vector.extract_strided_slice %40 {offsets = [0, 0], sizes = [1, 128], strides = [1, 1]} : vector<3x128xf32> to vector<1x128xf32>
    %42 = vector.extract_strided_slice %40 {offsets = [0, 0], sizes = [1, 128], strides = [1, 1]} : vector<3x128xf32> to vector<1x128xf32>
    %43 = arith.mulf %41, %42 : vector<1x128xf32>
    %44 = vector.extract_strided_slice %40 {offsets = [1, 0], sizes = [1, 128], strides = [1, 1]} : vector<3x128xf32> to vector<1x128xf32>
    %45 = vector.extract_strided_slice %40 {offsets = [1, 0], sizes = [1, 128], strides = [1, 1]} : vector<3x128xf32> to vector<1x128xf32>
    %46 = arith.mulf %44, %45 : vector<1x128xf32>
    %47 = arith.addf %43, %46 : vector<1x128xf32>
    %48 = vector.extract_strided_slice %40 {offsets = [2, 0], sizes = [1, 128], strides = [1, 1]} : vector<3x128xf32> to vector<1x128xf32>
    %49 = vector.extract_strided_slice %40 {offsets = [2, 0], sizes = [1, 128], strides = [1, 1]} : vector<3x128xf32> to vector<1x128xf32>
    %50 = arith.mulf %48, %49 : vector<1x128xf32>
    %51 = arith.addf %47, %50 : vector<1x128xf32>
    %cst_9 = arith.constant 1.000000e-24 : f32
    %52 = vector.broadcast %cst_9 : f32 to vector<1x128xf32>
    %53 = arith.maximumf %51, %52 : vector<1x128xf32>
    %54 = math.rsqrt %53 : vector<1x128xf32>
    %55 = vector.broadcast %54 : vector<1x128xf32> to vector<3x128xf32>
    %56 = arith.mulf %40, %55 : vector<3x128xf32>
    %57 = tpu.concatenate %7, %26, %56, %10 in 0 : vector<1x128xf32>, vector<3x128xf32>, vector<3x128xf32>, vector<1x128xf32> -> vector<8x128xf32>
    %c0_10 = arith.constant 0 : index
    %c0_11 = arith.constant 0 : index
    %58 = vector.load %arg4[%c0_10, %c0_11] : memref<8x128xf32, #tpu.memory_space<vmem>>, vector<8x128xf32>
    tpu.vector_store %arg4[%c0_10, %c0_11], %57 {strides = array<i32>} : memref<8x128xf32, #tpu.memory_space<vmem>>, vector<8x128xf32>,
    return
  }
}

</mosaic_0001>

<llo_original>
// kernel: tpu_custom_call.1
$region0: #{tpu_custom_call.1}
  #allocation0 [shape = 'u32[]', space=smem, size = 0x4, offset = 0x4, fixed_abs, tag = 'smem constant byte address 0x4 - core index']
  #allocation1 [shape = 'u32[144,128]{1,0:T(1,128)}', space=vmem, size = 0x12000, scoped, tag = 'internal scratch']
  %s0 = inlined_call_operand.vmem [shape: f32[24,128], index: 0, kind: input, shape index: {}]
  %s1 = inlined_call_operand.vmem [shape: f32[512,24], index: 1, kind: input, shape index: {}]
  %s2 = inlined_call_operand.vmem [shape: f32[8,512], index: 2, kind: input, shape index: {}]
  %s3 = inlined_call_operand.vmem [shape: f32[8,128], index: 3, kind: input, shape index: {}]
  %s4 = inlined_call_operand.hbm [shape: f32[8,128], index: 4, kind: output, shape index: {}]
  %s5 = sld [smem:[#allocation0]]
  $region26: #{tpu_custom_call.1} parent=0
    _
  %s7 = ssub.s32 1, %s5
  %s8 = scalar_select 0, %s7, %s5
  $region1: #{tpu_custom_call.1} parent=0
    #allocation2 [shape = 'u8[4096]{0}', space=vmem, size = 0x1000, scoped, tag = 'output window, operand 0, single buffered']
    #allocation3 [shape = 's32[1]{0}', space=sflag, size = 0x4, scoped, tag = 'scoped memory for tpu_custom_call.1']
    %9 = vsyncpa [#allocation3], 0
    // Predicated region
    $region2: #{tpu_custom_call.1} parent=1 // pred_check
      _
    $region3: #{tpu_custom_call.1} parent=1 // pred_check_branch
      %11 = sbr.rel (0) target = $region5
    $region4: #{tpu_custom_call.1} parent=1 // pred_region
      _
    $region5: #{tpu_custom_call.1} parent=1 // pred_fallthru
      _
    // Predicated region
    $region6: #{tpu_custom_call.1} parent=1 // pred_check
      _
    $region7: #{tpu_custom_call.1} parent=1 // pred_check_branch
      %13 = sbr.rel (0) target = $region9
    $region8: #{tpu_custom_call.1} parent=1 // pred_region
      _
    $region9: #{tpu_custom_call.1} parent=1 // pred_fallthru
      _
    // Predicated region
    $region10: #{tpu_custom_call.1} parent=1 // pred_check
      _
    $region11: #{tpu_custom_call.1} parent=1 // pred_check_branch
      %15 = sbr.rel (0) target = $region13
    $region12: #{tpu_custom_call.1} parent=1 // pred_region
      _
    $region13: #{tpu_custom_call.1} parent=1 // pred_fallthru
      _
    // Predicated region
    $region14: #{tpu_custom_call.1} parent=1 // pred_check
      _
    $region15: #{tpu_custom_call.1} parent=1 // pred_check_branch
      %17 = sbr.rel (0) target = $region17
    $region16: #{tpu_custom_call.1} parent=1 // pred_region
      _
    $region17: #{tpu_custom_call.1} parent=1 // pred_fallthru
      _
    %v18 = vld [vmem:[%s1] sm:$0xff]
    %v19 = vld [vmem:[%s1 + $0x8] sm:$0xff]
    %v20 = vld [vmem:[%s1 + $0x10] sm:$0xff]
    %v21 = vld [vmem:[%s1 + $0x18] sm:$0xff]
    %v22 = vld [vmem:[%s1 + $0x20] sm:$0xff]
    %v23 = vld [vmem:[%s1 + $0x28] sm:$0xff]
    %v24 = vld [vmem:[%s1 + $0x30] sm:$0xff]
    %v25 = vld [vmem:[%s1 + $0x38] sm:$0xff]
    %v26 = vld [vmem:[%s1 + $0x40] sm:$0xff]
    %v27 = vld [vmem:[%s1 + $0x48] sm:$0xff]
    %v28 = vld [vmem:[%s1 + $0x50] sm:$0xff]
    %v29 = vld [vmem:[%s1 + $0x58] sm:$0xff]
    %v30 = vld [vmem:[%s1 + $0x60] sm:$0xff]
    %v31 = vld [vmem:[%s1 + $0x68] sm:$0xff]
    %v32 = vld [vmem:[%s1 + $0x70] sm:$0xff]
    %v33 = vld [vmem:[%s1 + $0x78] sm:$0xff]
    %v34 = vld [vmem:[%s1 + $0x80] sm:$0xff]
    %v35 = vld [vmem:[%s1 + $0x88] sm:$0xff]
    %v36 = vld [vmem:[%s1 + $0x90] sm:$0xff]
    %v37 = vld [vmem:[%s1 + $0x98] sm:$0xff]
    %v38 = vld [vmem:[%s1 + $0xa0] sm:$0xff]
    %v39 = vld [vmem:[%s1 + $0xa8] sm:$0xff]
    %v40 = vld [vmem:[%s1 + $0xb0] sm:$0xff]
    %v41 = vld [vmem:[%s1 + $0xb8] sm:$0xff]
    %v42 = vld [vmem:[%s1 + $0xc0] sm:$0xff]
    %v43 = vld [vmem:[%s1 + $0xc8] sm:$0xff]
    %v44 = vld [vmem:[%s1 + $0xd0] sm:$0xff]
    %v45 = vld [vmem:[%s1 + $0xd8] sm:$0xff]
    %v46 = vld [vmem:[%s1 + $0xe0] sm:$0xff]
    %v47 = vld [vmem:[%s1 + $0xe8] sm:$0xff]
    %v48 = vld [vmem:[%s1 + $0xf0] sm:$0xff]
    %v49 = vld [vmem:[%s1 + $0xf8] sm:$0xff]
    %v50 = vld [vmem:[%s1 + $0x100] sm:$0xff]
    %v51 = vld [vmem:[%s1 + $0x108] sm:$0xff]
    %v52 = vld [vmem:[%s1 + $0x110] sm:$0xff]
    %v53 = vld [vmem:[%s1 + $0x118] sm:$0xff]
    %v54 = vld [vmem:[%s1 + $0x120] sm:$0xff]
    %v55 = vld [vmem:[%s1 + $0x128] sm:$0xff]
    %v56 = vld [vmem:[%s1 + $0x130] sm:$0xff]
    %v57 = vld [vmem:[%s1 + $0x138] sm:$0xff]
    %v58 = vld [vmem:[%s1 + $0x140] sm:$0xff]
    %v59 = vld [vmem:[%s1 + $0x148] sm:$0xff]
    %v60 = vld [vmem:[%s1 + $0x150] sm:$0xff]
    %v61 = vld [vmem:[%s1 + $0x158] sm:$0xff]
    %v62 = vld [vmem:[%s1 + $0x160] sm:$0xff]
    %v63 = vld [vmem:[%s1 + $0x168] sm:$0xff]
    %v64 = vld [vmem:[%s1 + $0x170] sm:$0xff]
    %v65 = vld [vmem:[%s1 + $0x178] sm:$0xff]
    %v66 = vld [vmem:[%s1 + $0x180] sm:$0xff]
    %v67 = vld [vmem:[%s1 + $0x188] sm:$0xff]
    %v68 = vld [vmem:[%s1 + $0x190] sm:$0xff]
    %v69 = vld [vmem:[%s1 + $0x198] sm:$0xff]
    %v70 = vld [vmem:[%s1 + $0x1a0] sm:$0xff]
    %v71 = vld [vmem:[%s1 + $0x1a8] sm:$0xff]
    %v72 = vld [vmem:[%s1 + $0x1b0] sm:$0xff]
    %v73 = vld [vmem:[%s1 + $0x1b8] sm:$0xff]
    %v74 = vld [vmem:[%s1 + $0x1c0] sm:$0xff]
    %v75 = vld [vmem:[%s1 + $0x1c8] sm:$0xff]
    %v76 = vld [vmem:[%s1 + $0x1d0] sm:$0xff]
    %v77 = vld [vmem:[%s1 + $0x1d8] sm:$0xff]
    %v78 = vld [vmem:[%s1 + $0x1e0] sm:$0xff]
    %v79 = vld [vmem:[%s1 + $0x1e8] sm:$0xff]
    %v80 = vld [vmem:[%s1 + $0x1f0] sm:$0xff]
    %v81 = vld [vmem:[%s1 + $0x1f8] sm:$0xff]
    %v82 = vld [vmem:[%s0] sm:$0xff]
    %v83 = vld [vmem:[%s0 + $0x8] sm:$0xff]
    %v84 = vld [vmem:[%s0 + $0x10] sm:$0xff]
    %vm85 = vcmask 195584
    %v87 = vsel %vm85, %v18, 0
    %v90 = vsel %vm85, %v19, 0
    %v93 = vsel %vm85, %v20, 0
    %v96 = vsel %vm85, %v21, 0
    %v99 = vsel %vm85, %v22, 0
    %v102 = vsel %vm85, %v23, 0
    %v105 = vsel %vm85, %v24, 0
    %v108 = vsel %vm85, %v25, 0
    %v111 = vsel %vm85, %v26, 0
    %v114 = vsel %vm85, %v27, 0
    %v117 = vsel %vm85, %v28, 0
    %v120 = vsel %vm85, %v29, 0
    %v123 = vsel %vm85, %v30, 0
    %v126 = vsel %vm85, %v31, 0
    %v129 = vsel %vm85, %v32, 0
    %v132 = vsel %vm85, %v33, 0
    %v135 = vsel %vm85, %v34, 0
    %v138 = vsel %vm85, %v35, 0
    %v141 = vsel %vm85, %v36, 0
    %v144 = vsel %vm85, %v37, 0
    %v147 = vsel %vm85, %v38, 0
    %v150 = vsel %vm85, %v39, 0
    %v153 = vsel %vm85, %v40, 0
    %v156 = vsel %vm85, %v41, 0
    %v159 = vsel %vm85, %v42, 0
    %v162 = vsel %vm85, %v43, 0
    %v165 = vsel %vm85, %v44, 0
    %v168 = vsel %vm85, %v45, 0
    %v171 = vsel %vm85, %v46, 0
    %v174 = vsel %vm85, %v47, 0
    %v177 = vsel %vm85, %v48, 0
    %v180 = vsel %vm85, %v49, 0
    %v183 = vsel %vm85, %v50, 0
    %v186 = vsel %vm85, %v51, 0
    %v189 = vsel %vm85, %v52, 0
    %v192 = vsel %vm85, %v53, 0
    %v195 = vsel %vm85, %v54, 0
    %v198 = vsel %vm85, %v55, 0
    %v201 = vsel %vm85, %v56, 0
    %v204 = vsel %vm85, %v57, 0
    %v207 = vsel %vm85, %v58, 0
    %v210 = vsel %vm85, %v59, 0
    %v213 = vsel %vm85, %v60, 0
    %v216 = vsel %vm85, %v61, 0
    %v219 = vsel %vm85, %v62, 0
    %v222 = vsel %vm85, %v63, 0
    %v225 = vsel %vm85, %v64, 0
    %v228 = vsel %vm85, %v65, 0
    %v231 = vsel %vm85, %v66, 0
    %v234 = vsel %vm85, %v67, 0
    %v237 = vsel %vm85, %v68, 0
    %v240 = vsel %vm85, %v69, 0
    %v243 = vsel %vm85, %v70, 0
    %v246 = vsel %vm85, %v71, 0
    %v249 = vsel %vm85, %v72, 0
    %v252 = vsel %vm85, %v73, 0
    %v255 = vsel %vm85, %v74, 0
    %v258 = vsel %vm85, %v75, 0
    %v261 = vsel %vm85, %v76, 0
    %v264 = vsel %vm85, %v77, 0
    %v267 = vsel %vm85, %v78, 0
    %v270 = vsel %vm85, %v79, 0
    %v273 = vsel %vm85, %v80, 0
    %v276 = vsel %vm85, %v81, 0
    %278 = vmatprep.subr.mxu0 0.0
    %279 = vmatpush1.msra.mxu0 0.0
    %280 = vmatprep.subr.mxu0 0.0
    %281 = vmatpush1.msra.mxu0 0.0
    %282 = vmatprep.subr.mxu0 0.0
    %283 = vmatpush1.msra.mxu0 0.0
    %284 = vmatprep.subr.mxu0 0.0
    %285 = vmatpush1.msra.mxu0 0.0
    %286 = vmatprep.subr.mxu0 0.0
    %287 = vmatpush1.msra.mxu0 0.0
    %288 = vmatprep.subr.mxu0 0.0
    %289 = vmatpush1.msra.mxu0 0.0
    %290 = vmatprep.subr.mxu0 0.0
    %291 = vmatpush1.msra.mxu0 0.0
    %292 = vmatprep.subr.mxu0 0.0
    %293 = vmatpush1.msra.mxu0 0.0
    %294 = vmatprep.subr.mxu0 0.0
    %295 = vmatpush1.msra.mxu0 0.0
    %296 = vmatprep.subr.mxu0 0.0
    %297 = vmatpush1.msra.mxu0 0.0
    %298 = vmatprep.subr.mxu0 0.0
    %299 = vmatpush1.msra.mxu0 0.0
    %300 = vmatprep.subr.mxu0 0.0
    %301 = vmatpush1.msra.mxu0 0.0
    %302 = vmatprep.subr.mxu0 0.0
    %303 = vmatpush1.msra.mxu0 0.0
    %304 = vmatprep.subr.mxu0 0.0
    %v305 = vand.u32 %v84, 4294901760
    %306 = vmatpush1.msra.mxu0 %v305
    %307 = vmatprep.subr.mxu0 0.0
    %v308 = vand.u32 %v83, 4294901760
    %309 = vmatpush1.msra.mxu0 %v308
    %310 = vmatprep.subr.mxu0 0.0
    %v311 = vand.u32 %v82, 4294901760
    %312 = vmatpush1.msra.mxu0 %v311
    %313 = vmatprep.subr.mxu0 0.0
    %314 = vmatpush2.msra.mxu0 0.0
    %315 = vmatprep.subr.mxu0 0.0
    %316 = vmatpush2.msra.mxu0 0.0
    %317 = vmatprep.subr.mxu0 0.0
    %318 = vmatpush2.msra.mxu0 0.0
    %319 = vmatprep.subr.mxu0 0.0
    %320 = vmatpush2.msra.mxu0 0.0
    %321 = vmatprep.subr.mxu0 0.0
    %322 = vmatpush2.msra.mxu0 0.0
    %323 = vmatprep.subr.mxu0 0.0
    %324 = vmatpush2.msra.mxu0 0.0
    %325 = vmatprep.subr.mxu0 0.0
    %326 = vmatpush2.msra.mxu0 0.0
    %327 = vmatprep.subr.mxu0 0.0
    %328 = vmatpush2.msra.mxu0 0.0
    %329 = vmatprep.subr.mxu0 0.0
    %330 = vmatpush2.msra.mxu0 0.0
    %331 = vmatprep.subr.mxu0 0.0
    %332 = vmatpush2.msra.mxu0 0.0
    %333 = vmatprep.subr.mxu0 0.0
    %334 = vmatpush2.msra.mxu0 0.0
    %335 = vmatprep.subr.mxu0 0.0
    %336 = vmatpush2.msra.mxu0 0.0
    %337 = vmatprep.subr.mxu0 0.0
    %338 = vmatpush2.msra.mxu0 0.0
    %339 = vmatprep.subr.mxu0 0.0
    %340 = vmatpush2.msra.mxu0 0.0
    %341 = vmatprep.subr.mxu0 0.0
    %342 = vmatpush2.msra.mxu0 0.0
    %343 = vmatprep.subr.mxu0 0.0
    %344 = vmatpush2.msra.mxu0 0.0
    %345 = vmatprep.mubr.f32.mxu0 0.0
    %v346 = vand.u32 %v87, 4294901760
    %v347 = vsub.f32 %v87, %v346
    %v348 = vand.u32 %v347, 4294901760
    %v349 = vsub.f32 %v347, %v348
    %v350 = vand.u32 %v349, 4294901760
    %351 = vmatmul.mubr.f32.gmra.mxu0 %v350
    %v352 = vpop.f32.mrf.mxu0
    %v353 = vadd.f32 0.0, %v352
    %v354 = vpop.f32.mrf.mxu0
    %355 = vmatprep.mubr.f32.mxu0 0.0
    %v356 = vand.u32 %v90, 4294901760
    %v357 = vsub.f32 %v90, %v356
    %v358 = vand.u32 %v357, 4294901760
    %v359 = vsub.f32 %v357, %v358
    %v360 = vand.u32 %v359, 4294901760
    %361 = vmatmul.mubr.f32.gmra.mxu0 %v360
    %v362 = vpop.f32.mrf.mxu0
    %v363 = vadd.f32 0.0, %v362
    %v364 = vpop.f32.mrf.mxu0
    %365 = vmatprep.mubr.f32.mxu0 0.0
    %v366 = vand.u32 %v93, 4294901760
    %v367 = vsub.f32 %v93, %v366
    %v368 = vand.u32 %v367, 4294901760
    %v369 = vsub.f32 %v367, %v368
    %v370 = vand.u32 %v369, 4294901760
    %371 = vmatmul.mubr.f32.gmra.mxu0 %v370
    %v372 = vpop.f32.mrf.mxu0
    %v373 = vadd.f32 0.0, %v372
    %v374 = vpop.f32.mrf.mxu0
    %375 = vmatprep.mubr.f32.mxu0 0.0
    %v376 = vand.u32 %v96, 4294901760
    %v377 = vsub.f32 %v96, %v376
    %v378 = vand.u32 %v377, 4294901760
    %v379 = vsub.f32 %v377, %v378
    %v380 = vand.u32 %v379, 4294901760
    %381 = vmatmul.mubr.f32.gmra.mxu0 %v380
    %v382 = vpop.f32.mrf.mxu0
    %v383 = vadd.f32 0.0, %v382
    %v384 = vpop.f32.mrf.mxu0
    %385 = vmatprep.mubr.f32.mxu0 0.0
    %v386 = vand.u32 %v99, 4294901760
    %v387 = vsub.f32 %v99, %v386
    %v388 = vand.u32 %v387, 4294901760
    %v389 = vsub.f32 %v387, %v388
    %v390 = vand.u32 %v389, 4294901760
    %391 = vmatmul.mubr.f32.gmra.mxu0 %v390
    %v392 = vpop.f32.mrf.mxu0
    %v393 = vadd.f32 0.0, %v392
    %v394 = vpop.f32.mrf.mxu0
    %395 = vmatprep.mubr.f32.mxu0 0.0
    %v396 = vand.u32 %v102, 4294901760
    %v397 = vsub.f32 %v102, %v396
    %v398 = vand.u32 %v397, 4294901760
    %v399 = vsub.f32 %v397, %v398
    %v400 = vand.u32 %v399, 4294901760
    %401 = vmatmul.mubr.f32.gmra.mxu0 %v400
    %v402 = vpop.f32.mrf.mxu0
    %v403 = vadd.f32 0.0, %v402
    %v404 = vpop.f32.mrf.mxu0
    %405 = vmatprep.mubr.f32.mxu0 0.0
    %v406 = vand.u32 %v105, 4294901760
    %v407 = vsub.f32 %v105, %v406
    %v408 = vand.u32 %v407, 4294901760
    %v409 = vsub.f32 %v407, %v408
    %v410 = vand.u32 %v409, 4294901760
    %411 = vmatmul.mubr.f32.gmra.mxu0 %v410
    %v412 = vpop.f32.mrf.mxu0
    %v413 = vadd.f32 0.0, %v412
    %v414 = vpop.f32.mrf.mxu0
    %415 = vmatprep.mubr.f32.mxu0 0.0
    %v416 = vand.u32 %v108, 4294901760
    %v417 = vsub.f32 %v108, %v416
    %v418 = vand.u32 %v417, 4294901760
    %v419 = vsub.f32 %v417, %v418
    %v420 = vand.u32 %v419, 4294901760
    %421 = vmatmul.mubr.f32.gmra.mxu0 %v420
    %v422 = vpop.f32.mrf.mxu0
    %v423 = vadd.f32 0.0, %v422
    %v424 = vpop.f32.mrf.mxu0
    %425 = vmatprep.mubr.f32.mxu0 0.0
    %v426 = vand.u32 %v111, 4294901760
    %v427 = vsub.f32 %v111, %v426
    %v428 = vand.u32 %v427, 4294901760
    %v429 = vsub.f32 %v427, %v428
    %v430 = vand.u32 %v429, 4294901760
    %431 = vmatmul.mubr.f32.gmra.mxu0 %v430
    %v432 = vpop.f32.mrf.mxu0
    %v433 = vadd.f32 0.0, %v432
    %v434 = vpop.f32.mrf.mxu0
    %435 = vmatprep.mubr.f32.mxu0 0.0
    %v436 = vand.u32 %v114, 4294901760
    %v437 = vsub.f32 %v114, %v436
    %v438 = vand.u32 %v437, 4294901760
    %v439 = vsub.f32 %v437, %v438
    %v440 = vand.u32 %v439, 4294901760
    %441 = vmatmul.mubr.f32.gmra.mxu0 %v440
    %v442 = vpop.f32.mrf.mxu0
    %v443 = vadd.f32 0.0, %v442
    %v444 = vpop.f32.mrf.mxu0
    %445 = vmatprep.mubr.f32.mxu0 0.0
    %v446 = vand.u32 %v117, 4294901760
    %v447 = vsub.f32 %v117, %v446
    %v448 = vand.u32 %v447, 4294901760
    %v449 = vsub.f32 %v447, %v448
    %v450 = vand.u32 %v449, 4294901760
    %451 = vmatmul.mubr.f32.gmra.mxu0 %v450
    %v452 = vpop.f32.mrf.mxu0
    %v453 = vadd.f32 0.0, %v452
    %v454 = vpop.f32.mrf.mxu0
    %455 = vmatprep.mubr.f32.mxu0 0.0
    %v456 = vand.u32 %v120, 4294901760
    %v457 = vsub.f32 %v120, %v456
    %v458 = vand.u32 %v457, 4294901760
    %v459 = vsub.f32 %v457, %v458
    %v460 = vand.u32 %v459, 4294901760
    %461 = vmatmul.mubr.f32.gmra.mxu0 %v460
    %v462 = vpop.f32.mrf.mxu0
    %v463 = vadd.f32 0.0, %v462
    %v464 = vpop.f32.mrf.mxu0
    %465 = vmatprep.mubr.f32.mxu0 0.0
    %v466 = vand.u32 %v123, 4294901760
    %v467 = vsub.f32 %v123, %v466
    %v468 = vand.u32 %v467, 4294901760
    %v469 = vsub.f32 %v467, %v468
    %v470 = vand.u32 %v469, 4294901760
    %471 = vmatmul.mubr.f32.gmra.mxu0 %v470
    %v472 = vpop.f32.mrf.mxu0
    %v473 = vadd.f32 0.0, %v472
    %v474 = vpop.f32.mrf.mxu0
    %475 = vmatprep.mubr.f32.mxu0 0.0
    %v476 = vand.u32 %v126, 4294901760
    %v477 = vsub.f32 %v126, %v476
    %v478 = vand.u32 %v477, 4294901760
    %v479 = vsub.f32 %v477, %v478
    %v480 = vand.u32 %v479, 4294901760
    %481 = vmatmul.mubr.f32.gmra.mxu0 %v480
    %v482 = vpop.f32.mrf.mxu0
    %v483 = vadd.f32 0.0, %v482
    %v484 = vpop.f32.mrf.mxu0
    %485 = vmatprep.mubr.f32.mxu0 0.0
    %v486 = vand.u32 %v129, 4294901760
    %v487 = vsub.f32 %v129, %v486
    %v488 = vand.u32 %v487, 4294901760
    %v489 = vsub.f32 %v487, %v488
    %v490 = vand.u32 %v489, 4294901760
    %491 = vmatmul.mubr.f32.gmra.mxu0 %v490
    %v492 = vpop.f32.mrf.mxu0
    %v493 = vadd.f32 0.0, %v492
    %v494 = vpop.f32.mrf.mxu0
    %495 = vmatprep.mubr.f32.mxu0 0.0
    %v496 = vand.u32 %v132, 4294901760
    %v497 = vsub.f32 %v132, %v496
    %v498 = vand.u32 %v497, 4294901760
    %v499 = vsub.f32 %v497, %v498
    %v500 = vand.u32 %v499, 4294901760
    %501 = vmatmul.mubr.f32.gmra.mxu0 %v500
    %v502 = vpop.f32.mrf.mxu0
    %v503 = vadd.f32 0.0, %v502
    %v504 = vpop.f32.mrf.mxu0
    %505 = vmatprep.mubr.f32.mxu0 0.0
    %v506 = vand.u32 %v135, 4294901760
    %v507 = vsub.f32 %v135, %v506
    %v508 = vand.u32 %v507, 4294901760
    %v509 = vsub.f32 %v507, %v508
    %v510 = vand.u32 %v509, 4294901760
    %511 = vmatmul.mubr.f32.gmra.mxu0 %v510
    %v512 = vpop.f32.mrf.mxu0
    %v513 = vadd.f32 0.0, %v512
    %v514 = vpop.f32.mrf.mxu0
    %515 = vmatprep.mubr.f32.mxu0 0.0
    %v516 = vand.u32 %v138, 4294901760
    %v517 = vsub.f32 %v138, %v516
    %v518 = vand.u32 %v517, 4294901760
    %v519 = vsub.f32 %v517, %v518
    %v520 = vand.u32 %v519, 4294901760
    %521 = vmatmul.mubr.f32.gmra.mxu0 %v520
    %v522 = vpop.f32.mrf.mxu0
    %v523 = vadd.f32 0.0, %v522
    %v524 = vpop.f32.mrf.mxu0
    %525 = vmatprep.mubr.f32.mxu0 0.0
    %v526 = vand.u32 %v141, 4294901760
    %v527 = vsub.f32 %v141, %v526
    %v528 = vand.u32 %v527, 4294901760
    %v529 = vsub.f32 %v527, %v528
    %v530 = vand.u32 %v529, 4294901760
    %531 = vmatmul.mubr.f32.gmra.mxu0 %v530
    %v532 = vpop.f32.mrf.mxu0
    %v533 = vadd.f32 0.0, %v532
    %v534 = vpop.f32.mrf.mxu0
    %535 = vmatprep.mubr.f32.mxu0 0.0
    %v536 = vand.u32 %v144, 4294901760
    %v537 = vsub.f32 %v144, %v536
    %v538 = vand.u32 %v537, 4294901760
    %v539 = vsub.f32 %v537, %v538
    %v540 = vand.u32 %v539, 4294901760
    %541 = vmatmul.mubr.f32.gmra.mxu0 %v540
    %v542 = vpop.f32.mrf.mxu0
    %v543 = vadd.f32 0.0, %v542
    %v544 = vpop.f32.mrf.mxu0
    %545 = vmatprep.mubr.f32.mxu0 0.0
    %v546 = vand.u32 %v147, 4294901760
    %v547 = vsub.f32 %v147, %v546
    %v548 = vand.u32 %v547, 4294901760
    %v549 = vsub.f32 %v547, %v548
    %v550 = vand.u32 %v549, 4294901760
    %551 = vmatmul.mubr.f32.gmra.mxu0 %v550
    %v552 = vpop.f32.mrf.mxu0
    %v553 = vadd.f32 0.0, %v552
    %v554 = vpop.f32.mrf.mxu0
    %555 = vmatprep.mubr.f32.mxu0 0.0
    %v556 = vand.u32 %v150, 4294901760
    %v557 = vsub.f32 %v150, %v556
    %v558 = vand.u32 %v557, 4294901760
    %v559 = vsub.f32 %v557, %v558
    %v560 = vand.u32 %v559, 4294901760
    %561 = vmatmul.mubr.f32.gmra.mxu0 %v560
    %v562 = vpop.f32.mrf.mxu0
    %v563 = vadd.f32 0.0, %v562
    %v564 = vpop.f32.mrf.mxu0
    %565 = vmatprep.mubr.f32.mxu0 0.0
    %v566 = vand.u32 %v153, 4294901760
    %v567 = vsub.f32 %v153, %v566
    %v568 = vand.u32 %v567, 4294901760
    %v569 = vsub.f32 %v567, %v568
    %v570 = vand.u32 %v569, 4294901760
    %571 = vmatmul.mubr.f32.gmra.mxu0 %v570
    %v572 = vpop.f32.mrf.mxu0
    %v573 = vadd.f32 0.0, %v572
    %v574 = vpop.f32.mrf.mxu0
    %575 = vmatprep.mubr.f32.mxu0 0.0
    %v576 = vand.u32 %v156, 4294901760
    %v577 = vsub.f32 %v156, %v576
    %v578 = vand.u32 %v577, 4294901760
    %v579 = vsub.f32 %v577, %v578
    %v580 = vand.u32 %v579, 4294901760
    %581 = vmatmul.mubr.f32.gmra.mxu0 %v580
    %v582 = vpop.f32.mrf.mxu0
    %v583 = vadd.f32 0.0, %v582
    %v584 = vpop.f32.mrf.mxu0
    %585 = vmatprep.mubr.f32.mxu0 0.0
    %v586 = vand.u32 %v159, 4294901760
    %v587 = vsub.f32 %v159, %v586
    %v588 = vand.u32 %v587, 4294901760
    %v589 = vsub.f32 %v587, %v588
    %v590 = vand.u32 %v589, 4294901760
    %591 = vmatmul.mubr.f32.gmra.mxu0 %v590
    %v592 = vpop.f32.mrf.mxu0
    %v593 = vadd.f32 0.0, %v592
    %v594 = vpop.f32.mrf.mxu0
    %595 = vmatprep.mubr.f32.mxu0 0.0
    %v596 = vand.u32 %v162, 4294901760
    %v597 = vsub.f32 %v162, %v596
    %v598 = vand.u32 %v597, 4294901760
    %v599 = vsub.f32 %v597, %v598
    %v600 = vand.u32 %v599, 4294901760
    %601 = vmatmul.mubr.f32.gmra.mxu0 %v600
    %v602 = vpop.f32.mrf.mxu0
    %v603 = vadd.f32 0.0, %v602
    %v604 = vpop.f32.mrf.mxu0
    %605 = vmatprep.mubr.f32.mxu0 0.0
    %v606 = vand.u32 %v165, 4294901760
    %v607 = vsub.f32 %v165, %v606
    %v608 = vand.u32 %v607, 4294901760
    %v609 = vsub.f32 %v607, %v608
    %v610 = vand.u32 %v609, 4294901760
    %611 = vmatmul.mubr.f32.gmra.mxu0 %v610
    %v612 = vpop.f32.mrf.mxu0
    %v613 = vadd.f32 0.0, %v612
    %v614 = vpop.f32.mrf.mxu0
    %615 = vmatprep.mubr.f32.mxu0 0.0
    %v616 = vand.u32 %v168, 4294901760
    %v617 = vsub.f32 %v168, %v616
    %v618 = vand.u32 %v617, 4294901760
    %v619 = vsub.f32 %v617, %v618
    %v620 = vand.u32 %v619, 4294901760
    %621 = vmatmul.mubr.f32.gmra.mxu0 %v620
    %v622 = vpop.f32.mrf.mxu0
    %v623 = vadd.f32 0.0, %v622
    %v624 = vpop.f32.mrf.mxu0
    %625 = vmatprep.mubr.f32.mxu0 0.0
    %v626 = vand.u32 %v171, 4294901760
    %v627 = vsub.f32 %v171, %v626
    %v628 = vand.u32 %v627, 4294901760
    %v629 = vsub.f32 %v627, %v628
    %v630 = vand.u32 %v629, 4294901760
    %631 = vmatmul.mubr.f32.gmra.mxu0 %v630
    %v632 = vpop.f32.mrf.mxu0
    %v633 = vadd.f32 0.0, %v632
    %v634 = vpop.f32.mrf.mxu0
    %635 = vmatprep.mubr.f32.mxu0 0.0
    %v636 = vand.u32 %v174, 4294901760
    %v637 = vsub.f32 %v174, %v636
    %v638 = vand.u32 %v637, 4294901760
    %v639 = vsub.f32 %v637, %v638
    %v640 = vand.u32 %v639, 4294901760
    %641 = vmatmul.mubr.f32.gmra.mxu0 %v640
    %v642 = vpop.f32.mrf.mxu0
    %v643 = vadd.f32 0.0, %v642
    %v644 = vpop.f32.mrf.mxu0
    %645 = vmatprep.mubr.f32.mxu0 0.0
    %v646 = vand.u32 %v177, 4294901760
    %v647 = vsub.f32 %v177, %v646
    %v648 = vand.u32 %v647, 4294901760
    %v649 = vsub.f32 %v647, %v648
    %v650 = vand.u32 %v649, 4294901760
    %651 = vmatmul.mubr.f32.gmra.mxu0 %v650
    %v652 = vpop.f32.mrf.mxu0
    %v653 = vadd.f32 0.0, %v652
    %v654 = vpop.f32.mrf.mxu0
    %655 = vmatprep.mubr.f32.mxu0 0.0
    %v656 = vand.u32 %v180, 4294901760
    %v657 = vsub.f32 %v180, %v656
    %v658 = vand.u32 %v657, 4294901760
    %v659 = vsub.f32 %v657, %v658
    %v660 = vand.u32 %v659, 4294901760
    %661 = vmatmul.mubr.f32.gmra.mxu0 %v660
    %v662 = vpop.f32.mrf.mxu0
    %v663 = vadd.f32 0.0, %v662
    %v664 = vpop.f32.mrf.mxu0
    %665 = vmatprep.mubr.f32.mxu0 0.0
    %v666 = vand.u32 %v183, 4294901760
    %v667 = vsub.f32 %v183, %v666
    %v668 = vand.u32 %v667, 4294901760
    %v669 = vsub.f32 %v667, %v668
    %v670 = vand.u32 %v669, 4294901760
    %671 = vmatmul.mubr.f32.gmra.mxu0 %v670
    %v672 = vpop.f32.mrf.mxu0
    %v673 = vadd.f32 0.0, %v672
    %v674 = vpop.f32.mrf.mxu0
    %675 = vmatprep.mubr.f32.mxu0 0.0
    %v676 = vand.u32 %v186, 4294901760
    %v677 = vsub.f32 %v186, %v676
    %v678 = vand.u32 %v677, 4294901760
    %v679 = vsub.f32 %v677, %v678
    %v680 = vand.u32 %v679, 4294901760
    %681 = vmatmul.mubr.f32.gmra.mxu0 %v680
    %v682 = vpop.f32.mrf.mxu0
    %v683 = vadd.f32 0.0, %v682
    %v684 = vpop.f32.mrf.mxu0
    %685 = vmatprep.mubr.f32.mxu0 0.0
    %v686 = vand.u32 %v189, 4294901760
    %v687 = vsub.f32 %v189, %v686
    %v688 = vand.u32 %v687, 4294901760
    %v689 = vsub.f32 %v687, %v688
    %v690 = vand.u32 %v689, 4294901760
    %691 = vmatmul.mubr.f32.gmra.mxu0 %v690
    %v692 = vpop.f32.mrf.mxu0
    %v693 = vadd.f32 0.0, %v692
    %v694 = vpop.f32.mrf.mxu0
    %695 = vmatprep.mubr.f32.mxu0 0.0
    %v696 = vand.u32 %v192, 4294901760
    %v697 = vsub.f32 %v192, %v696
    %v698 = vand.u32 %v697, 4294901760
    %v699 = vsub.f32 %v697, %v698
    %v700 = vand.u32 %v699, 4294901760
    %701 = vmatmul.mubr.f32.gmra.mxu0 %v700
    %v702 = vpop.f32.mrf.mxu0
    %v703 = vadd.f32 0.0, %v702
    %v704 = vpop.f32.mrf.mxu0
    %705 = vmatprep.mubr.f32.mxu0 0.0
    %v706 = vand.u32 %v195, 4294901760
    %v707 = vsub.f32 %v195, %v706
    %v708 = vand.u32 %v707, 4294901760
    %v709 = vsub.f32 %v707, %v708
    %v710 = vand.u32 %v709, 4294901760
    %711 = vmatmul.mubr.f32.gmra.mxu0 %v710
    %v712 = vpop.f32.mrf.mxu0
    %v713 = vadd.f32 0.0, %v712
    %v714 = vpop.f32.mrf.mxu0
    %715 = vmatprep.mubr.f32.mxu0 0.0
    %v716 = vand.u32 %v198, 4294901760
    %v717 = vsub.f32 %v198, %v716
    %v718 = vand.u32 %v717, 4294901760
    %v719 = vsub.f32 %v717, %v718
    %v720 = vand.u32 %v719, 4294901760
    %721 = vmatmul.mubr.f32.gmra.mxu0 %v720
    %v722 = vpop.f32.mrf.mxu0
    %v723 = vadd.f32 0.0, %v722
    %v724 = vpop.f32.mrf.mxu0
    %725 = vmatprep.mubr.f32.mxu0 0.0
    %v726 = vand.u32 %v201, 4294901760
    %v727 = vsub.f32 %v201, %v726
    %v728 = vand.u32 %v727, 4294901760
    %v729 = vsub.f32 %v727, %v728
    %v730 = vand.u32 %v729, 4294901760
    %731 = vmatmul.mubr.f32.gmra.mxu0 %v730
    %v732 = vpop.f32.mrf.mxu0
    %v733 = vadd.f32 0.0, %v732
    %v734 = vpop.f32.mrf.mxu0
    %735 = vmatprep.mubr.f32.mxu0 0.0
    %v736 = vand.u32 %v204, 4294901760
    %v737 = vsub.f32 %v204, %v736
    %v738 = vand.u32 %v737, 4294901760
    %v739 = vsub.f32 %v737, %v738
    %v740 = vand.u32 %v739, 4294901760
    %741 = vmatmul.mubr.f32.gmra.mxu0 %v740
    %v742 = vpop.f32.mrf.mxu0
    %v743 = vadd.f32 0.0, %v742
    %v744 = vpop.f32.mrf.mxu0
    %745 = vmatprep.mubr.f32.mxu0 0.0
    %v746 = vand.u32 %v207, 4294901760
    %v747 = vsub.f32 %v207, %v746
    %v748 = vand.u32 %v747, 4294901760
    %v749 = vsub.f32 %v747, %v748
    %v750 = vand.u32 %v749, 4294901760
    %751 = vmatmul.mubr.f32.gmra.mxu0 %v750
    %v752 = vpop.f32.mrf.mxu0
    %v753 = vadd.f32 0.0, %v752
    %v754 = vpop.f32.mrf.mxu0
    %755 = vmatprep.mubr.f32.mxu0 0.0
    %v756 = vand.u32 %v210, 4294901760
    %v757 = vsub.f32 %v210, %v756
    %v758 = vand.u32 %v757, 4294901760
    %v759 = vsub.f32 %v757, %v758
    %v760 = vand.u32 %v759, 4294901760
    %761 = vmatmul.mubr.f32.gmra.mxu0 %v760
    %v762 = vpop.f32.mrf.mxu0
    %v763 = vadd.f32 0.0, %v762
    %v764 = vpop.f32.mrf.mxu0
    %765 = vmatprep.mubr.f32.mxu0 0.0
    %v766 = vand.u32 %v213, 4294901760
    %v767 = vsub.f32 %v213, %v766
    %v768 = vand.u32 %v767, 4294901760
    %v769 = vsub.f32 %v767, %v768
    %v770 = vand.u32 %v769, 4294901760
    %771 = vmatmul.mubr.f32.gmra.mxu0 %v770
    %v772 = vpop.f32.mrf.mxu0
    %v773 = vadd.f32 0.0, %v772
    %v774 = vpop.f32.mrf.mxu0
    %775 = vmatprep.mubr.f32.mxu0 0.0
    %v776 = vand.u32 %v216, 4294901760
    %v777 = vsub.f32 %v216, %v776
    %v778 = vand.u32 %v777, 4294901760
    %v779 = vsub.f32 %v777, %v778
    %v780 = vand.u32 %v779, 4294901760
    %781 = vmatmul.mubr.f32.gmra.mxu0 %v780
    %v782 = vpop.f32.mrf.mxu0
    %v783 = vadd.f32 0.0, %v782
    %v784 = vpop.f32.mrf.mxu0
    %785 = vmatprep.mubr.f32.mxu0 0.0
    %v786 = vand.u32 %v219, 4294901760
    %v787 = vsub.f32 %v219, %v786
    %v788 = vand.u32 %v787, 4294901760
    %v789 = vsub.f32 %v787, %v788
    %v790 = vand.u32 %v789, 4294901760
    %791 = vmatmul.mubr.f32.gmra.mxu0 %v790
    %v792 = vpop.f32.mrf.mxu0
    %v793 = vadd.f32 0.0, %v792
    %v794 = vpop.f32.mrf.mxu0
    %795 = vmatprep.mubr.f32.mxu0 0.0
    %v796 = vand.u32 %v222, 4294901760
    %v797 = vsub.f32 %v222, %v796
    %v798 = vand.u32 %v797, 4294901760
    %v799 = vsub.f32 %v797, %v798
    %v800 = vand.u32 %v799, 4294901760
    %801 = vmatmul.mubr.f32.gmra.mxu0 %v800
    %v802 = vpop.f32.mrf.mxu0
    %v803 = vadd.f32 0.0, %v802
    %v804 = vpop.f32.mrf.mxu0
    %805 = vmatprep.mubr.f32.mxu0 0.0
    %v806 = vand.u32 %v225, 4294901760
    %v807 = vsub.f32 %v225, %v806
    %v808 = vand.u32 %v807, 4294901760
    %v809 = vsub.f32 %v807, %v808
    %v810 = vand.u32 %v809, 4294901760
    %811 = vmatmul.mubr.f32.gmra.mxu0 %v810
    %v812 = vpop.f32.mrf.mxu0
    %v813 = vadd.f32 0.0, %v812
    %v814 = vpop.f32.mrf.mxu0
    %815 = vmatprep.mubr.f32.mxu0 0.0
    %v816 = vand.u32 %v228, 4294901760
    %v817 = vsub.f32 %v228, %v816
    %v818 = vand.u32 %v817, 4294901760
    %v819 = vsub.f32 %v817, %v818
    %v820 = vand.u32 %v819, 4294901760
    %821 = vmatmul.mubr.f32.gmra.mxu0 %v820
    %v822 = vpop.f32.mrf.mxu0
    %v823 = vadd.f32 0.0, %v822
    %v824 = vpop.f32.mrf.mxu0
    %825 = vmatprep.mubr.f32.mxu0 0.0
    %v826 = vand.u32 %v231, 4294901760
    %v827 = vsub.f32 %v231, %v826
    %v828 = vand.u32 %v827, 4294901760
    %v829 = vsub.f32 %v827, %v828
    %v830 = vand.u32 %v829, 4294901760
    %831 = vmatmul.mubr.f32.gmra.mxu0 %v830
    %v832 = vpop.f32.mrf.mxu0
    %v833 = vadd.f32 0.0, %v832
    %v834 = vpop.f32.mrf.mxu0
    %835 = vmatprep.mubr.f32.mxu0 0.0
    %v836 = vand.u32 %v234, 4294901760
    %v837 = vsub.f32 %v234, %v836
    %v838 = vand.u32 %v837, 4294901760
    %v839 = vsub.f32 %v837, %v838
    %v840 = vand.u32 %v839, 4294901760
    %841 = vmatmul.mubr.f32.gmra.mxu0 %v840
    %v842 = vpop.f32.mrf.mxu0
    %v843 = vadd.f32 0.0, %v842
    %v844 = vpop.f32.mrf.mxu0
    %845 = vmatprep.mubr.f32.mxu0 0.0
    %v846 = vand.u32 %v237, 4294901760
    %v847 = vsub.f32 %v237, %v846
    %v848 = vand.u32 %v847, 4294901760
    %v849 = vsub.f32 %v847, %v848
    %v850 = vand.u32 %v849, 4294901760
    %851 = vmatmul.mubr.f32.gmra.mxu0 %v850
    %v852 = vpop.f32.mrf.mxu0
    %v853 = vadd.f32 0.0, %v852
    %v854 = vpop.f32.mrf.mxu0
    %855 = vmatprep.mubr.f32.mxu0 0.0
    %v856 = vand.u32 %v240, 4294901760
    %v857 = vsub.f32 %v240, %v856
    %v858 = vand.u32 %v857, 4294901760
    %v859 = vsub.f32 %v857, %v858
    %v860 = vand.u32 %v859, 4294901760
    %861 = vmatmul.mubr.f32.gmra.mxu0 %v860
    %v862 = vpop.f32.mrf.mxu0
    %v863 = vadd.f32 0.0, %v862
    %v864 = vpop.f32.mrf.mxu0
    %865 = vmatprep.mubr.f32.mxu0 0.0
    %v866 = vand.u32 %v243, 4294901760
    %v867 = vsub.f32 %v243, %v866
    %v868 = vand.u32 %v867, 4294901760
    %v869 = vsub.f32 %v867, %v868
    %v870 = vand.u32 %v869, 4294901760
    %871 = vmatmul.mubr.f32.gmra.mxu0 %v870
    %v872 = vpop.f32.mrf.mxu0
    %v873 = vadd.f32 0.0, %v872
    %v874 = vpop.f32.mrf.mxu0
    %875 = vmatprep.mubr.f32.mxu0 0.0
    %v876 = vand.u32 %v246, 4294901760
    %v877 = vsub.f32 %v246, %v876
    %v878 = vand.u32 %v877, 4294901760
    %v879 = vsub.f32 %v877, %v878
    %v880 = vand.u32 %v879, 4294901760
    %881 = vmatmul.mubr.f32.gmra.mxu0 %v880
    %v882 = vpop.f32.mrf.mxu0
    %v883 = vadd.f32 0.0, %v882
    %v884 = vpop.f32.mrf.mxu0
    %885 = vmatprep.mubr.f32.mxu0 0.0
    %v886 = vand.u32 %v249, 4294901760
    %v887 = vsub.f32 %v249, %v886
    %v888 = vand.u32 %v887, 4294901760
    %v889 = vsub.f32 %v887, %v888
    %v890 = vand.u32 %v889, 4294901760
    %891 = vmatmul.mubr.f32.gmra.mxu0 %v890
    %v892 = vpop.f32.mrf.mxu0
    %v893 = vadd.f32 0.0, %v892
    %v894 = vpop.f32.mrf.mxu0
    %895 = vmatprep.mubr.f32.mxu0 0.0
    %v896 = vand.u32 %v252, 4294901760
    %v897 = vsub.f32 %v252, %v896
    %v898 = vand.u32 %v897, 4294901760
    %v899 = vsub.f32 %v897, %v898
    %v900 = vand.u32 %v899, 4294901760
    %901 = vmatmul.mubr.f32.gmra.mxu0 %v900
    %v902 = vpop.f32.mrf.mxu0
    %v903 = vadd.f32 0.0, %v902
    %v904 = vpop.f32.mrf.mxu0
    %905 = vmatprep.mubr.f32.mxu0 0.0
    %v906 = vand.u32 %v255, 4294901760
    %v907 = vsub.f32 %v255, %v906
    %v908 = vand.u32 %v907, 4294901760
    %v909 = vsub.f32 %v907, %v908
    %v910 = vand.u32 %v909, 4294901760
    %911 = vmatmul.mubr.f32.gmra.mxu0 %v910
    %v912 = vpop.f32.mrf.mxu0
    %v913 = vadd.f32 0.0, %v912
    %v914 = vpop.f32.mrf.mxu0
    %915 = vmatprep.mubr.f32.mxu0 0.0
    %v916 = vand.u32 %v258, 4294901760
    %v917 = vsub.f32 %v258, %v916
    %v918 = vand.u32 %v917, 4294901760
    %v919 = vsub.f32 %v917, %v918
    %v920 = vand.u32 %v919, 4294901760
    %921 = vmatmul.mubr.f32.gmra.mxu0 %v920
    %v922 = vpop.f32.mrf.mxu0
    %v923 = vadd.f32 0.0, %v922
    %v924 = vpop.f32.mrf.mxu0
    %925 = vmatprep.mubr.f32.mxu0 0.0
    %v926 = vand.u32 %v261, 4294901760
    %v927 = vsub.f32 %v261, %v926
    %v928 = vand.u32 %v927, 4294901760
    %v929 = vsub.f32 %v927, %v928
    %v930 = vand.u32 %v929, 4294901760
    %931 = vmatmul.mubr.f32.gmra.mxu0 %v930
    %v932 = vpop.f32.mrf.mxu0
    %v933 = vadd.f32 0.0, %v932
    %v934 = vpop.f32.mrf.mxu0
    %935 = vmatprep.mubr.f32.mxu0 0.0
    %v936 = vand.u32 %v264, 4294901760
    %v937 = vsub.f32 %v264, %v936
    %v938 = vand.u32 %v937, 4294901760
    %v939 = vsub.f32 %v937, %v938
    %v940 = vand.u32 %v939, 4294901760
    %941 = vmatmul.mubr.f32.gmra.mxu0 %v940
    %v942 = vpop.f32.mrf.mxu0
    %v943 = vadd.f32 0.0, %v942
    %v944 = vpop.f32.mrf.mxu0
    %945 = vmatprep.mubr.f32.mxu0 0.0
    %v946 = vand.u32 %v267, 4294901760
    %v947 = vsub.f32 %v267, %v946
    %v948 = vand.u32 %v947, 4294901760
    %v949 = vsub.f32 %v947, %v948
    %v950 = vand.u32 %v949, 4294901760
    %951 = vmatmul.mubr.f32.gmra.mxu0 %v950
    %v952 = vpop.f32.mrf.mxu0
    %v953 = vadd.f32 0.0, %v952
    %v954 = vpop.f32.mrf.mxu0
    %955 = vmatprep.mubr.f32.mxu0 0.0
    %v956 = vand.u32 %v270, 4294901760
    %v957 = vsub.f32 %v270, %v956
    %v958 = vand.u32 %v957, 4294901760
    %v959 = vsub.f32 %v957, %v958
    %v960 = vand.u32 %v959, 4294901760
    %961 = vmatmul.mubr.f32.gmra.mxu0 %v960
    %v962 = vpop.f32.mrf.mxu0
    %v963 = vadd.f32 0.0, %v962
    %v964 = vpop.f32.mrf.mxu0
    %965 = vmatprep.mubr.f32.mxu0 0.0
    %v966 = vand.u32 %v273, 4294901760
    %v967 = vsub.f32 %v273, %v966
    %v968 = vand.u32 %v967, 4294901760
    %v969 = vsub.f32 %v967, %v968
    %v970 = vand.u32 %v969, 4294901760
    %971 = vmatmul.mubr.f32.gmra.mxu0 %v970
    %v972 = vpop.f32.mrf.mxu0
    %v973 = vadd.f32 0.0, %v972
    %v974 = vpop.f32.mrf.mxu0
    %975 = vmatprep.mubr.f32.mxu0 0.0
    %v976 = vand.u32 %v276, 4294901760
    %v977 = vsub.f32 %v276, %v976
    %v978 = vand.u32 %v977, 4294901760
    %v979 = vsub.f32 %v977, %v978
    %v980 = vand.u32 %v979, 4294901760
    %981 = vmatmul.mubr.f32.gmra.mxu0 %v980
    %v982 = vpop.f32.mrf.mxu0
    %v983 = vadd.f32 0.0, %v982
    %v984 = vpop.f32.mrf.mxu0
    %985 = vdwg.mxu0
    %986 = vmatprep.subr.mxu0 0.0
    %987 = vmatpush1.msra.mxu0 0.0
    %988 = vmatprep.subr.mxu0 0.0
    %989 = vmatpush1.msra.mxu0 0.0
    %990 = vmatprep.subr.mxu0 0.0
    %991 = vmatpush1.msra.mxu0 0.0
    %992 = vmatprep.subr.mxu0 0.0
    %993 = vmatpush1.msra.mxu0 0.0
    %994 = vmatprep.subr.mxu0 0.0
    %995 = vmatpush1.msra.mxu0 0.0
    %996 = vmatprep.subr.mxu0 0.0
    %997 = vmatpush1.msra.mxu0 0.0
    %998 = vmatprep.subr.mxu0 0.0
    %999 = vmatpush1.msra.mxu0 0.0
    %1000 = vmatprep.subr.mxu0 0.0
    %1001 = vmatpush1.msra.mxu0 0.0
    %1002 = vmatprep.subr.mxu0 0.0
    %1003 = vmatpush1.msra.mxu0 0.0
    %1004 = vmatprep.subr.mxu0 0.0
    %1005 = vmatpush1.msra.mxu0 0.0
    %1006 = vmatprep.subr.mxu0 0.0
    %1007 = vmatpush1.msra.mxu0 0.0
    %1008 = vmatprep.subr.mxu0 0.0
    %1009 = vmatpush1.msra.mxu0 0.0
    %1010 = vmatprep.subr.mxu0 0.0
    %1011 = vmatpush1.msra.mxu0 0.0
    %1012 = vmatprep.subr.mxu0 0.0
    %v1013 = vand.u32 %v84, 4294901760
    %v1014 = vsub.f32 %v84, %v1013
    %v1015 = vand.u32 %v1014, 4294901760
    %v1016 = vsub.f32 %v1014, %v1015
    %v1017 = vand.u32 %v1016, 4294901760
    %1018 = vmatpush1.msra.mxu0 %v1017
    %1019 = vmatprep.subr.mxu0 0.0
    %v1020 = vand.u32 %v83, 4294901760
    %v1021 = vsub.f32 %v83, %v1020
    %v1022 = vand.u32 %v1021, 4294901760
    %v1023 = vsub.f32 %v1021, %v1022
    %v1024 = vand.u32 %v1023, 4294901760
    %1025 = vmatpush1.msra.mxu0 %v1024
    %1026 = vmatprep.subr.mxu0 0.0
    %v1027 = vand.u32 %v82, 4294901760
    %v1028 = vsub.f32 %v82, %v1027
    %v1029 = vand.u32 %v1028, 4294901760
    %v1030 = vsub.f32 %v1028, %v1029
    %v1031 = vand.u32 %v1030, 4294901760
    %1032 = vmatpush1.msra.mxu0 %v1031
    %1033 = vmatprep.subr.mxu0 0.0
    %1034 = vmatpush2.msra.mxu0 0.0
    %1035 = vmatprep.subr.mxu0 0.0
    %1036 = vmatpush2.msra.mxu0 0.0
    %1037 = vmatprep.subr.mxu0 0.0
    %1038 = vmatpush2.msra.mxu0 0.0
    %1039 = vmatprep.subr.mxu0 0.0
    %1040 = vmatpush2.msra.mxu0 0.0
    %1041 = vmatprep.subr.mxu0 0.0
    %1042 = vmatpush2.msra.mxu0 0.0
    %1043 = vmatprep.subr.mxu0 0.0
    %1044 = vmatpush2.msra.mxu0 0.0
    %1045 = vmatprep.subr.mxu0 0.0
    %1046 = vmatpush2.msra.mxu0 0.0
    %1047 = vmatprep.subr.mxu0 0.0
    %1048 = vmatpush2.msra.mxu0 0.0
    %1049 = vmatprep.subr.mxu0 0.0
    %1050 = vmatpush2.msra.mxu0 0.0
    %1051 = vmatprep.subr.mxu0 0.0
    %1052 = vmatpush2.msra.mxu0 0.0
    %1053 = vmatprep.subr.mxu0 0.0
    %1054 = vmatpush2.msra.mxu0 0.0
    %1055 = vmatprep.subr.mxu0 0.0
    %1056 = vmatpush2.msra.mxu0 0.0
    %1057 = vmatprep.subr.mxu0 0.0
    %1058 = vmatpush2.msra.mxu0 0.0
    %1059 = vmatprep.subr.mxu0 0.0
    %1060 = vmatpush2.msra.mxu0 0.0
    %1061 = vmatprep.subr.mxu0 0.0
    %1062 = vmatpush2.msra.mxu0 0.0
    %1063 = vmatprep.subr.mxu0 0.0
    %1064 = vmatpush2.msra.mxu0 0.0
    %1065 = vmatprep.mubr.f32.mxu0 0.0
    %v1066 = vand.u32 %v87, 4294901760
    %1067 = vmatmul.mubr.f32.gmra.mxu0 %v1066
    %v1068 = vpop.f32.mrf.mxu0
    %v1069 = vadd.f32 %v353, %v1068
    %v1070 = vpop.f32.mrf.mxu0
    %1071 = vmatprep.mubr.f32.mxu0 0.0
    %v1072 = vand.u32 %v90, 4294901760
    %1073 = vmatmul.mubr.f32.gmra.mxu0 %v1072
    %v1074 = vpop.f32.mrf.mxu0
    %v1075 = vadd.f32 %v363, %v1074
    %v1076 = vpop.f32.mrf.mxu0
    %1077 = vmatprep.mubr.f32.mxu0 0.0
    %v1078 = vand.u32 %v93, 4294901760
    %1079 = vmatmul.mubr.f32.gmra.mxu0 %v1078
    %v1080 = vpop.f32.mrf.mxu0
    %v1081 = vadd.f32 %v373, %v1080
    %v1082 = vpop.f32.mrf.mxu0
    %1083 = vmatprep.mubr.f32.mxu0 0.0
    %v1084 = vand.u32 %v96, 4294901760
    %1085 = vmatmul.mubr.f32.gmra.mxu0 %v1084
    %v1086 = vpop.f32.mrf.mxu0
    %v1087 = vadd.f32 %v383, %v1086
    %v1088 = vpop.f32.mrf.mxu0
    %1089 = vmatprep.mubr.f32.mxu0 0.0
    %v1090 = vand.u32 %v99, 4294901760
    %1091 = vmatmul.mubr.f32.gmra.mxu0 %v1090
    %v1092 = vpop.f32.mrf.mxu0
    %v1093 = vadd.f32 %v393, %v1092
    %v1094 = vpop.f32.mrf.mxu0
    %1095 = vmatprep.mubr.f32.mxu0 0.0
    %v1096 = vand.u32 %v102, 4294901760
    %1097 = vmatmul.mubr.f32.gmra.mxu0 %v1096
    %v1098 = vpop.f32.mrf.mxu0
    %v1099 = vadd.f32 %v403, %v1098
    %v1100 = vpop.f32.mrf.mxu0
    %1101 = vmatprep.mubr.f32.mxu0 0.0
    %v1102 = vand.u32 %v105, 4294901760
    %1103 = vmatmul.mubr.f32.gmra.mxu0 %v1102
    %v1104 = vpop.f32.mrf.mxu0
    %v1105 = vadd.f32 %v413, %v1104
    %v1106 = vpop.f32.mrf.mxu0
    %1107 = vmatprep.mubr.f32.mxu0 0.0
    %v1108 = vand.u32 %v108, 4294901760
    %1109 = vmatmul.mubr.f32.gmra.mxu0 %v1108
    %v1110 = vpop.f32.mrf.mxu0
    %v1111 = vadd.f32 %v423, %v1110
    %v1112 = vpop.f32.mrf.mxu0
    %1113 = vmatprep.mubr.f32.mxu0 0.0
    %v1114 = vand.u32 %v111, 4294901760
    %1115 = vmatmul.mubr.f32.gmra.mxu0 %v1114
    %v1116 = vpop.f32.mrf.mxu0
    %v1117 = vadd.f32 %v433, %v1116
    %v1118 = vpop.f32.mrf.mxu0
    %1119 = vmatprep.mubr.f32.mxu0 0.0
    %v1120 = vand.u32 %v114, 4294901760
    %1121 = vmatmul.mubr.f32.gmra.mxu0 %v1120
    %v1122 = vpop.f32.mrf.mxu0
    %v1123 = vadd.f32 %v443, %v1122
    %v1124 = vpop.f32.mrf.mxu0
    %1125 = vmatprep.mubr.f32.mxu0 0.0
    %v1126 = vand.u32 %v117, 4294901760
    %1127 = vmatmul.mubr.f32.gmra.mxu0 %v1126
    %v1128 = vpop.f32.mrf.mxu0
    %v1129 = vadd.f32 %v453, %v1128
    %v1130 = vpop.f32.mrf.mxu0
    %1131 = vmatprep.mubr.f32.mxu0 0.0
    %v1132 = vand.u32 %v120, 4294901760
    %1133 = vmatmul.mubr.f32.gmra.mxu0 %v1132
    %v1134 = vpop.f32.mrf.mxu0
    %v1135 = vadd.f32 %v463, %v1134
    %v1136 = vpop.f32.mrf.mxu0
    %1137 = vmatprep.mubr.f32.mxu0 0.0
    %v1138 = vand.u32 %v123, 4294901760
    %1139 = vmatmul.mubr.f32.gmra.mxu0 %v1138
    %v1140 = vpop.f32.mrf.mxu0
    %v1141 = vadd.f32 %v473, %v1140
    %v1142 = vpop.f32.mrf.mxu0
    %1143 = vmatprep.mubr.f32.mxu0 0.0
    %v1144 = vand.u32 %v126, 4294901760
    %1145 = vmatmul.mubr.f32.gmra.mxu0 %v1144
    %v1146 = vpop.f32.mrf.mxu0
    %v1147 = vadd.f32 %v483, %v1146
    %v1148 = vpop.f32.mrf.mxu0
    %1149 = vmatprep.mubr.f32.mxu0 0.0
    %v1150 = vand.u32 %v129, 4294901760
    %1151 = vmatmul.mubr.f32.gmra.mxu0 %v1150
    %v1152 = vpop.f32.mrf.mxu0
    %v1153 = vadd.f32 %v493, %v1152
    %v1154 = vpop.f32.mrf.mxu0
    %1155 = vmatprep.mubr.f32.mxu0 0.0
    %v1156 = vand.u32 %v132, 4294901760
    %1157 = vmatmul.mubr.f32.gmra.mxu0 %v1156
    %v1158 = vpop.f32.mrf.mxu0
    %v1159 = vadd.f32 %v503, %v1158
    %v1160 = vpop.f32.mrf.mxu0
    %1161 = vmatprep.mubr.f32.mxu0 0.0
    %v1162 = vand.u32 %v135, 4294901760
    %1163 = vmatmul.mubr.f32.gmra.mxu0 %v1162
    %v1164 = vpop.f32.mrf.mxu0
    %v1165 = vadd.f32 %v513, %v1164
    %v1166 = vpop.f32.mrf.mxu0
    %1167 = vmatprep.mubr.f32.mxu0 0.0
    %v1168 = vand.u32 %v138, 4294901760
    %1169 = vmatmul.mubr.f32.gmra.mxu0 %v1168
    %v1170 = vpop.f32.mrf.mxu0
    %v1171 = vadd.f32 %v523, %v1170
    %v1172 = vpop.f32.mrf.mxu0
    %1173 = vmatprep.mubr.f32.mxu0 0.0
    %v1174 = vand.u32 %v141, 4294901760
    %1175 = vmatmul.mubr.f32.gmra.mxu0 %v1174
    %v1176 = vpop.f32.mrf.mxu0
    %v1177 = vadd.f32 %v533, %v1176
    %v1178 = vpop.f32.mrf.mxu0
    %1179 = vmatprep.mubr.f32.mxu0 0.0
    %v1180 = vand.u32 %v144, 4294901760
    %1181 = vmatmul.mubr.f32.gmra.mxu0 %v1180
    %v1182 = vpop.f32.mrf.mxu0
    %v1183 = vadd.f32 %v543, %v1182
    %v1184 = vpop.f32.mrf.mxu0
    %1185 = vmatprep.mubr.f32.mxu0 0.0
    %v1186 = vand.u32 %v147, 4294901760
    %1187 = vmatmul.mubr.f32.gmra.mxu0 %v1186
    %v1188 = vpop.f32.mrf.mxu0
    %v1189 = vadd.f32 %v553, %v1188
    %v1190 = vpop.f32.mrf.mxu0
    %1191 = vmatprep.mubr.f32.mxu0 0.0
    %v1192 = vand.u32 %v150, 4294901760
    %1193 = vmatmul.mubr.f32.gmra.mxu0 %v1192
    %v1194 = vpop.f32.mrf.mxu0
    %v1195 = vadd.f32 %v563, %v1194
    %v1196 = vpop.f32.mrf.mxu0
    %1197 = vmatprep.mubr.f32.mxu0 0.0
    %v1198 = vand.u32 %v153, 4294901760
    %1199 = vmatmul.mubr.f32.gmra.mxu0 %v1198
    %v1200 = vpop.f32.mrf.mxu0
    %v1201 = vadd.f32 %v573, %v1200
    %v1202 = vpop.f32.mrf.mxu0
    %1203 = vmatprep.mubr.f32.mxu0 0.0
    %v1204 = vand.u32 %v156, 4294901760
    %1205 = vmatmul.mubr.f32.gmra.mxu0 %v1204
    %v1206 = vpop.f32.mrf.mxu0
    %v1207 = vadd.f32 %v583, %v1206
    %v1208 = vpop.f32.mrf.mxu0
    %1209 = vmatprep.mubr.f32.mxu0 0.0
    %v1210 = vand.u32 %v159, 4294901760
    %1211 = vmatmul.mubr.f32.gmra.mxu0 %v1210
    %v1212 = vpop.f32.mrf.mxu0
    %v1213 = vadd.f32 %v593, %v1212
    %v1214 = vpop.f32.mrf.mxu0
    %1215 = vmatprep.mubr.f32.mxu0 0.0
    %v1216 = vand.u32 %v162, 4294901760
    %1217 = vmatmul.mubr.f32.gmra.mxu0 %v1216
    %v1218 = vpop.f32.mrf.mxu0
    %v1219 = vadd.f32 %v603, %v1218
    %v1220 = vpop.f32.mrf.mxu0
    %1221 = vmatprep.mubr.f32.mxu0 0.0
    %v1222 = vand.u32 %v165, 4294901760
    %1223 = vmatmul.mubr.f32.gmra.mxu0 %v1222
    %v1224 = vpop.f32.mrf.mxu0
    %v1225 = vadd.f32 %v613, %v1224
    %v1226 = vpop.f32.mrf.mxu0
    %1227 = vmatprep.mubr.f32.mxu0 0.0
    %v1228 = vand.u32 %v168, 4294901760
    %1229 = vmatmul.mubr.f32.gmra.mxu0 %v1228
    %v1230 = vpop.f32.mrf.mxu0
    %v1231 = vadd.f32 %v623, %v1230
    %v1232 = vpop.f32.mrf.mxu0
    %1233 = vmatprep.mubr.f32.mxu0 0.0
    %v1234 = vand.u32 %v171, 4294901760
    %1235 = vmatmul.mubr.f32.gmra.mxu0 %v1234
    %v1236 = vpop.f32.mrf.mxu0
    %v1237 = vadd.f32 %v633, %v1236
    %v1238 = vpop.f32.mrf.mxu0
    %1239 = vmatprep.mubr.f32.mxu0 0.0
    %v1240 = vand.u32 %v174, 4294901760
    %1241 = vmatmul.mubr.f32.gmra.mxu0 %v1240
    %v1242 = vpop.f32.mrf.mxu0
    %v1243 = vadd.f32 %v643, %v1242
    %v1244 = vpop.f32.mrf.mxu0
    %1245 = vmatprep.mubr.f32.mxu0 0.0
    %v1246 = vand.u32 %v177, 4294901760
    %1247 = vmatmul.mubr.f32.gmra.mxu0 %v1246
    %v1248 = vpop.f32.mrf.mxu0
    %v1249 = vadd.f32 %v653, %v1248
    %v1250 = vpop.f32.mrf.mxu0
    %1251 = vmatprep.mubr.f32.mxu0 0.0
    %v1252 = vand.u32 %v180, 4294901760
    %1253 = vmatmul.mubr.f32.gmra.mxu0 %v1252
    %v1254 = vpop.f32.mrf.mxu0
    %v1255 = vadd.f32 %v663, %v1254
    %v1256 = vpop.f32.mrf.mxu0
    %1257 = vmatprep.mubr.f32.mxu0 0.0
    %v1258 = vand.u32 %v183, 4294901760
    %1259 = vmatmul.mubr.f32.gmra.mxu0 %v1258
    %v1260 = vpop.f32.mrf.mxu0
    %v1261 = vadd.f32 %v673, %v1260
    %v1262 = vpop.f32.mrf.mxu0
    %1263 = vmatprep.mubr.f32.mxu0 0.0
    %v1264 = vand.u32 %v186, 4294901760
    %1265 = vmatmul.mubr.f32.gmra.mxu0 %v1264
    %v1266 = vpop.f32.mrf.mxu0
    %v1267 = vadd.f32 %v683, %v1266
    %v1268 = vpop.f32.mrf.mxu0
    %1269 = vmatprep.mubr.f32.mxu0 0.0
    %v1270 = vand.u32 %v189, 4294901760
    %1271 = vmatmul.mubr.f32.gmra.mxu0 %v1270
    %v1272 = vpop.f32.mrf.mxu0
    %v1273 = vadd.f32 %v693, %v1272
    %v1274 = vpop.f32.mrf.mxu0
    %1275 = vmatprep.mubr.f32.mxu0 0.0
    %v1276 = vand.u32 %v192, 4294901760
    %1277 = vmatmul.mubr.f32.gmra.mxu0 %v1276
    %v1278 = vpop.f32.mrf.mxu0
    %v1279 = vadd.f32 %v703, %v1278
    %v1280 = vpop.f32.mrf.mxu0
    %1281 = vmatprep.mubr.f32.mxu0 0.0
    %v1282 = vand.u32 %v195, 4294901760
    %1283 = vmatmul.mubr.f32.gmra.mxu0 %v1282
    %v1284 = vpop.f32.mrf.mxu0
    %v1285 = vadd.f32 %v713, %v1284
    %v1286 = vpop.f32.mrf.mxu0
    %1287 = vmatprep.mubr.f32.mxu0 0.0
    %v1288 = vand.u32 %v198, 4294901760
    %1289 = vmatmul.mubr.f32.gmra.mxu0 %v1288
    %v1290 = vpop.f32.mrf.mxu0
    %v1291 = vadd.f32 %v723, %v1290
    %v1292 = vpop.f32.mrf.mxu0
    %1293 = vmatprep.mubr.f32.mxu0 0.0
    %v1294 = vand.u32 %v201, 4294901760
    %1295 = vmatmul.mubr.f32.gmra.mxu0 %v1294
    %v1296 = vpop.f32.mrf.mxu0
    %v1297 = vadd.f32 %v733, %v1296
    %v1298 = vpop.f32.mrf.mxu0
    %1299 = vmatprep.mubr.f32.mxu0 0.0
    %v1300 = vand.u32 %v204, 4294901760
    %1301 = vmatmul.mubr.f32.gmra.mxu0 %v1300
    %v1302 = vpop.f32.mrf.mxu0
    %v1303 = vadd.f32 %v743, %v1302
    %v1304 = vpop.f32.mrf.mxu0
    %1305 = vmatprep.mubr.f32.mxu0 0.0
    %v1306 = vand.u32 %v207, 4294901760
    %1307 = vmatmul.mubr.f32.gmra.mxu0 %v1306
    %v1308 = vpop.f32.mrf.mxu0
    %v1309 = vadd.f32 %v753, %v1308
    %v1310 = vpop.f32.mrf.mxu0
    %1311 = vmatprep.mubr.f32.mxu0 0.0
    %v1312 = vand.u32 %v210, 4294901760
    %1313 = vmatmul.mubr.f32.gmra.mxu0 %v1312
    %v1314 = vpop.f32.mrf.mxu0
    %v1315 = vadd.f32 %v763, %v1314
    %v1316 = vpop.f32.mrf.mxu0
    %1317 = vmatprep.mubr.f32.mxu0 0.0
    %v1318 = vand.u32 %v213, 4294901760
    %1319 = vmatmul.mubr.f32.gmra.mxu0 %v1318
    %v1320 = vpop.f32.mrf.mxu0
    %v1321 = vadd.f32 %v773, %v1320
    %v1322 = vpop.f32.mrf.mxu0
    %1323 = vmatprep.mubr.f32.mxu0 0.0
    %v1324 = vand.u32 %v216, 4294901760
    %1325 = vmatmul.mubr.f32.gmra.mxu0 %v1324
    %v1326 = vpop.f32.mrf.mxu0
    %v1327 = vadd.f32 %v783, %v1326
    %v1328 = vpop.f32.mrf.mxu0
    %1329 = vmatprep.mubr.f32.mxu0 0.0
    %v1330 = vand.u32 %v219, 4294901760
    %1331 = vmatmul.mubr.f32.gmra.mxu0 %v1330
    %v1332 = vpop.f32.mrf.mxu0
    %v1333 = vadd.f32 %v793, %v1332
    %v1334 = vpop.f32.mrf.mxu0
    %1335 = vmatprep.mubr.f32.mxu0 0.0
    %v1336 = vand.u32 %v222, 4294901760
    %1337 = vmatmul.mubr.f32.gmra.mxu0 %v1336
    %v1338 = vpop.f32.mrf.mxu0
    %v1339 = vadd.f32 %v803, %v1338
    %v1340 = vpop.f32.mrf.mxu0
    %1341 = vmatprep.mubr.f32.mxu0 0.0
    %v1342 = vand.u32 %v225, 4294901760
    %1343 = vmatmul.mubr.f32.gmra.mxu0 %v1342
    %v1344 = vpop.f32.mrf.mxu0
    %v1345 = vadd.f32 %v813, %v1344
    %v1346 = vpop.f32.mrf.mxu0
    %1347 = vmatprep.mubr.f32.mxu0 0.0
    %v1348 = vand.u32 %v228, 4294901760
    %1349 = vmatmul.mubr.f32.gmra.mxu0 %v1348
    %v1350 = vpop.f32.mrf.mxu0
    %v1351 = vadd.f32 %v823, %v1350
    %v1352 = vpop.f32.mrf.mxu0
    %1353 = vmatprep.mubr.f32.mxu0 0.0
    %v1354 = vand.u32 %v231, 4294901760
    %1355 = vmatmul.mubr.f32.gmra.mxu0 %v1354
    %v1356 = vpop.f32.mrf.mxu0
    %v1357 = vadd.f32 %v833, %v1356
    %v1358 = vpop.f32.mrf.mxu0
    %1359 = vmatprep.mubr.f32.mxu0 0.0
    %v1360 = vand.u32 %v234, 4294901760
    %1361 = vmatmul.mubr.f32.gmra.mxu0 %v1360
    %v1362 = vpop.f32.mrf.mxu0
    %v1363 = vadd.f32 %v843, %v1362
    %v1364 = vpop.f32.mrf.mxu0
    %1365 = vmatprep.mubr.f32.mxu0 0.0
    %v1366 = vand.u32 %v237, 4294901760
    %1367 = vmatmul.mubr.f32.gmra.mxu0 %v1366
    %v1368 = vpop.f32.mrf.mxu0
    %v1369 = vadd.f32 %v853, %v1368
    %v1370 = vpop.f32.mrf.mxu0
    %1371 = vmatprep.mubr.f32.mxu0 0.0
    %v1372 = vand.u32 %v240, 4294901760
    %1373 = vmatmul.mubr.f32.gmra.mxu0 %v1372
    %v1374 = vpop.f32.mrf.mxu0
    %v1375 = vadd.f32 %v863, %v1374
    %v1376 = vpop.f32.mrf.mxu0
    %1377 = vmatprep.mubr.f32.mxu0 0.0
    %v1378 = vand.u32 %v243, 4294901760
    %1379 = vmatmul.mubr.f32.gmra.mxu0 %v1378
    %v1380 = vpop.f32.mrf.mxu0
    %v1381 = vadd.f32 %v873, %v1380
    %v1382 = vpop.f32.mrf.mxu0
    %1383 = vmatprep.mubr.f32.mxu0 0.0
    %v1384 = vand.u32 %v246, 4294901760
    %1385 = vmatmul.mubr.f32.gmra.mxu0 %v1384
    %v1386 = vpop.f32.mrf.mxu0
    %v1387 = vadd.f32 %v883, %v1386
    %v1388 = vpop.f32.mrf.mxu0
    %1389 = vmatprep.mubr.f32.mxu0 0.0
    %v1390 = vand.u32 %v249, 4294901760
    %1391 = vmatmul.mubr.f32.gmra.mxu0 %v1390
    %v1392 = vpop.f32.mrf.mxu0
    %v1393 = vadd.f32 %v893, %v1392
    %v1394 = vpop.f32.mrf.mxu0
    %1395 = vmatprep.mubr.f32.mxu0 0.0
    %v1396 = vand.u32 %v252, 4294901760
    %1397 = vmatmul.mubr.f32.gmra.mxu0 %v1396
    %v1398 = vpop.f32.mrf.mxu0
    %v1399 = vadd.f32 %v903, %v1398
    %v1400 = vpop.f32.mrf.mxu0
    %1401 = vmatprep.mubr.f32.mxu0 0.0
    %v1402 = vand.u32 %v255, 4294901760
    %1403 = vmatmul.mubr.f32.gmra.mxu0 %v1402
    %v1404 = vpop.f32.mrf.mxu0
    %v1405 = vadd.f32 %v913, %v1404
    %v1406 = vpop.f32.mrf.mxu0
    %1407 = vmatprep.mubr.f32.mxu0 0.0
    %v1408 = vand.u32 %v258, 4294901760
    %1409 = vmatmul.mubr.f32.gmra.mxu0 %v1408
    %v1410 = vpop.f32.mrf.mxu0
    %v1411 = vadd.f32 %v923, %v1410
    %v1412 = vpop.f32.mrf.mxu0
    %1413 = vmatprep.mubr.f32.mxu0 0.0
    %v1414 = vand.u32 %v261, 4294901760
    %1415 = vmatmul.mubr.f32.gmra.mxu0 %v1414
    %v1416 = vpop.f32.mrf.mxu0
    %v1417 = vadd.f32 %v933, %v1416
    %v1418 = vpop.f32.mrf.mxu0
    %1419 = vmatprep.mubr.f32.mxu0 0.0
    %v1420 = vand.u32 %v264, 4294901760
    %1421 = vmatmul.mubr.f32.gmra.mxu0 %v1420
    %v1422 = vpop.f32.mrf.mxu0
    %v1423 = vadd.f32 %v943, %v1422
    %v1424 = vpop.f32.mrf.mxu0
    %1425 = vmatprep.mubr.f32.mxu0 0.0
    %v1426 = vand.u32 %v267, 4294901760
    %1427 = vmatmul.mubr.f32.gmra.mxu0 %v1426
    %v1428 = vpop.f32.mrf.mxu0
    %v1429 = vadd.f32 %v953, %v1428
    %v1430 = vpop.f32.mrf.mxu0
    %1431 = vmatprep.mubr.f32.mxu0 0.0
    %v1432 = vand.u32 %v270, 4294901760
    %1433 = vmatmul.mubr.f32.gmra.mxu0 %v1432
    %v1434 = vpop.f32.mrf.mxu0
    %v1435 = vadd.f32 %v963, %v1434
    %v1436 = vpop.f32.mrf.mxu0
    %1437 = vmatprep.mubr.f32.mxu0 0.0
    %v1438 = vand.u32 %v273, 4294901760
    %1439 = vmatmul.mubr.f32.gmra.mxu0 %v1438
    %v1440 = vpop.f32.mrf.mxu0
    %v1441 = vadd.f32 %v973, %v1440
    %v1442 = vpop.f32.mrf.mxu0
    %1443 = vmatprep.mubr.f32.mxu0 0.0
    %v1444 = vand.u32 %v276, 4294901760
    %1445 = vmatmul.mubr.f32.gmra.mxu0 %v1444
    %v1446 = vpop.f32.mrf.mxu0
    %v1447 = vadd.f32 %v983, %v1446
    %v1448 = vpop.f32.mrf.mxu0
    %1449 = vdwg.mxu0
    %1450 = vmatprep.subr.mxu0 0.0
    %1451 = vmatpush1.msra.mxu0 0.0
    %1452 = vmatprep.subr.mxu0 0.0
    %1453 = vmatpush1.msra.mxu0 0.0
    %1454 = vmatprep.subr.mxu0 0.0
    %1455 = vmatpush1.msra.mxu0 0.0
    %1456 = vmatprep.subr.mxu0 0.0
    %1457 = vmatpush1.msra.mxu0 0.0
    %1458 = vmatprep.subr.mxu0 0.0
    %1459 = vmatpush1.msra.mxu0 0.0
    %1460 = vmatprep.subr.mxu0 0.0
    %1461 = vmatpush1.msra.mxu0 0.0
    %1462 = vmatprep.subr.mxu0 0.0
    %1463 = vmatpush1.msra.mxu0 0.0
    %1464 = vmatprep.subr.mxu0 0.0
    %1465 = vmatpush1.msra.mxu0 0.0
    %1466 = vmatprep.subr.mxu0 0.0
    %1467 = vmatpush1.msra.mxu0 0.0
    %1468 = vmatprep.subr.mxu0 0.0
    %1469 = vmatpush1.msra.mxu0 0.0
    %1470 = vmatprep.subr.mxu0 0.0
    %1471 = vmatpush1.msra.mxu0 0.0
    %1472 = vmatprep.subr.mxu0 0.0
    %1473 = vmatpush1.msra.mxu0 0.0
    %1474 = vmatprep.subr.mxu0 0.0
    %1475 = vmatpush1.msra.mxu0 0.0
    %1476 = vmatprep.subr.mxu0 0.0
    %v1477 = vand.u32 %v84, 4294901760
    %v1478 = vsub.f32 %v84, %v1477
    %1479 = vmatpush1.msra.mxu0 %v1478
    %1480 = vmatprep.subr.mxu0 0.0
    %v1481 = vand.u32 %v83, 4294901760
    %v1482 = vsub.f32 %v83, %v1481
    %1483 = vmatpush1.msra.mxu0 %v1482
    %1484 = vmatprep.subr.mxu0 0.0
    %v1485 = vand.u32 %v82, 4294901760
    %v1486 = vsub.f32 %v82, %v1485
    %1487 = vmatpush1.msra.mxu0 %v1486
    %1488 = vmatprep.subr.mxu0 0.0
    %1489 = vmatpush2.msra.mxu0 0.0
    %1490 = vmatprep.subr.mxu0 0.0
    %1491 = vmatpush2.msra.mxu0 0.0
    %1492 = vmatprep.subr.mxu0 0.0
    %1493 = vmatpush2.msra.mxu0 0.0
    %1494 = vmatprep.subr.mxu0 0.0
    %1495 = vmatpush2.msra.mxu0 0.0
    %1496 = vmatprep.subr.mxu0 0.0
    %1497 = vmatpush2.msra.mxu0 0.0
    %1498 = vmatprep.subr.mxu0 0.0
    %1499 = vmatpush2.msra.mxu0 0.0
    %1500 = vmatprep.subr.mxu0 0.0
    %1501 = vmatpush2.msra.mxu0 0.0
    %1502 = vmatprep.subr.mxu0 0.0
    %1503 = vmatpush2.msra.mxu0 0.0
    %1504 = vmatprep.subr.mxu0 0.0
    %1505 = vmatpush2.msra.mxu0 0.0
    %1506 = vmatprep.subr.mxu0 0.0
    %1507 = vmatpush2.msra.mxu0 0.0
    %1508 = vmatprep.subr.mxu0 0.0
    %1509 = vmatpush2.msra.mxu0 0.0
    %1510 = vmatprep.subr.mxu0 0.0
    %1511 = vmatpush2.msra.mxu0 0.0
    %1512 = vmatprep.subr.mxu0 0.0
    %1513 = vmatpush2.msra.mxu0 0.0
    %1514 = vmatprep.subr.mxu0 0.0
    %1515 = vmatpush2.msra.mxu0 0.0
    %1516 = vmatprep.subr.mxu0 0.0
    %1517 = vmatpush2.msra.mxu0 0.0
    %1518 = vmatprep.subr.mxu0 0.0
    %1519 = vmatpush2.msra.mxu0 0.0
    %1520 = vmatprep.mubr.f32.mxu0 0.0
    %v1521 = vand.u32 %v87, 4294901760
    %v1522 = vsub.f32 %v87, %v1521
    %1523 = vmatmul.mubr.f32.gmra.mxu0 %v1522
    %v1524 = vpop.f32.mrf.mxu0
    %v1525 = vadd.f32 %v1069, %v1524
    %v1526 = vpop.f32.mrf.mxu0
    %1527 = vmatprep.mubr.f32.mxu0 0.0
    %v1528 = vand.u32 %v90, 4294901760
    %v1529 = vsub.f32 %v90, %v1528
    %1530 = vmatmul.mubr.f32.gmra.mxu0 %v1529
    %v1531 = vpop.f32.mrf.mxu0
    %v1532 = vadd.f32 %v1075, %v1531
    %v1533 = vpop.f32.mrf.mxu0
    %1534 = vmatprep.mubr.f32.mxu0 0.0
    %v1535 = vand.u32 %v93, 4294901760
    %v1536 = vsub.f32 %v93, %v1535
    %1537 = vmatmul.mubr.f32.gmra.mxu0 %v1536
    %v1538 = vpop.f32.mrf.mxu0
    %v1539 = vadd.f32 %v1081, %v1538
    %v1540 = vpop.f32.mrf.mxu0
    %1541 = vmatprep.mubr.f32.mxu0 0.0
    %v1542 = vand.u32 %v96, 4294901760
    %v1543 = vsub.f32 %v96, %v1542
    %1544 = vmatmul.mubr.f32.gmra.mxu0 %v1543
    %v1545 = vpop.f32.mrf.mxu0
    %v1546 = vadd.f32 %v1087, %v1545
    %v1547 = vpop.f32.mrf.mxu0
    %1548 = vmatprep.mubr.f32.mxu0 0.0
    %v1549 = vand.u32 %v99, 4294901760
    %v1550 = vsub.f32 %v99, %v1549
    %1551 = vmatmul.mubr.f32.gmra.mxu0 %v1550
    %v1552 = vpop.f32.mrf.mxu0
    %v1553 = vadd.f32 %v1093, %v1552
    %v1554 = vpop.f32.mrf.mxu0
    %1555 = vmatprep.mubr.f32.mxu0 0.0
    %v1556 = vand.u32 %v102, 4294901760
    %v1557 = vsub.f32 %v102, %v1556
    %1558 = vmatmul.mubr.f32.gmra.mxu0 %v1557
    %v1559 = vpop.f32.mrf.mxu0
    %v1560 = vadd.f32 %v1099, %v1559
    %v1561 = vpop.f32.mrf.mxu0
    %1562 = vmatprep.mubr.f32.mxu0 0.0
    %v1563 = vand.u32 %v105, 4294901760
    %v1564 = vsub.f32 %v105, %v1563
    %1565 = vmatmul.mubr.f32.gmra.mxu0 %v1564
    %v1566 = vpop.f32.mrf.mxu0
    %v1567 = vadd.f32 %v1105, %v1566
    %v1568 = vpop.f32.mrf.mxu0
    %1569 = vmatprep.mubr.f32.mxu0 0.0
    %v1570 = vand.u32 %v108, 4294901760
    %v1571 = vsub.f32 %v108, %v1570
    %1572 = vmatmul.mubr.f32.gmra.mxu0 %v1571
    %v1573 = vpop.f32.mrf.mxu0
    %v1574 = vadd.f32 %v1111, %v1573
    %v1575 = vpop.f32.mrf.mxu0
    %1576 = vmatprep.mubr.f32.mxu0 0.0
    %v1577 = vand.u32 %v111, 4294901760
    %v1578 = vsub.f32 %v111, %v1577
    %1579 = vmatmul.mubr.f32.gmra.mxu0 %v1578
    %v1580 = vpop.f32.mrf.mxu0
    %v1581 = vadd.f32 %v1117, %v1580
    %v1582 = vpop.f32.mrf.mxu0
    %1583 = vmatprep.mubr.f32.mxu0 0.0
    %v1584 = vand.u32 %v114, 4294901760
    %v1585 = vsub.f32 %v114, %v1584
    %1586 = vmatmul.mubr.f32.gmra.mxu0 %v1585
    %v1587 = vpop.f32.mrf.mxu0
    %v1588 = vadd.f32 %v1123, %v1587
    %v1589 = vpop.f32.mrf.mxu0
    %1590 = vmatprep.mubr.f32.mxu0 0.0
    %v1591 = vand.u32 %v117, 4294901760
    %v1592 = vsub.f32 %v117, %v1591
    %1593 = vmatmul.mubr.f32.gmra.mxu0 %v1592
    %v1594 = vpop.f32.mrf.mxu0
    %v1595 = vadd.f32 %v1129, %v1594
    %v1596 = vpop.f32.mrf.mxu0
    %1597 = vmatprep.mubr.f32.mxu0 0.0
    %v1598 = vand.u32 %v120, 4294901760
    %v1599 = vsub.f32 %v120, %v1598
    %1600 = vmatmul.mubr.f32.gmra.mxu0 %v1599
    %v1601 = vpop.f32.mrf.mxu0
    %v1602 = vadd.f32 %v1135, %v1601
    %v1603 = vpop.f32.mrf.mxu0
    %1604 = vmatprep.mubr.f32.mxu0 0.0
    %v1605 = vand.u32 %v123, 4294901760
    %v1606 = vsub.f32 %v123, %v1605
    %1607 = vmatmul.mubr.f32.gmra.mxu0 %v1606
    %v1608 = vpop.f32.mrf.mxu0
    %v1609 = vadd.f32 %v1141, %v1608
    %v1610 = vpop.f32.mrf.mxu0
    %1611 = vmatprep.mubr.f32.mxu0 0.0
    %v1612 = vand.u32 %v126, 4294901760
    %v1613 = vsub.f32 %v126, %v1612
    %1614 = vmatmul.mubr.f32.gmra.mxu0 %v1613
    %v1615 = vpop.f32.mrf.mxu0
    %v1616 = vadd.f32 %v1147, %v1615
    %v1617 = vpop.f32.mrf.mxu0
    %1618 = vmatprep.mubr.f32.mxu0 0.0
    %v1619 = vand.u32 %v129, 4294901760
    %v1620 = vsub.f32 %v129, %v1619
    %1621 = vmatmul.mubr.f32.gmra.mxu0 %v1620
    %v1622 = vpop.f32.mrf.mxu0
    %v1623 = vadd.f32 %v1153, %v1622
    %v1624 = vpop.f32.mrf.mxu0
    %1625 = vmatprep.mubr.f32.mxu0 0.0
    %v1626 = vand.u32 %v132, 4294901760
    %v1627 = vsub.f32 %v132, %v1626
    %1628 = vmatmul.mubr.f32.gmra.mxu0 %v1627
    %v1629 = vpop.f32.mrf.mxu0
    %v1630 = vadd.f32 %v1159, %v1629
    %v1631 = vpop.f32.mrf.mxu0
    %1632 = vmatprep.mubr.f32.mxu0 0.0
    %v1633 = vand.u32 %v135, 4294901760
    %v1634 = vsub.f32 %v135, %v1633
    %1635 = vmatmul.mubr.f32.gmra.mxu0 %v1634
    %v1636 = vpop.f32.mrf.mxu0
    %v1637 = vadd.f32 %v1165, %v1636
    %v1638 = vpop.f32.mrf.mxu0
    %1639 = vmatprep.mubr.f32.mxu0 0.0
    %v1640 = vand.u32 %v138, 4294901760
    %v1641 = vsub.f32 %v138, %v1640
    %1642 = vmatmul.mubr.f32.gmra.mxu0 %v1641
    %v1643 = vpop.f32.mrf.mxu0
    %v1644 = vadd.f32 %v1171, %v1643
    %v1645 = vpop.f32.mrf.mxu0
    %1646 = vmatprep.mubr.f32.mxu0 0.0
    %v1647 = vand.u32 %v141, 4294901760
    %v1648 = vsub.f32 %v141, %v1647
    %1649 = vmatmul.mubr.f32.gmra.mxu0 %v1648
    %v1650 = vpop.f32.mrf.mxu0
    %v1651 = vadd.f32 %v1177, %v1650
    %v1652 = vpop.f32.mrf.mxu0
    %1653 = vmatprep.mubr.f32.mxu0 0.0
    %v1654 = vand.u32 %v144, 4294901760
    %v1655 = vsub.f32 %v144, %v1654
    %1656 = vmatmul.mubr.f32.gmra.mxu0 %v1655
    %v1657 = vpop.f32.mrf.mxu0
    %v1658 = vadd.f32 %v1183, %v1657
    %v1659 = vpop.f32.mrf.mxu0
    %1660 = vmatprep.mubr.f32.mxu0 0.0
    %v1661 = vand.u32 %v147, 4294901760
    %v1662 = vsub.f32 %v147, %v1661
    %1663 = vmatmul.mubr.f32.gmra.mxu0 %v1662
    %v1664 = vpop.f32.mrf.mxu0
    %v1665 = vadd.f32 %v1189, %v1664
    %v1666 = vpop.f32.mrf.mxu0
    %1667 = vmatprep.mubr.f32.mxu0 0.0
    %v1668 = vand.u32 %v150, 4294901760
    %v1669 = vsub.f32 %v150, %v1668
    %1670 = vmatmul.mubr.f32.gmra.mxu0 %v1669
    %v1671 = vpop.f32.mrf.mxu0
    %v1672 = vadd.f32 %v1195, %v1671
    %v1673 = vpop.f32.mrf.mxu0
    %1674 = vmatprep.mubr.f32.mxu0 0.0
    %v1675 = vand.u32 %v153, 4294901760
    %v1676 = vsub.f32 %v153, %v1675
    %1677 = vmatmul.mubr.f32.gmra.mxu0 %v1676
    %v1678 = vpop.f32.mrf.mxu0
    %v1679 = vadd.f32 %v1201, %v1678
    %v1680 = vpop.f32.mrf.mxu0
    %1681 = vmatprep.mubr.f32.mxu0 0.0
    %v1682 = vand.u32 %v156, 4294901760
    %v1683 = vsub.f32 %v156, %v1682
    %1684 = vmatmul.mubr.f32.gmra.mxu0 %v1683
    %v1685 = vpop.f32.mrf.mxu0
    %v1686 = vadd.f32 %v1207, %v1685
    %v1687 = vpop.f32.mrf.mxu0
    %1688 = vmatprep.mubr.f32.mxu0 0.0
    %v1689 = vand.u32 %v159, 4294901760
    %v1690 = vsub.f32 %v159, %v1689
    %1691 = vmatmul.mubr.f32.gmra.mxu0 %v1690
    %v1692 = vpop.f32.mrf.mxu0
    %v1693 = vadd.f32 %v1213, %v1692
    %v1694 = vpop.f32.mrf.mxu0
    %1695 = vmatprep.mubr.f32.mxu0 0.0
    %v1696 = vand.u32 %v162, 4294901760
    %v1697 = vsub.f32 %v162, %v1696
    %1698 = vmatmul.mubr.f32.gmra.mxu0 %v1697
    %v1699 = vpop.f32.mrf.mxu0
    %v1700 = vadd.f32 %v1219, %v1699
    %v1701 = vpop.f32.mrf.mxu0
    %1702 = vmatprep.mubr.f32.mxu0 0.0
    %v1703 = vand.u32 %v165, 4294901760
    %v1704 = vsub.f32 %v165, %v1703
    %1705 = vmatmul.mubr.f32.gmra.mxu0 %v1704
    %v1706 = vpop.f32.mrf.mxu0
    %v1707 = vadd.f32 %v1225, %v1706
    %v1708 = vpop.f32.mrf.mxu0
    %1709 = vmatprep.mubr.f32.mxu0 0.0
    %v1710 = vand.u32 %v168, 4294901760
    %v1711 = vsub.f32 %v168, %v1710
    %1712 = vmatmul.mubr.f32.gmra.mxu0 %v1711
    %v1713 = vpop.f32.mrf.mxu0
    %v1714 = vadd.f32 %v1231, %v1713
    %v1715 = vpop.f32.mrf.mxu0
    %1716 = vmatprep.mubr.f32.mxu0 0.0
    %v1717 = vand.u32 %v171, 4294901760
    %v1718 = vsub.f32 %v171, %v1717
    %1719 = vmatmul.mubr.f32.gmra.mxu0 %v1718
    %v1720 = vpop.f32.mrf.mxu0
    %v1721 = vadd.f32 %v1237, %v1720
    %v1722 = vpop.f32.mrf.mxu0
    %1723 = vmatprep.mubr.f32.mxu0 0.0
    %v1724 = vand.u32 %v174, 4294901760
    %v1725 = vsub.f32 %v174, %v1724
    %1726 = vmatmul.mubr.f32.gmra.mxu0 %v1725
    %v1727 = vpop.f32.mrf.mxu0
    %v1728 = vadd.f32 %v1243, %v1727
    %v1729 = vpop.f32.mrf.mxu0
    %1730 = vmatprep.mubr.f32.mxu0 0.0
    %v1731 = vand.u32 %v177, 4294901760
    %v1732 = vsub.f32 %v177, %v1731
    %1733 = vmatmul.mubr.f32.gmra.mxu0 %v1732
    %v1734 = vpop.f32.mrf.mxu0
    %v1735 = vadd.f32 %v1249, %v1734
    %v1736 = vpop.f32.mrf.mxu0
    %1737 = vmatprep.mubr.f32.mxu0 0.0
    %v1738 = vand.u32 %v180, 4294901760
    %v1739 = vsub.f32 %v180, %v1738
    %1740 = vmatmul.mubr.f32.gmra.mxu0 %v1739
    %v1741 = vpop.f32.mrf.mxu0
    %v1742 = vadd.f32 %v1255, %v1741
    %v1743 = vpop.f32.mrf.mxu0
    %1744 = vmatprep.mubr.f32.mxu0 0.0
    %v1745 = vand.u32 %v183, 4294901760
    %v1746 = vsub.f32 %v183, %v1745
    %1747 = vmatmul.mubr.f32.gmra.mxu0 %v1746
    %v1748 = vpop.f32.mrf.mxu0
    %v1749 = vadd.f32 %v1261, %v1748
    %v1750 = vpop.f32.mrf.mxu0
    %1751 = vmatprep.mubr.f32.mxu0 0.0
    %v1752 = vand.u32 %v186, 4294901760
    %v1753 = vsub.f32 %v186, %v1752
    %1754 = vmatmul.mubr.f32.gmra.mxu0 %v1753
    %v1755 = vpop.f32.mrf.mxu0
    %v1756 = vadd.f32 %v1267, %v1755
    %v1757 = vpop.f32.mrf.mxu0
    %1758 = vmatprep.mubr.f32.mxu0 0.0
    %v1759 = vand.u32 %v189, 4294901760
    %v1760 = vsub.f32 %v189, %v1759
    %1761 = vmatmul.mubr.f32.gmra.mxu0 %v1760
    %v1762 = vpop.f32.mrf.mxu0
    %v1763 = vadd.f32 %v1273, %v1762
    %v1764 = vpop.f32.mrf.mxu0
    %1765 = vmatprep.mubr.f32.mxu0 0.0
    %v1766 = vand.u32 %v192, 4294901760
    %v1767 = vsub.f32 %v192, %v1766
    %1768 = vmatmul.mubr.f32.gmra.mxu0 %v1767
    %v1769 = vpop.f32.mrf.mxu0
    %v1770 = vadd.f32 %v1279, %v1769
    %v1771 = vpop.f32.mrf.mxu0
    %1772 = vmatprep.mubr.f32.mxu0 0.0
    %v1773 = vand.u32 %v195, 4294901760
    %v1774 = vsub.f32 %v195, %v1773
    %1775 = vmatmul.mubr.f32.gmra.mxu0 %v1774
    %v1776 = vpop.f32.mrf.mxu0
    %v1777 = vadd.f32 %v1285, %v1776
    %v1778 = vpop.f32.mrf.mxu0
    %1779 = vmatprep.mubr.f32.mxu0 0.0
    %v1780 = vand.u32 %v198, 4294901760
    %v1781 = vsub.f32 %v198, %v1780
    %1782 = vmatmul.mubr.f32.gmra.mxu0 %v1781
    %v1783 = vpop.f32.mrf.mxu0
    %v1784 = vadd.f32 %v1291, %v1783
    %v1785 = vpop.f32.mrf.mxu0
    %1786 = vmatprep.mubr.f32.mxu0 0.0
    %v1787 = vand.u32 %v201, 4294901760
    %v1788 = vsub.f32 %v201, %v1787
    %1789 = vmatmul.mubr.f32.gmra.mxu0 %v1788
    %v1790 = vpop.f32.mrf.mxu0
    %v1791 = vadd.f32 %v1297, %v1790
    %v1792 = vpop.f32.mrf.mxu0
    %1793 = vmatprep.mubr.f32.mxu0 0.0
    %v1794 = vand.u32 %v204, 4294901760
    %v1795 = vsub.f32 %v204, %v1794
    %1796 = vmatmul.mubr.f32.gmra.mxu0 %v1795
    %v1797 = vpop.f32.mrf.mxu0
    %v1798 = vadd.f32 %v1303, %v1797
    %v1799 = vpop.f32.mrf.mxu0
    %1800 = vmatprep.mubr.f32.mxu0 0.0
    %v1801 = vand.u32 %v207, 4294901760
    %v1802 = vsub.f32 %v207, %v1801
    %1803 = vmatmul.mubr.f32.gmra.mxu0 %v1802
    %v1804 = vpop.f32.mrf.mxu0
    %v1805 = vadd.f32 %v1309, %v1804
    %v1806 = vpop.f32.mrf.mxu0
    %1807 = vmatprep.mubr.f32.mxu0 0.0
    %v1808 = vand.u32 %v210, 4294901760
    %v1809 = vsub.f32 %v210, %v1808
    %1810 = vmatmul.mubr.f32.gmra.mxu0 %v1809
    %v1811 = vpop.f32.mrf.mxu0
    %v1812 = vadd.f32 %v1315, %v1811
    %v1813 = vpop.f32.mrf.mxu0
    %1814 = vmatprep.mubr.f32.mxu0 0.0
    %v1815 = vand.u32 %v213, 4294901760
    %v1816 = vsub.f32 %v213, %v1815
    %1817 = vmatmul.mubr.f32.gmra.mxu0 %v1816
    %v1818 = vpop.f32.mrf.mxu0
    %v1819 = vadd.f32 %v1321, %v1818
    %v1820 = vpop.f32.mrf.mxu0
    %1821 = vmatprep.mubr.f32.mxu0 0.0
    %v1822 = vand.u32 %v216, 4294901760
    %v1823 = vsub.f32 %v216, %v1822
    %1824 = vmatmul.mubr.f32.gmra.mxu0 %v1823
    %v1825 = vpop.f32.mrf.mxu0
    %v1826 = vadd.f32 %v1327, %v1825
    %v1827 = vpop.f32.mrf.mxu0
    %1828 = vmatprep.mubr.f32.mxu0 0.0
    %v1829 = vand.u32 %v219, 4294901760
    %v1830 = vsub.f32 %v219, %v1829
    %1831 = vmatmul.mubr.f32.gmra.mxu0 %v1830
    %v1832 = vpop.f32.mrf.mxu0
    %v1833 = vadd.f32 %v1333, %v1832
    %v1834 = vpop.f32.mrf.mxu0
    %1835 = vmatprep.mubr.f32.mxu0 0.0
    %v1836 = vand.u32 %v222, 4294901760
    %v1837 = vsub.f32 %v222, %v1836
    %1838 = vmatmul.mubr.f32.gmra.mxu0 %v1837
    %v1839 = vpop.f32.mrf.mxu0
    %v1840 = vadd.f32 %v1339, %v1839
    %v1841 = vpop.f32.mrf.mxu0
    %1842 = vmatprep.mubr.f32.mxu0 0.0
    %v1843 = vand.u32 %v225, 4294901760
    %v1844 = vsub.f32 %v225, %v1843
    %1845 = vmatmul.mubr.f32.gmra.mxu0 %v1844
    %v1846 = vpop.f32.mrf.mxu0
    %v1847 = vadd.f32 %v1345, %v1846
    %v1848 = vpop.f32.mrf.mxu0
    %1849 = vmatprep.mubr.f32.mxu0 0.0
    %v1850 = vand.u32 %v228, 4294901760
    %v1851 = vsub.f32 %v228, %v1850
    %1852 = vmatmul.mubr.f32.gmra.mxu0 %v1851
    %v1853 = vpop.f32.mrf.mxu0
    %v1854 = vadd.f32 %v1351, %v1853
    %v1855 = vpop.f32.mrf.mxu0
    %1856 = vmatprep.mubr.f32.mxu0 0.0
    %v1857 = vand.u32 %v231, 4294901760
    %v1858 = vsub.f32 %v231, %v1857
    %1859 = vmatmul.mubr.f32.gmra.mxu0 %v1858
    %v1860 = vpop.f32.mrf.mxu0
    %v1861 = vadd.f32 %v1357, %v1860
    %v1862 = vpop.f32.mrf.mxu0
    %1863 = vmatprep.mubr.f32.mxu0 0.0
    %v1864 = vand.u32 %v234, 4294901760
    %v1865 = vsub.f32 %v234, %v1864
    %1866 = vmatmul.mubr.f32.gmra.mxu0 %v1865
    %v1867 = vpop.f32.mrf.mxu0
    %v1868 = vadd.f32 %v1363, %v1867
    %v1869 = vpop.f32.mrf.mxu0
    %1870 = vmatprep.mubr.f32.mxu0 0.0
    %v1871 = vand.u32 %v237, 4294901760
    %v1872 = vsub.f32 %v237, %v1871
    %1873 = vmatmul.mubr.f32.gmra.mxu0 %v1872
    %v1874 = vpop.f32.mrf.mxu0
    %v1875 = vadd.f32 %v1369, %v1874
    %v1876 = vpop.f32.mrf.mxu0
    %1877 = vmatprep.mubr.f32.mxu0 0.0
    %v1878 = vand.u32 %v240, 4294901760
    %v1879 = vsub.f32 %v240, %v1878
    %1880 = vmatmul.mubr.f32.gmra.mxu0 %v1879
    %v1881 = vpop.f32.mrf.mxu0
    %v1882 = vadd.f32 %v1375, %v1881
    %v1883 = vpop.f32.mrf.mxu0
    %1884 = vmatprep.mubr.f32.mxu0 0.0
    %v1885 = vand.u32 %v243, 4294901760
    %v1886 = vsub.f32 %v243, %v1885
    %1887 = vmatmul.mubr.f32.gmra.mxu0 %v1886
    %v1888 = vpop.f32.mrf.mxu0
    %v1889 = vadd.f32 %v1381, %v1888
    %v1890 = vpop.f32.mrf.mxu0
    %1891 = vmatprep.mubr.f32.mxu0 0.0
    %v1892 = vand.u32 %v246, 4294901760
    %v1893 = vsub.f32 %v246, %v1892
    %1894 = vmatmul.mubr.f32.gmra.mxu0 %v1893
    %v1895 = vpop.f32.mrf.mxu0
    %v1896 = vadd.f32 %v1387, %v1895
    %v1897 = vpop.f32.mrf.mxu0
    %1898 = vmatprep.mubr.f32.mxu0 0.0
    %v1899 = vand.u32 %v249, 4294901760
    %v1900 = vsub.f32 %v249, %v1899
    %1901 = vmatmul.mubr.f32.gmra.mxu0 %v1900
    %v1902 = vpop.f32.mrf.mxu0
    %v1903 = vadd.f32 %v1393, %v1902
    %v1904 = vpop.f32.mrf.mxu0
    %1905 = vmatprep.mubr.f32.mxu0 0.0
    %v1906 = vand.u32 %v252, 4294901760
    %v1907 = vsub.f32 %v252, %v1906
    %1908 = vmatmul.mubr.f32.gmra.mxu0 %v1907
    %v1909 = vpop.f32.mrf.mxu0
    %v1910 = vadd.f32 %v1399, %v1909
    %v1911 = vpop.f32.mrf.mxu0
    %1912 = vmatprep.mubr.f32.mxu0 0.0
    %v1913 = vand.u32 %v255, 4294901760
    %v1914 = vsub.f32 %v255, %v1913
    %1915 = vmatmul.mubr.f32.gmra.mxu0 %v1914
    %v1916 = vpop.f32.mrf.mxu0
    %v1917 = vadd.f32 %v1405, %v1916
    %v1918 = vpop.f32.mrf.mxu0
    %1919 = vmatprep.mubr.f32.mxu0 0.0
    %v1920 = vand.u32 %v258, 4294901760
    %v1921 = vsub.f32 %v258, %v1920
    %1922 = vmatmul.mubr.f32.gmra.mxu0 %v1921
    %v1923 = vpop.f32.mrf.mxu0
    %v1924 = vadd.f32 %v1411, %v1923
    %v1925 = vpop.f32.mrf.mxu0
    %1926 = vmatprep.mubr.f32.mxu0 0.0
    %v1927 = vand.u32 %v261, 4294901760
    %v1928 = vsub.f32 %v261, %v1927
    %1929 = vmatmul.mubr.f32.gmra.mxu0 %v1928
    %v1930 = vpop.f32.mrf.mxu0
    %v1931 = vadd.f32 %v1417, %v1930
    %v1932 = vpop.f32.mrf.mxu0
    %1933 = vmatprep.mubr.f32.mxu0 0.0
    %v1934 = vand.u32 %v264, 4294901760
    %v1935 = vsub.f32 %v264, %v1934
    %1936 = vmatmul.mubr.f32.gmra.mxu0 %v1935
    %v1937 = vpop.f32.mrf.mxu0
    %v1938 = vadd.f32 %v1423, %v1937
    %v1939 = vpop.f32.mrf.mxu0
    %1940 = vmatprep.mubr.f32.mxu0 0.0
    %v1941 = vand.u32 %v267, 4294901760
    %v1942 = vsub.f32 %v267, %v1941
    %1943 = vmatmul.mubr.f32.gmra.mxu0 %v1942
    %v1944 = vpop.f32.mrf.mxu0
    %v1945 = vadd.f32 %v1429, %v1944
    %v1946 = vpop.f32.mrf.mxu0
    %1947 = vmatprep.mubr.f32.mxu0 0.0
    %v1948 = vand.u32 %v270, 4294901760
    %v1949 = vsub.f32 %v270, %v1948
    %1950 = vmatmul.mubr.f32.gmra.mxu0 %v1949
    %v1951 = vpop.f32.mrf.mxu0
    %v1952 = vadd.f32 %v1435, %v1951
    %v1953 = vpop.f32.mrf.mxu0
    %1954 = vmatprep.mubr.f32.mxu0 0.0
    %v1955 = vand.u32 %v273, 4294901760
    %v1956 = vsub.f32 %v273, %v1955
    %1957 = vmatmul.mubr.f32.gmra.mxu0 %v1956
    %v1958 = vpop.f32.mrf.mxu0
    %v1959 = vadd.f32 %v1441, %v1958
    %v1960 = vpop.f32.mrf.mxu0
    %1961 = vmatprep.mubr.f32.mxu0 0.0
    %v1962 = vand.u32 %v276, 4294901760
    %v1963 = vsub.f32 %v276, %v1962
    %1964 = vmatmul.mubr.f32.gmra.mxu0 %v1963
    %v1965 = vpop.f32.mrf.mxu0
    %v1966 = vadd.f32 %v1447, %v1965
    %v1967 = vpop.f32.mrf.mxu0
    %1968 = vdwg.mxu0
    %1969 = vmatprep.subr.mxu0 0.0
    %1970 = vmatpush1.msra.mxu0 0.0
    %1971 = vmatprep.subr.mxu0 0.0
    %1972 = vmatpush1.msra.mxu0 0.0
    %1973 = vmatprep.subr.mxu0 0.0
    %1974 = vmatpush1.msra.mxu0 0.0
    %1975 = vmatprep.subr.mxu0 0.0
    %1976 = vmatpush1.msra.mxu0 0.0
    %1977 = vmatprep.subr.mxu0 0.0
    %1978 = vmatpush1.msra.mxu0 0.0
    %1979 = vmatprep.subr.mxu0 0.0
    %1980 = vmatpush1.msra.mxu0 0.0
    %1981 = vmatprep.subr.mxu0 0.0
    %1982 = vmatpush1.msra.mxu0 0.0
    %1983 = vmatprep.subr.mxu0 0.0
    %1984 = vmatpush1.msra.mxu0 0.0
    %1985 = vmatprep.subr.mxu0 0.0
    %1986 = vmatpush1.msra.mxu0 0.0
    %1987 = vmatprep.subr.mxu0 0.0
    %1988 = vmatpush1.msra.mxu0 0.0
    %1989 = vmatprep.subr.mxu0 0.0
    %1990 = vmatpush1.msra.mxu0 0.0
    %1991 = vmatprep.subr.mxu0 0.0
    %1992 = vmatpush1.msra.mxu0 0.0
    %1993 = vmatprep.subr.mxu0 0.0
    %1994 = vmatpush1.msra.mxu0 0.0
    %1995 = vmatprep.subr.mxu0 0.0
    %v1996 = vand.u32 %v84, 4294901760
    %1997 = vmatpush1.msra.mxu0 %v1996
    %1998 = vmatprep.subr.mxu0 0.0
    %v1999 = vand.u32 %v83, 4294901760
    %2000 = vmatpush1.msra.mxu0 %v1999
    %2001 = vmatprep.subr.mxu0 0.0
    %v2002 = vand.u32 %v82, 4294901760
    %2003 = vmatpush1.msra.mxu0 %v2002
    %2004 = vmatprep.subr.mxu0 0.0
    %2005 = vmatpush2.msra.mxu0 0.0
    %2006 = vmatprep.subr.mxu0 0.0
    %2007 = vmatpush2.msra.mxu0 0.0
    %2008 = vmatprep.subr.mxu0 0.0
    %2009 = vmatpush2.msra.mxu0 0.0
    %2010 = vmatprep.subr.mxu0 0.0
    %2011 = vmatpush2.msra.mxu0 0.0
    %2012 = vmatprep.subr.mxu0 0.0
    %2013 = vmatpush2.msra.mxu0 0.0
    %2014 = vmatprep.subr.mxu0 0.0
    %2015 = vmatpush2.msra.mxu0 0.0
    %2016 = vmatprep.subr.mxu0 0.0
    %2017 = vmatpush2.msra.mxu0 0.0
    %2018 = vmatprep.subr.mxu0 0.0
    %2019 = vmatpush2.msra.mxu0 0.0
    %2020 = vmatprep.subr.mxu0 0.0
    %2021 = vmatpush2.msra.mxu0 0.0
    %2022 = vmatprep.subr.mxu0 0.0
    %2023 = vmatpush2.msra.mxu0 0.0
    %2024 = vmatprep.subr.mxu0 0.0
    %2025 = vmatpush2.msra.mxu0 0.0
    %2026 = vmatprep.subr.mxu0 0.0
    %2027 = vmatpush2.msra.mxu0 0.0
    %2028 = vmatprep.subr.mxu0 0.0
    %2029 = vmatpush2.msra.mxu0 0.0
    %2030 = vmatprep.subr.mxu0 0.0
    %2031 = vmatpush2.msra.mxu0 0.0
    %2032 = vmatprep.subr.mxu0 0.0
    %2033 = vmatpush2.msra.mxu0 0.0
    %2034 = vmatprep.subr.mxu0 0.0
    %2035 = vmatpush2.msra.mxu0 0.0
    %2036 = vmatprep.mubr.f32.mxu0 0.0
    %v2037 = vand.u32 %v87, 4294901760
    %v2038 = vsub.f32 %v87, %v2037
    %v2039 = vand.u32 %v2038, 4294901760
    %2040 = vmatmul.mubr.f32.gmra.mxu0 %v2039
    %v2041 = vpop.f32.mrf.mxu0
    %v2042 = vadd.f32 %v1525, %v2041
    %v2043 = vpop.f32.mrf.mxu0
    %2044 = vmatprep.mubr.f32.mxu0 0.0
    %v2045 = vand.u32 %v90, 4294901760
    %v2046 = vsub.f32 %v90, %v2045
    %v2047 = vand.u32 %v2046, 4294901760
    %2048 = vmatmul.mubr.f32.gmra.mxu0 %v2047
    %v2049 = vpop.f32.mrf.mxu0
    %v2050 = vadd.f32 %v1532, %v2049
    %v2051 = vpop.f32.mrf.mxu0
    %2052 = vmatprep.mubr.f32.mxu0 0.0
    %v2053 = vand.u32 %v93, 4294901760
    %v2054 = vsub.f32 %v93, %v2053
    %v2055 = vand.u32 %v2054, 4294901760
    %2056 = vmatmul.mubr.f32.gmra.mxu0 %v2055
    %v2057 = vpop.f32.mrf.mxu0
    %v2058 = vadd.f32 %v1539, %v2057
    %v2059 = vpop.f32.mrf.mxu0
    %2060 = vmatprep.mubr.f32.mxu0 0.0
    %v2061 = vand.u32 %v96, 4294901760
    %v2062 = vsub.f32 %v96, %v2061
    %v2063 = vand.u32 %v2062, 4294901760
    %2064 = vmatmul.mubr.f32.gmra.mxu0 %v2063
    %v2065 = vpop.f32.mrf.mxu0
    %v2066 = vadd.f32 %v1546, %v2065
    %v2067 = vpop.f32.mrf.mxu0
    %2068 = vmatprep.mubr.f32.mxu0 0.0
    %v2069 = vand.u32 %v99, 4294901760
    %v2070 = vsub.f32 %v99, %v2069
    %v2071 = vand.u32 %v2070, 4294901760
    %2072 = vmatmul.mubr.f32.gmra.mxu0 %v2071
    %v2073 = vpop.f32.mrf.mxu0
    %v2074 = vadd.f32 %v1553, %v2073
    %v2075 = vpop.f32.mrf.mxu0
    %2076 = vmatprep.mubr.f32.mxu0 0.0
    %v2077 = vand.u32 %v102, 4294901760
    %v2078 = vsub.f32 %v102, %v2077
    %v2079 = vand.u32 %v2078, 4294901760
    %2080 = vmatmul.mubr.f32.gmra.mxu0 %v2079
    %v2081 = vpop.f32.mrf.mxu0
    %v2082 = vadd.f32 %v1560, %v2081
    %v2083 = vpop.f32.mrf.mxu0
    %2084 = vmatprep.mubr.f32.mxu0 0.0
    %v2085 = vand.u32 %v105, 4294901760
    %v2086 = vsub.f32 %v105, %v2085
    %v2087 = vand.u32 %v2086, 4294901760
    %2088 = vmatmul.mubr.f32.gmra.mxu0 %v2087
    %v2089 = vpop.f32.mrf.mxu0
    %v2090 = vadd.f32 %v1567, %v2089
    %v2091 = vpop.f32.mrf.mxu0
    %2092 = vmatprep.mubr.f32.mxu0 0.0
    %v2093 = vand.u32 %v108, 4294901760
    %v2094 = vsub.f32 %v108, %v2093
    %v2095 = vand.u32 %v2094, 4294901760
    %2096 = vmatmul.mubr.f32.gmra.mxu0 %v2095
    %v2097 = vpop.f32.mrf.mxu0
    %v2098 = vadd.f32 %v1574, %v2097
    %v2099 = vpop.f32.mrf.mxu0
    %2100 = vmatprep.mubr.f32.mxu0 0.0
    %v2101 = vand.u32 %v111, 4294901760
    %v2102 = vsub.f32 %v111, %v2101
    %v2103 = vand.u32 %v2102, 4294901760
    %2104 = vmatmul.mubr.f32.gmra.mxu0 %v2103
    %v2105 = vpop.f32.mrf.mxu0
    %v2106 = vadd.f32 %v1581, %v2105
    %v2107 = vpop.f32.mrf.mxu0
    %2108 = vmatprep.mubr.f32.mxu0 0.0
    %v2109 = vand.u32 %v114, 4294901760
    %v2110 = vsub.f32 %v114, %v2109
    %v2111 = vand.u32 %v2110, 4294901760
    %2112 = vmatmul.mubr.f32.gmra.mxu0 %v2111
    %v2113 = vpop.f32.mrf.mxu0
    %v2114 = vadd.f32 %v1588, %v2113
    %v2115 = vpop.f32.mrf.mxu0
    %2116 = vmatprep.mubr.f32.mxu0 0.0
    %v2117 = vand.u32 %v117, 4294901760
    %v2118 = vsub.f32 %v117, %v2117
    %v2119 = vand.u32 %v2118, 4294901760
    %2120 = vmatmul.mubr.f32.gmra.mxu0 %v2119
    %v2121 = vpop.f32.mrf.mxu0
    %v2122 = vadd.f32 %v1595, %v2121
    %v2123 = vpop.f32.mrf.mxu0
    %2124 = vmatprep.mubr.f32.mxu0 0.0
    %v2125 = vand.u32 %v120, 4294901760
    %v2126 = vsub.f32 %v120, %v2125
    %v2127 = vand.u32 %v2126, 4294901760
    %2128 = vmatmul.mubr.f32.gmra.mxu0 %v2127
    %v2129 = vpop.f32.mrf.mxu0
    %v2130 = vadd.f32 %v1602, %v2129
    %v2131 = vpop.f32.mrf.mxu0
    %2132 = vmatprep.mubr.f32.mxu0 0.0
    %v2133 = vand.u32 %v123, 4294901760
    %v2134 = vsub.f32 %v123, %v2133
    %v2135 = vand.u32 %v2134, 4294901760
    %2136 = vmatmul.mubr.f32.gmra.mxu0 %v2135
    %v2137 = vpop.f32.mrf.mxu0
    %v2138 = vadd.f32 %v1609, %v2137
    %v2139 = vpop.f32.mrf.mxu0
    %2140 = vmatprep.mubr.f32.mxu0 0.0
    %v2141 = vand.u32 %v126, 4294901760
    %v2142 = vsub.f32 %v126, %v2141
    %v2143 = vand.u32 %v2142, 4294901760
    %2144 = vmatmul.mubr.f32.gmra.mxu0 %v2143
    %v2145 = vpop.f32.mrf.mxu0
    %v2146 = vadd.f32 %v1616, %v2145
    %v2147 = vpop.f32.mrf.mxu0
    %2148 = vmatprep.mubr.f32.mxu0 0.0
    %v2149 = vand.u32 %v129, 4294901760
    %v2150 = vsub.f32 %v129, %v2149
    %v2151 = vand.u32 %v2150, 4294901760
    %2152 = vmatmul.mubr.f32.gmra.mxu0 %v2151
    %v2153 = vpop.f32.mrf.mxu0
    %v2154 = vadd.f32 %v1623, %v2153
    %v2155 = vpop.f32.mrf.mxu0
    %2156 = vmatprep.mubr.f32.mxu0 0.0
    %v2157 = vand.u32 %v132, 4294901760
    %v2158 = vsub.f32 %v132, %v2157
    %v2159 = vand.u32 %v2158, 4294901760
    %2160 = vmatmul.mubr.f32.gmra.mxu0 %v2159
    %v2161 = vpop.f32.mrf.mxu0
    %v2162 = vadd.f32 %v1630, %v2161
    %v2163 = vpop.f32.mrf.mxu0
    %2164 = vmatprep.mubr.f32.mxu0 0.0
    %v2165 = vand.u32 %v135, 4294901760
    %v2166 = vsub.f32 %v135, %v2165
    %v2167 = vand.u32 %v2166, 4294901760
    %2168 = vmatmul.mubr.f32.gmra.mxu0 %v2167
    %v2169 = vpop.f32.mrf.mxu0
    %v2170 = vadd.f32 %v1637, %v2169
    %v2171 = vpop.f32.mrf.mxu0
    %2172 = vmatprep.mubr.f32.mxu0 0.0
    %v2173 = vand.u32 %v138, 4294901760
    %v2174 = vsub.f32 %v138, %v2173
    %v2175 = vand.u32 %v2174, 4294901760
    %2176 = vmatmul.mubr.f32.gmra.mxu0 %v2175
    %v2177 = vpop.f32.mrf.mxu0
    %v2178 = vadd.f32 %v1644, %v2177
    %v2179 = vpop.f32.mrf.mxu0
    %2180 = vmatprep.mubr.f32.mxu0 0.0
    %v2181 = vand.u32 %v141, 4294901760
    %v2182 = vsub.f32 %v141, %v2181
    %v2183 = vand.u32 %v2182, 4294901760
    %2184 = vmatmul.mubr.f32.gmra.mxu0 %v2183
    %v2185 = vpop.f32.mrf.mxu0
    %v2186 = vadd.f32 %v1651, %v2185
    %v2187 = vpop.f32.mrf.mxu0
    %2188 = vmatprep.mubr.f32.mxu0 0.0
    %v2189 = vand.u32 %v144, 4294901760
    %v2190 = vsub.f32 %v144, %v2189
    %v2191 = vand.u32 %v2190, 4294901760
    %2192 = vmatmul.mubr.f32.gmra.mxu0 %v2191
    %v2193 = vpop.f32.mrf.mxu0
    %v2194 = vadd.f32 %v1658, %v2193
    %v2195 = vpop.f32.mrf.mxu0
    %2196 = vmatprep.mubr.f32.mxu0 0.0
    %v2197 = vand.u32 %v147, 4294901760
    %v2198 = vsub.f32 %v147, %v2197
    %v2199 = vand.u32 %v2198, 4294901760
    %2200 = vmatmul.mubr.f32.gmra.mxu0 %v2199
    %v2201 = vpop.f32.mrf.mxu0
    %v2202 = vadd.f32 %v1665, %v2201
    %v2203 = vpop.f32.mrf.mxu0
    %2204 = vmatprep.mubr.f32.mxu0 0.0
    %v2205 = vand.u32 %v150, 4294901760
    %v2206 = vsub.f32 %v150, %v2205
    %v2207 = vand.u32 %v2206, 4294901760
    %2208 = vmatmul.mubr.f32.gmra.mxu0 %v2207
    %v2209 = vpop.f32.mrf.mxu0
    %v2210 = vadd.f32 %v1672, %v2209
    %v2211 = vpop.f32.mrf.mxu0
    %2212 = vmatprep.mubr.f32.mxu0 0.0
    %v2213 = vand.u32 %v153, 4294901760
    %v2214 = vsub.f32 %v153, %v2213
    %v2215 = vand.u32 %v2214, 4294901760
    %2216 = vmatmul.mubr.f32.gmra.mxu0 %v2215
    %v2217 = vpop.f32.mrf.mxu0
    %v2218 = vadd.f32 %v1679, %v2217
    %v2219 = vpop.f32.mrf.mxu0
    %2220 = vmatprep.mubr.f32.mxu0 0.0
    %v2221 = vand.u32 %v156, 4294901760
    %v2222 = vsub.f32 %v156, %v2221
    %v2223 = vand.u32 %v2222, 4294901760
    %2224 = vmatmul.mubr.f32.gmra.mxu0 %v2223
    %v2225 = vpop.f32.mrf.mxu0
    %v2226 = vadd.f32 %v1686, %v2225
    %v2227 = vpop.f32.mrf.mxu0
    %2228 = vmatprep.mubr.f32.mxu0 0.0
    %v2229 = vand.u32 %v159, 4294901760
    %v2230 = vsub.f32 %v159, %v2229
    %v2231 = vand.u32 %v2230, 4294901760
    %2232 = vmatmul.mubr.f32.gmra.mxu0 %v2231
    %v2233 = vpop.f32.mrf.mxu0
    %v2234 = vadd.f32 %v1693, %v2233
    %v2235 = vpop.f32.mrf.mxu0
    %2236 = vmatprep.mubr.f32.mxu0 0.0
    %v2237 = vand.u32 %v162, 4294901760
    %v2238 = vsub.f32 %v162, %v2237
    %v2239 = vand.u32 %v2238, 4294901760
    %2240 = vmatmul.mubr.f32.gmra.mxu0 %v2239
    %v2241 = vpop.f32.mrf.mxu0
    %v2242 = vadd.f32 %v1700, %v2241
    %v2243 = vpop.f32.mrf.mxu0
    %2244 = vmatprep.mubr.f32.mxu0 0.0
    %v2245 = vand.u32 %v165, 4294901760
    %v2246 = vsub.f32 %v165, %v2245
    %v2247 = vand.u32 %v2246, 4294901760
    %2248 = vmatmul.mubr.f32.gmra.mxu0 %v2247
    %v2249 = vpop.f32.mrf.mxu0
    %v2250 = vadd.f32 %v1707, %v2249
    %v2251 = vpop.f32.mrf.mxu0
    %2252 = vmatprep.mubr.f32.mxu0 0.0
    %v2253 = vand.u32 %v168, 4294901760
    %v2254 = vsub.f32 %v168, %v2253
    %v2255 = vand.u32 %v2254, 4294901760
    %2256 = vmatmul.mubr.f32.gmra.mxu0 %v2255
    %v2257 = vpop.f32.mrf.mxu0
    %v2258 = vadd.f32 %v1714, %v2257
    %v2259 = vpop.f32.mrf.mxu0
    %2260 = vmatprep.mubr.f32.mxu0 0.0
    %v2261 = vand.u32 %v171, 4294901760
    %v2262 = vsub.f32 %v171, %v2261
    %v2263 = vand.u32 %v2262, 4294901760
    %2264 = vmatmul.mubr.f32.gmra.mxu0 %v2263
    %v2265 = vpop.f32.mrf.mxu0
    %v2266 = vadd.f32 %v1721, %v2265
    %v2267 = vpop.f32.mrf.mxu0
    %2268 = vmatprep.mubr.f32.mxu0 0.0
    %v2269 = vand.u32 %v174, 4294901760
    %v2270 = vsub.f32 %v174, %v2269
    %v2271 = vand.u32 %v2270, 4294901760
    %2272 = vmatmul.mubr.f32.gmra.mxu0 %v2271
    %v2273 = vpop.f32.mrf.mxu0
    %v2274 = vadd.f32 %v1728, %v2273
    %v2275 = vpop.f32.mrf.mxu0
    %2276 = vmatprep.mubr.f32.mxu0 0.0
    %v2277 = vand.u32 %v177, 4294901760
    %v2278 = vsub.f32 %v177, %v2277
    %v2279 = vand.u32 %v2278, 4294901760
    %2280 = vmatmul.mubr.f32.gmra.mxu0 %v2279
    %v2281 = vpop.f32.mrf.mxu0
    %v2282 = vadd.f32 %v1735, %v2281
    %v2283 = vpop.f32.mrf.mxu0
    %2284 = vmatprep.mubr.f32.mxu0 0.0
    %v2285 = vand.u32 %v180, 4294901760
    %v2286 = vsub.f32 %v180, %v2285
    %v2287 = vand.u32 %v2286, 4294901760
    %2288 = vmatmul.mubr.f32.gmra.mxu0 %v2287
    %v2289 = vpop.f32.mrf.mxu0
    %v2290 = vadd.f32 %v1742, %v2289
    %v2291 = vpop.f32.mrf.mxu0
    %2292 = vmatprep.mubr.f32.mxu0 0.0
    %v2293 = vand.u32 %v183, 4294901760
    %v2294 = vsub.f32 %v183, %v2293
    %v2295 = vand.u32 %v2294, 4294901760
    %2296 = vmatmul.mubr.f32.gmra.mxu0 %v2295
    %v2297 = vpop.f32.mrf.mxu0
    %v2298 = vadd.f32 %v1749, %v2297
    %v2299 = vpop.f32.mrf.mxu0
    %2300 = vmatprep.mubr.f32.mxu0 0.0
    %v2301 = vand.u32 %v186, 4294901760
    %v2302 = vsub.f32 %v186, %v2301
    %v2303 = vand.u32 %v2302, 4294901760
    %2304 = vmatmul.mubr.f32.gmra.mxu0 %v2303
    %v2305 = vpop.f32.mrf.mxu0
    %v2306 = vadd.f32 %v1756, %v2305
    %v2307 = vpop.f32.mrf.mxu0
    %2308 = vmatprep.mubr.f32.mxu0 0.0
    %v2309 = vand.u32 %v189, 4294901760
    %v2310 = vsub.f32 %v189, %v2309
    %v2311 = vand.u32 %v2310, 4294901760
    %2312 = vmatmul.mubr.f32.gmra.mxu0 %v2311
    %v2313 = vpop.f32.mrf.mxu0
    %v2314 = vadd.f32 %v1763, %v2313
    %v2315 = vpop.f32.mrf.mxu0
    %2316 = vmatprep.mubr.f32.mxu0 0.0
    %v2317 = vand.u32 %v192, 4294901760
    %v2318 = vsub.f32 %v192, %v2317
    %v2319 = vand.u32 %v2318, 4294901760
    %2320 = vmatmul.mubr.f32.gmra.mxu0 %v2319
    %v2321 = vpop.f32.mrf.mxu0
    %v2322 = vadd.f32 %v1770, %v2321
    %v2323 = vpop.f32.mrf.mxu0
    %2324 = vmatprep.mubr.f32.mxu0 0.0
    %v2325 = vand.u32 %v195, 4294901760
    %v2326 = vsub.f32 %v195, %v2325
    %v2327 = vand.u32 %v2326, 4294901760
    %2328 = vmatmul.mubr.f32.gmra.mxu0 %v2327
    %v2329 = vpop.f32.mrf.mxu0
    %v2330 = vadd.f32 %v1777, %v2329
    %v2331 = vpop.f32.mrf.mxu0
    %2332 = vmatprep.mubr.f32.mxu0 0.0
    %v2333 = vand.u32 %v198, 4294901760
    %v2334 = vsub.f32 %v198, %v2333
    %v2335 = vand.u32 %v2334, 4294901760
    %2336 = vmatmul.mubr.f32.gmra.mxu0 %v2335
    %v2337 = vpop.f32.mrf.mxu0
    %v2338 = vadd.f32 %v1784, %v2337
    %v2339 = vpop.f32.mrf.mxu0
    %2340 = vmatprep.mubr.f32.mxu0 0.0
    %v2341 = vand.u32 %v201, 4294901760
    %v2342 = vsub.f32 %v201, %v2341
    %v2343 = vand.u32 %v2342, 4294901760
    %2344 = vmatmul.mubr.f32.gmra.mxu0 %v2343
    %v2345 = vpop.f32.mrf.mxu0
    %v2346 = vadd.f32 %v1791, %v2345
    %v2347 = vpop.f32.mrf.mxu0
    %2348 = vmatprep.mubr.f32.mxu0 0.0
    %v2349 = vand.u32 %v204, 4294901760
    %v2350 = vsub.f32 %v204, %v2349
    %v2351 = vand.u32 %v2350, 4294901760
    %2352 = vmatmul.mubr.f32.gmra.mxu0 %v2351
    %v2353 = vpop.f32.mrf.mxu0
    %v2354 = vadd.f32 %v1798, %v2353
    %v2355 = vpop.f32.mrf.mxu0
    %2356 = vmatprep.mubr.f32.mxu0 0.0
    %v2357 = vand.u32 %v207, 4294901760
    %v2358 = vsub.f32 %v207, %v2357
    %v2359 = vand.u32 %v2358, 4294901760
    %2360 = vmatmul.mubr.f32.gmra.mxu0 %v2359
    %v2361 = vpop.f32.mrf.mxu0
    %v2362 = vadd.f32 %v1805, %v2361
    %v2363 = vpop.f32.mrf.mxu0
    %2364 = vmatprep.mubr.f32.mxu0 0.0
    %v2365 = vand.u32 %v210, 4294901760
    %v2366 = vsub.f32 %v210, %v2365
    %v2367 = vand.u32 %v2366, 4294901760
    %2368 = vmatmul.mubr.f32.gmra.mxu0 %v2367
    %v2369 = vpop.f32.mrf.mxu0
    %v2370 = vadd.f32 %v1812, %v2369
    %v2371 = vpop.f32.mrf.mxu0
    %2372 = vmatprep.mubr.f32.mxu0 0.0
    %v2373 = vand.u32 %v213, 4294901760
    %v2374 = vsub.f32 %v213, %v2373
    %v2375 = vand.u32 %v2374, 4294901760
    %2376 = vmatmul.mubr.f32.gmra.mxu0 %v2375
    %v2377 = vpop.f32.mrf.mxu0
    %v2378 = vadd.f32 %v1819, %v2377
    %v2379 = vpop.f32.mrf.mxu0
    %2380 = vmatprep.mubr.f32.mxu0 0.0
    %v2381 = vand.u32 %v216, 4294901760
    %v2382 = vsub.f32 %v216, %v2381
    %v2383 = vand.u32 %v2382, 4294901760
    %2384 = vmatmul.mubr.f32.gmra.mxu0 %v2383
    %v2385 = vpop.f32.mrf.mxu0
    %v2386 = vadd.f32 %v1826, %v2385
    %v2387 = vpop.f32.mrf.mxu0
    %2388 = vmatprep.mubr.f32.mxu0 0.0
    %v2389 = vand.u32 %v219, 4294901760
    %v2390 = vsub.f32 %v219, %v2389
    %v2391 = vand.u32 %v2390, 4294901760
    %2392 = vmatmul.mubr.f32.gmra.mxu0 %v2391
    %v2393 = vpop.f32.mrf.mxu0
    %v2394 = vadd.f32 %v1833, %v2393
    %v2395 = vpop.f32.mrf.mxu0
    %2396 = vmatprep.mubr.f32.mxu0 0.0
    %v2397 = vand.u32 %v222, 4294901760
    %v2398 = vsub.f32 %v222, %v2397
    %v2399 = vand.u32 %v2398, 4294901760
    %2400 = vmatmul.mubr.f32.gmra.mxu0 %v2399
    %v2401 = vpop.f32.mrf.mxu0
    %v2402 = vadd.f32 %v1840, %v2401
    %v2403 = vpop.f32.mrf.mxu0
    %2404 = vmatprep.mubr.f32.mxu0 0.0
    %v2405 = vand.u32 %v225, 4294901760
    %v2406 = vsub.f32 %v225, %v2405
    %v2407 = vand.u32 %v2406, 4294901760
    %2408 = vmatmul.mubr.f32.gmra.mxu0 %v2407
    %v2409 = vpop.f32.mrf.mxu0
    %v2410 = vadd.f32 %v1847, %v2409
    %v2411 = vpop.f32.mrf.mxu0
    %2412 = vmatprep.mubr.f32.mxu0 0.0
    %v2413 = vand.u32 %v228, 4294901760
    %v2414 = vsub.f32 %v228, %v2413
    %v2415 = vand.u32 %v2414, 4294901760
    %2416 = vmatmul.mubr.f32.gmra.mxu0 %v2415
    %v2417 = vpop.f32.mrf.mxu0
    %v2418 = vadd.f32 %v1854, %v2417
    %v2419 = vpop.f32.mrf.mxu0
    %2420 = vmatprep.mubr.f32.mxu0 0.0
    %v2421 = vand.u32 %v231, 4294901760
    %v2422 = vsub.f32 %v231, %v2421
    %v2423 = vand.u32 %v2422, 4294901760
    %2424 = vmatmul.mubr.f32.gmra.mxu0 %v2423
    %v2425 = vpop.f32.mrf.mxu0
    %v2426 = vadd.f32 %v1861, %v2425
    %v2427 = vpop.f32.mrf.mxu0
    %2428 = vmatprep.mubr.f32.mxu0 0.0
    %v2429 = vand.u32 %v234, 4294901760
    %v2430 = vsub.f32 %v234, %v2429
    %v2431 = vand.u32 %v2430, 4294901760
    %2432 = vmatmul.mubr.f32.gmra.mxu0 %v2431
    %v2433 = vpop.f32.mrf.mxu0
    %v2434 = vadd.f32 %v1868, %v2433
    %v2435 = vpop.f32.mrf.mxu0
    %2436 = vmatprep.mubr.f32.mxu0 0.0
    %v2437 = vand.u32 %v237, 4294901760
    %v2438 = vsub.f32 %v237, %v2437
    %v2439 = vand.u32 %v2438, 4294901760
    %2440 = vmatmul.mubr.f32.gmra.mxu0 %v2439
    %v2441 = vpop.f32.mrf.mxu0
    %v2442 = vadd.f32 %v1875, %v2441
    %v2443 = vpop.f32.mrf.mxu0
    %2444 = vmatprep.mubr.f32.mxu0 0.0
    %v2445 = vand.u32 %v240, 4294901760
    %v2446 = vsub.f32 %v240, %v2445
    %v2447 = vand.u32 %v2446, 4294901760
    %2448 = vmatmul.mubr.f32.gmra.mxu0 %v2447
    %v2449 = vpop.f32.mrf.mxu0
    %v2450 = vadd.f32 %v1882, %v2449
    %v2451 = vpop.f32.mrf.mxu0
    %2452 = vmatprep.mubr.f32.mxu0 0.0
    %v2453 = vand.u32 %v243, 4294901760
    %v2454 = vsub.f32 %v243, %v2453
    %v2455 = vand.u32 %v2454, 4294901760
    %2456 = vmatmul.mubr.f32.gmra.mxu0 %v2455
    %v2457 = vpop.f32.mrf.mxu0
    %v2458 = vadd.f32 %v1889, %v2457
    %v2459 = vpop.f32.mrf.mxu0
    %2460 = vmatprep.mubr.f32.mxu0 0.0
    %v2461 = vand.u32 %v246, 4294901760
    %v2462 = vsub.f32 %v246, %v2461
    %v2463 = vand.u32 %v2462, 4294901760
    %2464 = vmatmul.mubr.f32.gmra.mxu0 %v2463
    %v2465 = vpop.f32.mrf.mxu0
    %v2466 = vadd.f32 %v1896, %v2465
    %v2467 = vpop.f32.mrf.mxu0
    %2468 = vmatprep.mubr.f32.mxu0 0.0
    %v2469 = vand.u32 %v249, 4294901760
    %v2470 = vsub.f32 %v249, %v2469
    %v2471 = vand.u32 %v2470, 4294901760
    %2472 = vmatmul.mubr.f32.gmra.mxu0 %v2471
    %v2473 = vpop.f32.mrf.mxu0
    %v2474 = vadd.f32 %v1903, %v2473
    %v2475 = vpop.f32.mrf.mxu0
    %2476 = vmatprep.mubr.f32.mxu0 0.0
    %v2477 = vand.u32 %v252, 4294901760
    %v2478 = vsub.f32 %v252, %v2477
    %v2479 = vand.u32 %v2478, 4294901760
    %2480 = vmatmul.mubr.f32.gmra.mxu0 %v2479
    %v2481 = vpop.f32.mrf.mxu0
    %v2482 = vadd.f32 %v1910, %v2481
    %v2483 = vpop.f32.mrf.mxu0
    %2484 = vmatprep.mubr.f32.mxu0 0.0
    %v2485 = vand.u32 %v255, 4294901760
    %v2486 = vsub.f32 %v255, %v2485
    %v2487 = vand.u32 %v2486, 4294901760
    %2488 = vmatmul.mubr.f32.gmra.mxu0 %v2487
    %v2489 = vpop.f32.mrf.mxu0
    %v2490 = vadd.f32 %v1917, %v2489
    %v2491 = vpop.f32.mrf.mxu0
    %2492 = vmatprep.mubr.f32.mxu0 0.0
    %v2493 = vand.u32 %v258, 4294901760
    %v2494 = vsub.f32 %v258, %v2493
    %v2495 = vand.u32 %v2494, 4294901760
    %2496 = vmatmul.mubr.f32.gmra.mxu0 %v2495
    %v2497 = vpop.f32.mrf.mxu0
    %v2498 = vadd.f32 %v1924, %v2497
    %v2499 = vpop.f32.mrf.mxu0
    %2500 = vmatprep.mubr.f32.mxu0 0.0
    %v2501 = vand.u32 %v261, 4294901760
    %v2502 = vsub.f32 %v261, %v2501
    %v2503 = vand.u32 %v2502, 4294901760
    %2504 = vmatmul.mubr.f32.gmra.mxu0 %v2503
    %v2505 = vpop.f32.mrf.mxu0
    %v2506 = vadd.f32 %v1931, %v2505
    %v2507 = vpop.f32.mrf.mxu0
    %2508 = vmatprep.mubr.f32.mxu0 0.0
    %v2509 = vand.u32 %v264, 4294901760
    %v2510 = vsub.f32 %v264, %v2509
    %v2511 = vand.u32 %v2510, 4294901760
    %2512 = vmatmul.mubr.f32.gmra.mxu0 %v2511
    %v2513 = vpop.f32.mrf.mxu0
    %v2514 = vadd.f32 %v1938, %v2513
    %v2515 = vpop.f32.mrf.mxu0
    %2516 = vmatprep.mubr.f32.mxu0 0.0
    %v2517 = vand.u32 %v267, 4294901760
    %v2518 = vsub.f32 %v267, %v2517
    %v2519 = vand.u32 %v2518, 4294901760
    %2520 = vmatmul.mubr.f32.gmra.mxu0 %v2519
    %v2521 = vpop.f32.mrf.mxu0
    %v2522 = vadd.f32 %v1945, %v2521
    %v2523 = vpop.f32.mrf.mxu0
    %2524 = vmatprep.mubr.f32.mxu0 0.0
    %v2525 = vand.u32 %v270, 4294901760
    %v2526 = vsub.f32 %v270, %v2525
    %v2527 = vand.u32 %v2526, 4294901760
    %2528 = vmatmul.mubr.f32.gmra.mxu0 %v2527
    %v2529 = vpop.f32.mrf.mxu0
    %v2530 = vadd.f32 %v1952, %v2529
    %v2531 = vpop.f32.mrf.mxu0
    %2532 = vmatprep.mubr.f32.mxu0 0.0
    %v2533 = vand.u32 %v273, 4294901760
    %v2534 = vsub.f32 %v273, %v2533
    %v2535 = vand.u32 %v2534, 4294901760
    %2536 = vmatmul.mubr.f32.gmra.mxu0 %v2535
    %v2537 = vpop.f32.mrf.mxu0
    %v2538 = vadd.f32 %v1959, %v2537
    %v2539 = vpop.f32.mrf.mxu0
    %2540 = vmatprep.mubr.f32.mxu0 0.0
    %v2541 = vand.u32 %v276, 4294901760
    %v2542 = vsub.f32 %v276, %v2541
    %v2543 = vand.u32 %v2542, 4294901760
    %2544 = vmatmul.mubr.f32.gmra.mxu0 %v2543
    %v2545 = vpop.f32.mrf.mxu0
    %v2546 = vadd.f32 %v1966, %v2545
    %v2547 = vpop.f32.mrf.mxu0
    %2548 = vdwg.mxu0
    %2549 = vmatprep.subr.mxu0 0.0
    %2550 = vmatpush1.msra.mxu0 0.0
    %2551 = vmatprep.subr.mxu0 0.0
    %2552 = vmatpush1.msra.mxu0 0.0
    %2553 = vmatprep.subr.mxu0 0.0
    %2554 = vmatpush1.msra.mxu0 0.0
    %2555 = vmatprep.subr.mxu0 0.0
    %2556 = vmatpush1.msra.mxu0 0.0
    %2557 = vmatprep.subr.mxu0 0.0
    %2558 = vmatpush1.msra.mxu0 0.0
    %2559 = vmatprep.subr.mxu0 0.0
    %2560 = vmatpush1.msra.mxu0 0.0
    %2561 = vmatprep.subr.mxu0 0.0
    %2562 = vmatpush1.msra.mxu0 0.0
    %2563 = vmatprep.subr.mxu0 0.0
    %2564 = vmatpush1.msra.mxu0 0.0
    %2565 = vmatprep.subr.mxu0 0.0
    %2566 = vmatpush1.msra.mxu0 0.0
    %2567 = vmatprep.subr.mxu0 0.0
    %2568 = vmatpush1.msra.mxu0 0.0
    %2569 = vmatprep.subr.mxu0 0.0
    %2570 = vmatpush1.msra.mxu0 0.0
    %2571 = vmatprep.subr.mxu0 0.0
    %2572 = vmatpush1.msra.mxu0 0.0
    %2573 = vmatprep.subr.mxu0 0.0
    %2574 = vmatpush1.msra.mxu0 0.0
    %2575 = vmatprep.subr.mxu0 0.0
    %v2576 = vand.u32 %v84, 4294901760
    %v2577 = vsub.f32 %v84, %v2576
    %v2578 = vand.u32 %v2577, 4294901760
    %2579 = vmatpush1.msra.mxu0 %v2578
    %2580 = vmatprep.subr.mxu0 0.0
    %v2581 = vand.u32 %v83, 4294901760
    %v2582 = vsub.f32 %v83, %v2581
    %v2583 = vand.u32 %v2582, 4294901760
    %2584 = vmatpush1.msra.mxu0 %v2583
    %2585 = vmatprep.subr.mxu0 0.0
    %v2586 = vand.u32 %v82, 4294901760
    %v2587 = vsub.f32 %v82, %v2586
    %v2588 = vand.u32 %v2587, 4294901760
    %2589 = vmatpush1.msra.mxu0 %v2588
    %2590 = vmatprep.subr.mxu0 0.0
    %2591 = vmatpush2.msra.mxu0 0.0
    %2592 = vmatprep.subr.mxu0 0.0
    %2593 = vmatpush2.msra.mxu0 0.0
    %2594 = vmatprep.subr.mxu0 0.0
    %2595 = vmatpush2.msra.mxu0 0.0
    %2596 = vmatprep.subr.mxu0 0.0
    %2597 = vmatpush2.msra.mxu0 0.0
    %2598 = vmatprep.subr.mxu0 0.0
    %2599 = vmatpush2.msra.mxu0 0.0
    %2600 = vmatprep.subr.mxu0 0.0
    %2601 = vmatpush2.msra.mxu0 0.0
    %2602 = vmatprep.subr.mxu0 0.0
    %2603 = vmatpush2.msra.mxu0 0.0
    %2604 = vmatprep.subr.mxu0 0.0
    %2605 = vmatpush2.msra.mxu0 0.0
    %2606 = vmatprep.subr.mxu0 0.0
    %2607 = vmatpush2.msra.mxu0 0.0
    %2608 = vmatprep.subr.mxu0 0.0
    %2609 = vmatpush2.msra.mxu0 0.0
    %2610 = vmatprep.subr.mxu0 0.0
    %2611 = vmatpush2.msra.mxu0 0.0
    %2612 = vmatprep.subr.mxu0 0.0
    %2613 = vmatpush2.msra.mxu0 0.0
    %2614 = vmatprep.subr.mxu0 0.0
    %2615 = vmatpush2.msra.mxu0 0.0
    %2616 = vmatprep.subr.mxu0 0.0
    %2617 = vmatpush2.msra.mxu0 0.0
    %2618 = vmatprep.subr.mxu0 0.0
    %2619 = vmatpush2.msra.mxu0 0.0
    %2620 = vmatprep.subr.mxu0 0.0
    %2621 = vmatpush2.msra.mxu0 0.0
    %2622 = vmatprep.mubr.f32.mxu0 0.0
    %v2623 = vand.u32 %v87, 4294901760
    %2624 = vmatmul.mubr.f32.gmra.mxu0 %v2623
    %v2625 = vpop.f32.mrf.mxu0
    %v2626 = vadd.f32 %v2042, %v2625
    %v2627 = vpop.f32.mrf.mxu0
    %2628 = vmatprep.mubr.f32.mxu0 0.0
    %v2629 = vand.u32 %v90, 4294901760
    %2630 = vmatmul.mubr.f32.gmra.mxu0 %v2629
    %v2631 = vpop.f32.mrf.mxu0
    %v2632 = vadd.f32 %v2050, %v2631
    %v2633 = vpop.f32.mrf.mxu0
    %2634 = vmatprep.mubr.f32.mxu0 0.0
    %v2635 = vand.u32 %v93, 4294901760
    %2636 = vmatmul.mubr.f32.gmra.mxu0 %v2635
    %v2637 = vpop.f32.mrf.mxu0
    %v2638 = vadd.f32 %v2058, %v2637
    %v2639 = vpop.f32.mrf.mxu0
    %2640 = vmatprep.mubr.f32.mxu0 0.0
    %v2641 = vand.u32 %v96, 4294901760
    %2642 = vmatmul.mubr.f32.gmra.mxu0 %v2641
    %v2643 = vpop.f32.mrf.mxu0
    %v2644 = vadd.f32 %v2066, %v2643
    %v2645 = vpop.f32.mrf.mxu0
    %2646 = vmatprep.mubr.f32.mxu0 0.0
    %v2647 = vand.u32 %v99, 4294901760
    %2648 = vmatmul.mubr.f32.gmra.mxu0 %v2647
    %v2649 = vpop.f32.mrf.mxu0
    %v2650 = vadd.f32 %v2074, %v2649
    %v2651 = vpop.f32.mrf.mxu0
    %2652 = vmatprep.mubr.f32.mxu0 0.0
    %v2653 = vand.u32 %v102, 4294901760
    %2654 = vmatmul.mubr.f32.gmra.mxu0 %v2653
    %v2655 = vpop.f32.mrf.mxu0
    %v2656 = vadd.f32 %v2082, %v2655
    %v2657 = vpop.f32.mrf.mxu0
    %2658 = vmatprep.mubr.f32.mxu0 0.0
    %v2659 = vand.u32 %v105, 4294901760
    %2660 = vmatmul.mubr.f32.gmra.mxu0 %v2659
    %v2661 = vpop.f32.mrf.mxu0
    %v2662 = vadd.f32 %v2090, %v2661
    %v2663 = vpop.f32.mrf.mxu0
    %2664 = vmatprep.mubr.f32.mxu0 0.0
    %v2665 = vand.u32 %v108, 4294901760
    %2666 = vmatmul.mubr.f32.gmra.mxu0 %v2665
    %v2667 = vpop.f32.mrf.mxu0
    %v2668 = vadd.f32 %v2098, %v2667
    %v2669 = vpop.f32.mrf.mxu0
    %2670 = vmatprep.mubr.f32.mxu0 0.0
    %v2671 = vand.u32 %v111, 4294901760
    %2672 = vmatmul.mubr.f32.gmra.mxu0 %v2671
    %v2673 = vpop.f32.mrf.mxu0
    %v2674 = vadd.f32 %v2106, %v2673
    %v2675 = vpop.f32.mrf.mxu0
    %2676 = vmatprep.mubr.f32.mxu0 0.0
    %v2677 = vand.u32 %v114, 4294901760
    %2678 = vmatmul.mubr.f32.gmra.mxu0 %v2677
    %v2679 = vpop.f32.mrf.mxu0
    %v2680 = vadd.f32 %v2114, %v2679
    %v2681 = vpop.f32.mrf.mxu0
    %2682 = vmatprep.mubr.f32.mxu0 0.0
    %v2683 = vand.u32 %v117, 4294901760
    %2684 = vmatmul.mubr.f32.gmra.mxu0 %v2683
    %v2685 = vpop.f32.mrf.mxu0
    %v2686 = vadd.f32 %v2122, %v2685
    %v2687 = vpop.f32.mrf.mxu0
    %2688 = vmatprep.mubr.f32.mxu0 0.0
    %v2689 = vand.u32 %v120, 4294901760
    %2690 = vmatmul.mubr.f32.gmra.mxu0 %v2689
    %v2691 = vpop.f32.mrf.mxu0
    %v2692 = vadd.f32 %v2130, %v2691
    %v2693 = vpop.f32.mrf.mxu0
    %2694 = vmatprep.mubr.f32.mxu0 0.0
    %v2695 = vand.u32 %v123, 4294901760
    %2696 = vmatmul.mubr.f32.gmra.mxu0 %v2695
    %v2697 = vpop.f32.mrf.mxu0
    %v2698 = vadd.f32 %v2138, %v2697
    %v2699 = vpop.f32.mrf.mxu0
    %2700 = vmatprep.mubr.f32.mxu0 0.0
    %v2701 = vand.u32 %v126, 4294901760
    %2702 = vmatmul.mubr.f32.gmra.mxu0 %v2701
    %v2703 = vpop.f32.mrf.mxu0
    %v2704 = vadd.f32 %v2146, %v2703
    %v2705 = vpop.f32.mrf.mxu0
    %2706 = vmatprep.mubr.f32.mxu0 0.0
    %v2707 = vand.u32 %v129, 4294901760
    %2708 = vmatmul.mubr.f32.gmra.mxu0 %v2707
    %v2709 = vpop.f32.mrf.mxu0
    %v2710 = vadd.f32 %v2154, %v2709
    %v2711 = vpop.f32.mrf.mxu0
    %2712 = vmatprep.mubr.f32.mxu0 0.0
    %v2713 = vand.u32 %v132, 4294901760
    %2714 = vmatmul.mubr.f32.gmra.mxu0 %v2713
    %v2715 = vpop.f32.mrf.mxu0
    %v2716 = vadd.f32 %v2162, %v2715
    %v2717 = vpop.f32.mrf.mxu0
    %2718 = vmatprep.mubr.f32.mxu0 0.0
    %v2719 = vand.u32 %v135, 4294901760
    %2720 = vmatmul.mubr.f32.gmra.mxu0 %v2719
    %v2721 = vpop.f32.mrf.mxu0
    %v2722 = vadd.f32 %v2170, %v2721
    %v2723 = vpop.f32.mrf.mxu0
    %2724 = vmatprep.mubr.f32.mxu0 0.0
    %v2725 = vand.u32 %v138, 4294901760
    %2726 = vmatmul.mubr.f32.gmra.mxu0 %v2725
    %v2727 = vpop.f32.mrf.mxu0
    %v2728 = vadd.f32 %v2178, %v2727
    %v2729 = vpop.f32.mrf.mxu0
    %2730 = vmatprep.mubr.f32.mxu0 0.0
    %v2731 = vand.u32 %v141, 4294901760
    %2732 = vmatmul.mubr.f32.gmra.mxu0 %v2731
    %v2733 = vpop.f32.mrf.mxu0
    %v2734 = vadd.f32 %v2186, %v2733
    %v2735 = vpop.f32.mrf.mxu0
    %2736 = vmatprep.mubr.f32.mxu0 0.0
    %v2737 = vand.u32 %v144, 4294901760
    %2738 = vmatmul.mubr.f32.gmra.mxu0 %v2737
    %v2739 = vpop.f32.mrf.mxu0
    %v2740 = vadd.f32 %v2194, %v2739
    %v2741 = vpop.f32.mrf.mxu0
    %2742 = vmatprep.mubr.f32.mxu0 0.0
    %v2743 = vand.u32 %v147, 4294901760
    %2744 = vmatmul.mubr.f32.gmra.mxu0 %v2743
    %v2745 = vpop.f32.mrf.mxu0
    %v2746 = vadd.f32 %v2202, %v2745
    %v2747 = vpop.f32.mrf.mxu0
    %2748 = vmatprep.mubr.f32.mxu0 0.0
    %v2749 = vand.u32 %v150, 4294901760
    %2750 = vmatmul.mubr.f32.gmra.mxu0 %v2749
    %v2751 = vpop.f32.mrf.mxu0
    %v2752 = vadd.f32 %v2210, %v2751
    %v2753 = vpop.f32.mrf.mxu0
    %2754 = vmatprep.mubr.f32.mxu0 0.0
    %v2755 = vand.u32 %v153, 4294901760
    %2756 = vmatmul.mubr.f32.gmra.mxu0 %v2755
    %v2757 = vpop.f32.mrf.mxu0
    %v2758 = vadd.f32 %v2218, %v2757
    %v2759 = vpop.f32.mrf.mxu0
    %2760 = vmatprep.mubr.f32.mxu0 0.0
    %v2761 = vand.u32 %v156, 4294901760
    %2762 = vmatmul.mubr.f32.gmra.mxu0 %v2761
    %v2763 = vpop.f32.mrf.mxu0
    %v2764 = vadd.f32 %v2226, %v2763
    %v2765 = vpop.f32.mrf.mxu0
    %2766 = vmatprep.mubr.f32.mxu0 0.0
    %v2767 = vand.u32 %v159, 4294901760
    %2768 = vmatmul.mubr.f32.gmra.mxu0 %v2767
    %v2769 = vpop.f32.mrf.mxu0
    %v2770 = vadd.f32 %v2234, %v2769
    %v2771 = vpop.f32.mrf.mxu0
    %2772 = vmatprep.mubr.f32.mxu0 0.0
    %v2773 = vand.u32 %v162, 4294901760
    %2774 = vmatmul.mubr.f32.gmra.mxu0 %v2773
    %v2775 = vpop.f32.mrf.mxu0
    %v2776 = vadd.f32 %v2242, %v2775
    %v2777 = vpop.f32.mrf.mxu0
    %2778 = vmatprep.mubr.f32.mxu0 0.0
    %v2779 = vand.u32 %v165, 4294901760
    %2780 = vmatmul.mubr.f32.gmra.mxu0 %v2779
    %v2781 = vpop.f32.mrf.mxu0
    %v2782 = vadd.f32 %v2250, %v2781
    %v2783 = vpop.f32.mrf.mxu0
    %2784 = vmatprep.mubr.f32.mxu0 0.0
    %v2785 = vand.u32 %v168, 4294901760
    %2786 = vmatmul.mubr.f32.gmra.mxu0 %v2785
    %v2787 = vpop.f32.mrf.mxu0
    %v2788 = vadd.f32 %v2258, %v2787
    %v2789 = vpop.f32.mrf.mxu0
    %2790 = vmatprep.mubr.f32.mxu0 0.0
    %v2791 = vand.u32 %v171, 4294901760
    %2792 = vmatmul.mubr.f32.gmra.mxu0 %v2791
    %v2793 = vpop.f32.mrf.mxu0
    %v2794 = vadd.f32 %v2266, %v2793
    %v2795 = vpop.f32.mrf.mxu0
    %2796 = vmatprep.mubr.f32.mxu0 0.0
    %v2797 = vand.u32 %v174, 4294901760
    %2798 = vmatmul.mubr.f32.gmra.mxu0 %v2797
    %v2799 = vpop.f32.mrf.mxu0
    %v2800 = vadd.f32 %v2274, %v2799
    %v2801 = vpop.f32.mrf.mxu0
    %2802 = vmatprep.mubr.f32.mxu0 0.0
    %v2803 = vand.u32 %v177, 4294901760
    %2804 = vmatmul.mubr.f32.gmra.mxu0 %v2803
    %v2805 = vpop.f32.mrf.mxu0
    %v2806 = vadd.f32 %v2282, %v2805
    %v2807 = vpop.f32.mrf.mxu0
    %2808 = vmatprep.mubr.f32.mxu0 0.0
    %v2809 = vand.u32 %v180, 4294901760
    %2810 = vmatmul.mubr.f32.gmra.mxu0 %v2809
    %v2811 = vpop.f32.mrf.mxu0
    %v2812 = vadd.f32 %v2290, %v2811
    %v2813 = vpop.f32.mrf.mxu0
    %2814 = vmatprep.mubr.f32.mxu0 0.0
    %v2815 = vand.u32 %v183, 4294901760
    %2816 = vmatmul.mubr.f32.gmra.mxu0 %v2815
    %v2817 = vpop.f32.mrf.mxu0
    %v2818 = vadd.f32 %v2298, %v2817
    %v2819 = vpop.f32.mrf.mxu0
    %2820 = vmatprep.mubr.f32.mxu0 0.0
    %v2821 = vand.u32 %v186, 4294901760
    %2822 = vmatmul.mubr.f32.gmra.mxu0 %v2821
    %v2823 = vpop.f32.mrf.mxu0
    %v2824 = vadd.f32 %v2306, %v2823
    %v2825 = vpop.f32.mrf.mxu0
    %2826 = vmatprep.mubr.f32.mxu0 0.0
    %v2827 = vand.u32 %v189, 4294901760
    %2828 = vmatmul.mubr.f32.gmra.mxu0 %v2827
    %v2829 = vpop.f32.mrf.mxu0
    %v2830 = vadd.f32 %v2314, %v2829
    %v2831 = vpop.f32.mrf.mxu0
    %2832 = vmatprep.mubr.f32.mxu0 0.0
    %v2833 = vand.u32 %v192, 4294901760
    %2834 = vmatmul.mubr.f32.gmra.mxu0 %v2833
    %v2835 = vpop.f32.mrf.mxu0
    %v2836 = vadd.f32 %v2322, %v2835
    %v2837 = vpop.f32.mrf.mxu0
    %2838 = vmatprep.mubr.f32.mxu0 0.0
    %v2839 = vand.u32 %v195, 4294901760
    %2840 = vmatmul.mubr.f32.gmra.mxu0 %v2839
    %v2841 = vpop.f32.mrf.mxu0
    %v2842 = vadd.f32 %v2330, %v2841
    %v2843 = vpop.f32.mrf.mxu0
    %2844 = vmatprep.mubr.f32.mxu0 0.0
    %v2845 = vand.u32 %v198, 4294901760
    %2846 = vmatmul.mubr.f32.gmra.mxu0 %v2845
    %v2847 = vpop.f32.mrf.mxu0
    %v2848 = vadd.f32 %v2338, %v2847
    %v2849 = vpop.f32.mrf.mxu0
    %2850 = vmatprep.mubr.f32.mxu0 0.0
    %v2851 = vand.u32 %v201, 4294901760
    %2852 = vmatmul.mubr.f32.gmra.mxu0 %v2851
    %v2853 = vpop.f32.mrf.mxu0
    %v2854 = vadd.f32 %v2346, %v2853
    %v2855 = vpop.f32.mrf.mxu0
    %2856 = vmatprep.mubr.f32.mxu0 0.0
    %v2857 = vand.u32 %v204, 4294901760
    %2858 = vmatmul.mubr.f32.gmra.mxu0 %v2857
    %v2859 = vpop.f32.mrf.mxu0
    %v2860 = vadd.f32 %v2354, %v2859
    %v2861 = vpop.f32.mrf.mxu0
    %2862 = vmatprep.mubr.f32.mxu0 0.0
    %v2863 = vand.u32 %v207, 4294901760
    %2864 = vmatmul.mubr.f32.gmra.mxu0 %v2863
    %v2865 = vpop.f32.mrf.mxu0
    %v2866 = vadd.f32 %v2362, %v2865
    %v2867 = vpop.f32.mrf.mxu0
    %2868 = vmatprep.mubr.f32.mxu0 0.0
    %v2869 = vand.u32 %v210, 4294901760
    %2870 = vmatmul.mubr.f32.gmra.mxu0 %v2869
    %v2871 = vpop.f32.mrf.mxu0
    %v2872 = vadd.f32 %v2370, %v2871
    %v2873 = vpop.f32.mrf.mxu0
    %2874 = vmatprep.mubr.f32.mxu0 0.0
    %v2875 = vand.u32 %v213, 4294901760
    %2876 = vmatmul.mubr.f32.gmra.mxu0 %v2875
    %v2877 = vpop.f32.mrf.mxu0
    %v2878 = vadd.f32 %v2378, %v2877
    %v2879 = vpop.f32.mrf.mxu0
    %2880 = vmatprep.mubr.f32.mxu0 0.0
    %v2881 = vand.u32 %v216, 4294901760
    %2882 = vmatmul.mubr.f32.gmra.mxu0 %v2881
    %v2883 = vpop.f32.mrf.mxu0
    %v2884 = vadd.f32 %v2386, %v2883
    %v2885 = vpop.f32.mrf.mxu0
    %2886 = vmatprep.mubr.f32.mxu0 0.0
    %v2887 = vand.u32 %v219, 4294901760
    %2888 = vmatmul.mubr.f32.gmra.mxu0 %v2887
    %v2889 = vpop.f32.mrf.mxu0
    %v2890 = vadd.f32 %v2394, %v2889
    %v2891 = vpop.f32.mrf.mxu0
    %2892 = vmatprep.mubr.f32.mxu0 0.0
    %v2893 = vand.u32 %v222, 4294901760
    %2894 = vmatmul.mubr.f32.gmra.mxu0 %v2893
    %v2895 = vpop.f32.mrf.mxu0
    %v2896 = vadd.f32 %v2402, %v2895
    %v2897 = vpop.f32.mrf.mxu0
    %2898 = vmatprep.mubr.f32.mxu0 0.0
    %v2899 = vand.u32 %v225, 4294901760
    %2900 = vmatmul.mubr.f32.gmra.mxu0 %v2899
    %v2901 = vpop.f32.mrf.mxu0
    %v2902 = vadd.f32 %v2410, %v2901
    %v2903 = vpop.f32.mrf.mxu0
    %2904 = vmatprep.mubr.f32.mxu0 0.0
    %v2905 = vand.u32 %v228, 4294901760
    %2906 = vmatmul.mubr.f32.gmra.mxu0 %v2905
    %v2907 = vpop.f32.mrf.mxu0
    %v2908 = vadd.f32 %v2418, %v2907
    %v2909 = vpop.f32.mrf.mxu0
    %2910 = vmatprep.mubr.f32.mxu0 0.0
    %v2911 = vand.u32 %v231, 4294901760
    %2912 = vmatmul.mubr.f32.gmra.mxu0 %v2911
    %v2913 = vpop.f32.mrf.mxu0
    %v2914 = vadd.f32 %v2426, %v2913
    %v2915 = vpop.f32.mrf.mxu0
    %2916 = vmatprep.mubr.f32.mxu0 0.0
    %v2917 = vand.u32 %v234, 4294901760
    %2918 = vmatmul.mubr.f32.gmra.mxu0 %v2917
    %v2919 = vpop.f32.mrf.mxu0
    %v2920 = vadd.f32 %v2434, %v2919
    %v2921 = vpop.f32.mrf.mxu0
    %2922 = vmatprep.mubr.f32.mxu0 0.0
    %v2923 = vand.u32 %v237, 4294901760
    %2924 = vmatmul.mubr.f32.gmra.mxu0 %v2923
    %v2925 = vpop.f32.mrf.mxu0
    %v2926 = vadd.f32 %v2442, %v2925
    %v2927 = vpop.f32.mrf.mxu0
    %2928 = vmatprep.mubr.f32.mxu0 0.0
    %v2929 = vand.u32 %v240, 4294901760
    %2930 = vmatmul.mubr.f32.gmra.mxu0 %v2929
    %v2931 = vpop.f32.mrf.mxu0
    %v2932 = vadd.f32 %v2450, %v2931
    %v2933 = vpop.f32.mrf.mxu0
    %2934 = vmatprep.mubr.f32.mxu0 0.0
    %v2935 = vand.u32 %v243, 4294901760
    %2936 = vmatmul.mubr.f32.gmra.mxu0 %v2935
    %v2937 = vpop.f32.mrf.mxu0
    %v2938 = vadd.f32 %v2458, %v2937
    %v2939 = vpop.f32.mrf.mxu0
    %2940 = vmatprep.mubr.f32.mxu0 0.0
    %v2941 = vand.u32 %v246, 4294901760
    %2942 = vmatmul.mubr.f32.gmra.mxu0 %v2941
    %v2943 = vpop.f32.mrf.mxu0
    %v2944 = vadd.f32 %v2466, %v2943
    %v2945 = vpop.f32.mrf.mxu0
    %2946 = vmatprep.mubr.f32.mxu0 0.0
    %v2947 = vand.u32 %v249, 4294901760
    %2948 = vmatmul.mubr.f32.gmra.mxu0 %v2947
    %v2949 = vpop.f32.mrf.mxu0
    %v2950 = vadd.f32 %v2474, %v2949
    %v2951 = vpop.f32.mrf.mxu0
    %2952 = vmatprep.mubr.f32.mxu0 0.0
    %v2953 = vand.u32 %v252, 4294901760
    %2954 = vmatmul.mubr.f32.gmra.mxu0 %v2953
    %v2955 = vpop.f32.mrf.mxu0
    %v2956 = vadd.f32 %v2482, %v2955
    %v2957 = vpop.f32.mrf.mxu0
    %2958 = vmatprep.mubr.f32.mxu0 0.0
    %v2959 = vand.u32 %v255, 4294901760
    %2960 = vmatmul.mubr.f32.gmra.mxu0 %v2959
    %v2961 = vpop.f32.mrf.mxu0
    %v2962 = vadd.f32 %v2490, %v2961
    %v2963 = vpop.f32.mrf.mxu0
    %2964 = vmatprep.mubr.f32.mxu0 0.0
    %v2965 = vand.u32 %v258, 4294901760
    %2966 = vmatmul.mubr.f32.gmra.mxu0 %v2965
    %v2967 = vpop.f32.mrf.mxu0
    %v2968 = vadd.f32 %v2498, %v2967
    %v2969 = vpop.f32.mrf.mxu0
    %2970 = vmatprep.mubr.f32.mxu0 0.0
    %v2971 = vand.u32 %v261, 4294901760
    %2972 = vmatmul.mubr.f32.gmra.mxu0 %v2971
    %v2973 = vpop.f32.mrf.mxu0
    %v2974 = vadd.f32 %v2506, %v2973
    %v2975 = vpop.f32.mrf.mxu0
    %2976 = vmatprep.mubr.f32.mxu0 0.0
    %v2977 = vand.u32 %v264, 4294901760
    %2978 = vmatmul.mubr.f32.gmra.mxu0 %v2977
    %v2979 = vpop.f32.mrf.mxu0
    %v2980 = vadd.f32 %v2514, %v2979
    %v2981 = vpop.f32.mrf.mxu0
    %2982 = vmatprep.mubr.f32.mxu0 0.0
    %v2983 = vand.u32 %v267, 4294901760
    %2984 = vmatmul.mubr.f32.gmra.mxu0 %v2983
    %v2985 = vpop.f32.mrf.mxu0
    %v2986 = vadd.f32 %v2522, %v2985
    %v2987 = vpop.f32.mrf.mxu0
    %2988 = vmatprep.mubr.f32.mxu0 0.0
    %v2989 = vand.u32 %v270, 4294901760
    %2990 = vmatmul.mubr.f32.gmra.mxu0 %v2989
    %v2991 = vpop.f32.mrf.mxu0
    %v2992 = vadd.f32 %v2530, %v2991
    %v2993 = vpop.f32.mrf.mxu0
    %2994 = vmatprep.mubr.f32.mxu0 0.0
    %v2995 = vand.u32 %v273, 4294901760
    %2996 = vmatmul.mubr.f32.gmra.mxu0 %v2995
    %v2997 = vpop.f32.mrf.mxu0
    %v2998 = vadd.f32 %v2538, %v2997
    %v2999 = vpop.f32.mrf.mxu0
    %3000 = vmatprep.mubr.f32.mxu0 0.0
    %v3001 = vand.u32 %v276, 4294901760
    %3002 = vmatmul.mubr.f32.gmra.mxu0 %v3001
    %v3003 = vpop.f32.mrf.mxu0
    %v3004 = vadd.f32 %v2546, %v3003
    %v3005 = vpop.f32.mrf.mxu0
    %3006 = vdwg.mxu0
    %3007 = vmatprep.subr.mxu0 0.0
    %3008 = vmatpush1.msra.mxu0 0.0
    %3009 = vmatprep.subr.mxu0 0.0
    %3010 = vmatpush1.msra.mxu0 0.0
    %3011 = vmatprep.subr.mxu0 0.0
    %3012 = vmatpush1.msra.mxu0 0.0
    %3013 = vmatprep.subr.mxu0 0.0
    %3014 = vmatpush1.msra.mxu0 0.0
    %3015 = vmatprep.subr.mxu0 0.0
    %3016 = vmatpush1.msra.mxu0 0.0
    %3017 = vmatprep.subr.mxu0 0.0
    %3018 = vmatpush1.msra.mxu0 0.0
    %3019 = vmatprep.subr.mxu0 0.0
    %3020 = vmatpush1.msra.mxu0 0.0
    %3021 = vmatprep.subr.mxu0 0.0
    %3022 = vmatpush1.msra.mxu0 0.0
    %3023 = vmatprep.subr.mxu0 0.0
    %3024 = vmatpush1.msra.mxu0 0.0
    %3025 = vmatprep.subr.mxu0 0.0
    %3026 = vmatpush1.msra.mxu0 0.0
    %3027 = vmatprep.subr.mxu0 0.0
    %3028 = vmatpush1.msra.mxu0 0.0
    %3029 = vmatprep.subr.mxu0 0.0
    %3030 = vmatpush1.msra.mxu0 0.0
    %3031 = vmatprep.subr.mxu0 0.0
    %3032 = vmatpush1.msra.mxu0 0.0
    %3033 = vmatprep.subr.mxu0 0.0
    %v3034 = vand.u32 %v84, 4294901760
    %3035 = vmatpush1.msra.mxu0 %v3034
    %3036 = vmatprep.subr.mxu0 0.0
    %v3037 = vand.u32 %v83, 4294901760
    %3038 = vmatpush1.msra.mxu0 %v3037
    %3039 = vmatprep.subr.mxu0 0.0
    %v3040 = vand.u32 %v82, 4294901760
    %3041 = vmatpush1.msra.mxu0 %v3040
    %3042 = vmatprep.subr.mxu0 0.0
    %3043 = vmatpush2.msra.mxu0 0.0
    %3044 = vmatprep.subr.mxu0 0.0
    %3045 = vmatpush2.msra.mxu0 0.0
    %3046 = vmatprep.subr.mxu0 0.0
    %3047 = vmatpush2.msra.mxu0 0.0
    %3048 = vmatprep.subr.mxu0 0.0
    %3049 = vmatpush2.msra.mxu0 0.0
    %3050 = vmatprep.subr.mxu0 0.0
    %3051 = vmatpush2.msra.mxu0 0.0
    %3052 = vmatprep.subr.mxu0 0.0
    %3053 = vmatpush2.msra.mxu0 0.0
    %3054 = vmatprep.subr.mxu0 0.0
    %3055 = vmatpush2.msra.mxu0 0.0
    %3056 = vmatprep.subr.mxu0 0.0
    %3057 = vmatpush2.msra.mxu0 0.0
    %3058 = vmatprep.subr.mxu0 0.0
    %3059 = vmatpush2.msra.mxu0 0.0
    %3060 = vmatprep.subr.mxu0 0.0
    %3061 = vmatpush2.msra.mxu0 0.0
    %3062 = vmatprep.subr.mxu0 0.0
    %3063 = vmatpush2.msra.mxu0 0.0
    %3064 = vmatprep.subr.mxu0 0.0
    %3065 = vmatpush2.msra.mxu0 0.0
    %3066 = vmatprep.subr.mxu0 0.0
    %3067 = vmatpush2.msra.mxu0 0.0
    %3068 = vmatprep.subr.mxu0 0.0
    %3069 = vmatpush2.msra.mxu0 0.0
    %3070 = vmatprep.subr.mxu0 0.0
    %3071 = vmatpush2.msra.mxu0 0.0
    %3072 = vmatprep.subr.mxu0 0.0
    %3073 = vmatpush2.msra.mxu0 0.0
    %3074 = vmatprep.mubr.f32.mxu0 0.0
    %v3075 = vand.u32 %v87, 4294901760
    %3076 = vmatmul.mubr.f32.gmra.mxu0 %v3075
    %v3077 = vpop.f32.mrf.mxu0
    %v3078 = vadd.f32 %v2626, %v3077
    %v3079 = vpop.f32.mrf.mxu0
    %3080 = vmatprep.mubr.f32.mxu0 0.0
    %v3081 = vand.u32 %v90, 4294901760
    %3082 = vmatmul.mubr.f32.gmra.mxu0 %v3081
    %v3083 = vpop.f32.mrf.mxu0
    %v3084 = vadd.f32 %v2632, %v3083
    %v3085 = vpop.f32.mrf.mxu0
    %3086 = vmatprep.mubr.f32.mxu0 0.0
    %v3087 = vand.u32 %v93, 4294901760
    %3088 = vmatmul.mubr.f32.gmra.mxu0 %v3087
    %v3089 = vpop.f32.mrf.mxu0
    %v3090 = vadd.f32 %v2638, %v3089
    %v3091 = vpop.f32.mrf.mxu0
    %3092 = vmatprep.mubr.f32.mxu0 0.0
    %v3093 = vand.u32 %v96, 4294901760
    %3094 = vmatmul.mubr.f32.gmra.mxu0 %v3093
    %v3095 = vpop.f32.mrf.mxu0
    %v3096 = vadd.f32 %v2644, %v3095
    %v3097 = vpop.f32.mrf.mxu0
    %3098 = vmatprep.mubr.f32.mxu0 0.0
    %v3099 = vand.u32 %v99, 4294901760
    %3100 = vmatmul.mubr.f32.gmra.mxu0 %v3099
    %v3101 = vpop.f32.mrf.mxu0
    %v3102 = vadd.f32 %v2650, %v3101
    %v3103 = vpop.f32.mrf.mxu0
    %3104 = vmatprep.mubr.f32.mxu0 0.0
    %v3105 = vand.u32 %v102, 4294901760
    %3106 = vmatmul.mubr.f32.gmra.mxu0 %v3105
    %v3107 = vpop.f32.mrf.mxu0
    %v3108 = vadd.f32 %v2656, %v3107
    %v3109 = vpop.f32.mrf.mxu0
    %3110 = vmatprep.mubr.f32.mxu0 0.0
    %v3111 = vand.u32 %v105, 4294901760
    %3112 = vmatmul.mubr.f32.gmra.mxu0 %v3111
    %v3113 = vpop.f32.mrf.mxu0
    %v3114 = vadd.f32 %v2662, %v3113
    %v3115 = vpop.f32.mrf.mxu0
    %3116 = vmatprep.mubr.f32.mxu0 0.0
    %v3117 = vand.u32 %v108, 4294901760
    %3118 = vmatmul.mubr.f32.gmra.mxu0 %v3117
    %v3119 = vpop.f32.mrf.mxu0
    %v3120 = vadd.f32 %v2668, %v3119
    %v3121 = vpop.f32.mrf.mxu0
    %3122 = vmatprep.mubr.f32.mxu0 0.0
    %v3123 = vand.u32 %v111, 4294901760
    %3124 = vmatmul.mubr.f32.gmra.mxu0 %v3123
    %v3125 = vpop.f32.mrf.mxu0
    %v3126 = vadd.f32 %v2674, %v3125
    %v3127 = vpop.f32.mrf.mxu0
    %3128 = vmatprep.mubr.f32.mxu0 0.0
    %v3129 = vand.u32 %v114, 4294901760
    %3130 = vmatmul.mubr.f32.gmra.mxu0 %v3129
    %v3131 = vpop.f32.mrf.mxu0
    %v3132 = vadd.f32 %v2680, %v3131
    %v3133 = vpop.f32.mrf.mxu0
    %3134 = vmatprep.mubr.f32.mxu0 0.0
    %v3135 = vand.u32 %v117, 4294901760
    %3136 = vmatmul.mubr.f32.gmra.mxu0 %v3135
    %v3137 = vpop.f32.mrf.mxu0
    %v3138 = vadd.f32 %v2686, %v3137
    %v3139 = vpop.f32.mrf.mxu0
    %3140 = vmatprep.mubr.f32.mxu0 0.0
    %v3141 = vand.u32 %v120, 4294901760
    %3142 = vmatmul.mubr.f32.gmra.mxu0 %v3141
    %v3143 = vpop.f32.mrf.mxu0
    %v3144 = vadd.f32 %v2692, %v3143
    %v3145 = vpop.f32.mrf.mxu0
    %3146 = vmatprep.mubr.f32.mxu0 0.0
    %v3147 = vand.u32 %v123, 4294901760
    %3148 = vmatmul.mubr.f32.gmra.mxu0 %v3147
    %v3149 = vpop.f32.mrf.mxu0
    %v3150 = vadd.f32 %v2698, %v3149
    %v3151 = vpop.f32.mrf.mxu0
    %3152 = vmatprep.mubr.f32.mxu0 0.0
    %v3153 = vand.u32 %v126, 4294901760
    %3154 = vmatmul.mubr.f32.gmra.mxu0 %v3153
    %v3155 = vpop.f32.mrf.mxu0
    %v3156 = vadd.f32 %v2704, %v3155
    %v3157 = vpop.f32.mrf.mxu0
    %3158 = vmatprep.mubr.f32.mxu0 0.0
    %v3159 = vand.u32 %v129, 4294901760
    %3160 = vmatmul.mubr.f32.gmra.mxu0 %v3159
    %v3161 = vpop.f32.mrf.mxu0
    %v3162 = vadd.f32 %v2710, %v3161
    %v3163 = vpop.f32.mrf.mxu0
    %3164 = vmatprep.mubr.f32.mxu0 0.0
    %v3165 = vand.u32 %v132, 4294901760
    %3166 = vmatmul.mubr.f32.gmra.mxu0 %v3165
    %v3167 = vpop.f32.mrf.mxu0
    %v3168 = vadd.f32 %v2716, %v3167
    %v3169 = vpop.f32.mrf.mxu0
    %3170 = vmatprep.mubr.f32.mxu0 0.0
    %v3171 = vand.u32 %v135, 4294901760
    %3172 = vmatmul.mubr.f32.gmra.mxu0 %v3171
    %v3173 = vpop.f32.mrf.mxu0
    %v3174 = vadd.f32 %v2722, %v3173
    %v3175 = vpop.f32.mrf.mxu0
    %3176 = vmatprep.mubr.f32.mxu0 0.0
    %v3177 = vand.u32 %v138, 4294901760
    %3178 = vmatmul.mubr.f32.gmra.mxu0 %v3177
    %v3179 = vpop.f32.mrf.mxu0
    %v3180 = vadd.f32 %v2728, %v3179
    %v3181 = vpop.f32.mrf.mxu0
    %3182 = vmatprep.mubr.f32.mxu0 0.0
    %v3183 = vand.u32 %v141, 4294901760
    %3184 = vmatmul.mubr.f32.gmra.mxu0 %v3183
    %v3185 = vpop.f32.mrf.mxu0
    %v3186 = vadd.f32 %v2734, %v3185
    %v3187 = vpop.f32.mrf.mxu0
    %3188 = vmatprep.mubr.f32.mxu0 0.0
    %v3189 = vand.u32 %v144, 4294901760
    %3190 = vmatmul.mubr.f32.gmra.mxu0 %v3189
    %v3191 = vpop.f32.mrf.mxu0
    %v3192 = vadd.f32 %v2740, %v3191
    %v3193 = vpop.f32.mrf.mxu0
    %3194 = vmatprep.mubr.f32.mxu0 0.0
    %v3195 = vand.u32 %v147, 4294901760
    %3196 = vmatmul.mubr.f32.gmra.mxu0 %v3195
    %v3197 = vpop.f32.mrf.mxu0
    %v3198 = vadd.f32 %v2746, %v3197
    %v3199 = vpop.f32.mrf.mxu0
    %3200 = vmatprep.mubr.f32.mxu0 0.0
    %v3201 = vand.u32 %v150, 4294901760
    %3202 = vmatmul.mubr.f32.gmra.mxu0 %v3201
    %v3203 = vpop.f32.mrf.mxu0
    %v3204 = vadd.f32 %v2752, %v3203
    %v3205 = vpop.f32.mrf.mxu0
    %3206 = vmatprep.mubr.f32.mxu0 0.0
    %v3207 = vand.u32 %v153, 4294901760
    %3208 = vmatmul.mubr.f32.gmra.mxu0 %v3207
    %v3209 = vpop.f32.mrf.mxu0
    %v3210 = vadd.f32 %v2758, %v3209
    %v3211 = vpop.f32.mrf.mxu0
    %3212 = vmatprep.mubr.f32.mxu0 0.0
    %v3213 = vand.u32 %v156, 4294901760
    %3214 = vmatmul.mubr.f32.gmra.mxu0 %v3213
    %v3215 = vpop.f32.mrf.mxu0
    %v3216 = vadd.f32 %v2764, %v3215
    %v3217 = vpop.f32.mrf.mxu0
    %3218 = vmatprep.mubr.f32.mxu0 0.0
    %v3219 = vand.u32 %v159, 4294901760
    %3220 = vmatmul.mubr.f32.gmra.mxu0 %v3219
    %v3221 = vpop.f32.mrf.mxu0
    %v3222 = vadd.f32 %v2770, %v3221
    %v3223 = vpop.f32.mrf.mxu0
    %3224 = vmatprep.mubr.f32.mxu0 0.0
    %v3225 = vand.u32 %v162, 4294901760
    %3226 = vmatmul.mubr.f32.gmra.mxu0 %v3225
    %v3227 = vpop.f32.mrf.mxu0
    %v3228 = vadd.f32 %v2776, %v3227
    %v3229 = vpop.f32.mrf.mxu0
    %3230 = vmatprep.mubr.f32.mxu0 0.0
    %v3231 = vand.u32 %v165, 4294901760
    %3232 = vmatmul.mubr.f32.gmra.mxu0 %v3231
    %v3233 = vpop.f32.mrf.mxu0
    %v3234 = vadd.f32 %v2782, %v3233
    %v3235 = vpop.f32.mrf.mxu0
    %3236 = vmatprep.mubr.f32.mxu0 0.0
    %v3237 = vand.u32 %v168, 4294901760
    %3238 = vmatmul.mubr.f32.gmra.mxu0 %v3237
    %v3239 = vpop.f32.mrf.mxu0
    %v3240 = vadd.f32 %v2788, %v3239
    %v3241 = vpop.f32.mrf.mxu0
    %3242 = vmatprep.mubr.f32.mxu0 0.0
    %v3243 = vand.u32 %v171, 4294901760
    %3244 = vmatmul.mubr.f32.gmra.mxu0 %v3243
    %v3245 = vpop.f32.mrf.mxu0
    %v3246 = vadd.f32 %v2794, %v3245
    %v3247 = vpop.f32.mrf.mxu0
    %3248 = vmatprep.mubr.f32.mxu0 0.0
    %v3249 = vand.u32 %v174, 4294901760
    %3250 = vmatmul.mubr.f32.gmra.mxu0 %v3249
    %v3251 = vpop.f32.mrf.mxu0
    %v3252 = vadd.f32 %v2800, %v3251
    %v3253 = vpop.f32.mrf.mxu0
    %3254 = vmatprep.mubr.f32.mxu0 0.0
    %v3255 = vand.u32 %v177, 4294901760
    %3256 = vmatmul.mubr.f32.gmra.mxu0 %v3255
    %v3257 = vpop.f32.mrf.mxu0
    %v3258 = vadd.f32 %v2806, %v3257
    %v3259 = vpop.f32.mrf.mxu0
    %3260 = vmatprep.mubr.f32.mxu0 0.0
    %v3261 = vand.u32 %v180, 4294901760
    %3262 = vmatmul.mubr.f32.gmra.mxu0 %v3261
    %v3263 = vpop.f32.mrf.mxu0
    %v3264 = vadd.f32 %v2812, %v3263
    %v3265 = vpop.f32.mrf.mxu0
    %3266 = vmatprep.mubr.f32.mxu0 0.0
    %v3267 = vand.u32 %v183, 4294901760
    %3268 = vmatmul.mubr.f32.gmra.mxu0 %v3267
    %v3269 = vpop.f32.mrf.mxu0
    %v3270 = vadd.f32 %v2818, %v3269
    %v3271 = vpop.f32.mrf.mxu0
    %3272 = vmatprep.mubr.f32.mxu0 0.0
    %v3273 = vand.u32 %v186, 4294901760
    %3274 = vmatmul.mubr.f32.gmra.mxu0 %v3273
    %v3275 = vpop.f32.mrf.mxu0
    %v3276 = vadd.f32 %v2824, %v3275
    %v3277 = vpop.f32.mrf.mxu0
    %3278 = vmatprep.mubr.f32.mxu0 0.0
    %v3279 = vand.u32 %v189, 4294901760
    %3280 = vmatmul.mubr.f32.gmra.mxu0 %v3279
    %v3281 = vpop.f32.mrf.mxu0
    %v3282 = vadd.f32 %v2830, %v3281
    %v3283 = vpop.f32.mrf.mxu0
    %3284 = vmatprep.mubr.f32.mxu0 0.0
    %v3285 = vand.u32 %v192, 4294901760
    %3286 = vmatmul.mubr.f32.gmra.mxu0 %v3285
    %v3287 = vpop.f32.mrf.mxu0
    %v3288 = vadd.f32 %v2836, %v3287
    %v3289 = vpop.f32.mrf.mxu0
    %3290 = vmatprep.mubr.f32.mxu0 0.0
    %v3291 = vand.u32 %v195, 4294901760
    %3292 = vmatmul.mubr.f32.gmra.mxu0 %v3291
    %v3293 = vpop.f32.mrf.mxu0
    %v3294 = vadd.f32 %v2842, %v3293
    %v3295 = vpop.f32.mrf.mxu0
    %3296 = vmatprep.mubr.f32.mxu0 0.0
    %v3297 = vand.u32 %v198, 4294901760
    %3298 = vmatmul.mubr.f32.gmra.mxu0 %v3297
    %v3299 = vpop.f32.mrf.mxu0
    %v3300 = vadd.f32 %v2848, %v3299
    %v3301 = vpop.f32.mrf.mxu0
    %3302 = vmatprep.mubr.f32.mxu0 0.0
    %v3303 = vand.u32 %v201, 4294901760
    %3304 = vmatmul.mubr.f32.gmra.mxu0 %v3303
    %v3305 = vpop.f32.mrf.mxu0
    %v3306 = vadd.f32 %v2854, %v3305
    %v3307 = vpop.f32.mrf.mxu0
    %3308 = vmatprep.mubr.f32.mxu0 0.0
    %v3309 = vand.u32 %v204, 4294901760
    %3310 = vmatmul.mubr.f32.gmra.mxu0 %v3309
    %v3311 = vpop.f32.mrf.mxu0
    %v3312 = vadd.f32 %v2860, %v3311
    %v3313 = vpop.f32.mrf.mxu0
    %3314 = vmatprep.mubr.f32.mxu0 0.0
    %v3315 = vand.u32 %v207, 4294901760
    %3316 = vmatmul.mubr.f32.gmra.mxu0 %v3315
    %v3317 = vpop.f32.mrf.mxu0
    %v3318 = vadd.f32 %v2866, %v3317
    %v3319 = vpop.f32.mrf.mxu0
    %3320 = vmatprep.mubr.f32.mxu0 0.0
    %v3321 = vand.u32 %v210, 4294901760
    %3322 = vmatmul.mubr.f32.gmra.mxu0 %v3321
    %v3323 = vpop.f32.mrf.mxu0
    %v3324 = vadd.f32 %v2872, %v3323
    %v3325 = vpop.f32.mrf.mxu0
    %3326 = vmatprep.mubr.f32.mxu0 0.0
    %v3327 = vand.u32 %v213, 4294901760
    %3328 = vmatmul.mubr.f32.gmra.mxu0 %v3327
    %v3329 = vpop.f32.mrf.mxu0
    %v3330 = vadd.f32 %v2878, %v3329
    %v3331 = vpop.f32.mrf.mxu0
    %3332 = vmatprep.mubr.f32.mxu0 0.0
    %v3333 = vand.u32 %v216, 4294901760
    %3334 = vmatmul.mubr.f32.gmra.mxu0 %v3333
    %v3335 = vpop.f32.mrf.mxu0
    %v3336 = vadd.f32 %v2884, %v3335
    %v3337 = vpop.f32.mrf.mxu0
    %3338 = vmatprep.mubr.f32.mxu0 0.0
    %v3339 = vand.u32 %v219, 4294901760
    %3340 = vmatmul.mubr.f32.gmra.mxu0 %v3339
    %v3341 = vpop.f32.mrf.mxu0
    %v3342 = vadd.f32 %v2890, %v3341
    %v3343 = vpop.f32.mrf.mxu0
    %3344 = vmatprep.mubr.f32.mxu0 0.0
    %v3345 = vand.u32 %v222, 4294901760
    %3346 = vmatmul.mubr.f32.gmra.mxu0 %v3345
    %v3347 = vpop.f32.mrf.mxu0
    %v3348 = vadd.f32 %v2896, %v3347
    %v3349 = vpop.f32.mrf.mxu0
    %3350 = vmatprep.mubr.f32.mxu0 0.0
    %v3351 = vand.u32 %v225, 4294901760
    %3352 = vmatmul.mubr.f32.gmra.mxu0 %v3351
    %v3353 = vpop.f32.mrf.mxu0
    %v3354 = vadd.f32 %v2902, %v3353
    %v3355 = vpop.f32.mrf.mxu0
    %3356 = vmatprep.mubr.f32.mxu0 0.0
    %v3357 = vand.u32 %v228, 4294901760
    %3358 = vmatmul.mubr.f32.gmra.mxu0 %v3357
    %v3359 = vpop.f32.mrf.mxu0
    %v3360 = vadd.f32 %v2908, %v3359
    %v3361 = vpop.f32.mrf.mxu0
    %3362 = vmatprep.mubr.f32.mxu0 0.0
    %v3363 = vand.u32 %v231, 4294901760
    %3364 = vmatmul.mubr.f32.gmra.mxu0 %v3363
    %v3365 = vpop.f32.mrf.mxu0
    %v3366 = vadd.f32 %v2914, %v3365
    %v3367 = vpop.f32.mrf.mxu0
    %3368 = vmatprep.mubr.f32.mxu0 0.0
    %v3369 = vand.u32 %v234, 4294901760
    %3370 = vmatmul.mubr.f32.gmra.mxu0 %v3369
    %v3371 = vpop.f32.mrf.mxu0
    %v3372 = vadd.f32 %v2920, %v3371
    %v3373 = vpop.f32.mrf.mxu0
    %3374 = vmatprep.mubr.f32.mxu0 0.0
    %v3375 = vand.u32 %v237, 4294901760
    %3376 = vmatmul.mubr.f32.gmra.mxu0 %v3375
    %v3377 = vpop.f32.mrf.mxu0
    %v3378 = vadd.f32 %v2926, %v3377
    %v3379 = vpop.f32.mrf.mxu0
    %3380 = vmatprep.mubr.f32.mxu0 0.0
    %v3381 = vand.u32 %v240, 4294901760
    %3382 = vmatmul.mubr.f32.gmra.mxu0 %v3381
    %v3383 = vpop.f32.mrf.mxu0
    %v3384 = vadd.f32 %v2932, %v3383
    %v3385 = vpop.f32.mrf.mxu0
    %3386 = vmatprep.mubr.f32.mxu0 0.0
    %v3387 = vand.u32 %v243, 4294901760
    %3388 = vmatmul.mubr.f32.gmra.mxu0 %v3387
    %v3389 = vpop.f32.mrf.mxu0
    %v3390 = vadd.f32 %v2938, %v3389
    %v3391 = vpop.f32.mrf.mxu0
    %3392 = vmatprep.mubr.f32.mxu0 0.0
    %v3393 = vand.u32 %v246, 4294901760
    %3394 = vmatmul.mubr.f32.gmra.mxu0 %v3393
    %v3395 = vpop.f32.mrf.mxu0
    %v3396 = vadd.f32 %v2944, %v3395
    %v3397 = vpop.f32.mrf.mxu0
    %3398 = vmatprep.mubr.f32.mxu0 0.0
    %v3399 = vand.u32 %v249, 4294901760
    %3400 = vmatmul.mubr.f32.gmra.mxu0 %v3399
    %v3401 = vpop.f32.mrf.mxu0
    %v3402 = vadd.f32 %v2950, %v3401
    %v3403 = vpop.f32.mrf.mxu0
    %3404 = vmatprep.mubr.f32.mxu0 0.0
    %v3405 = vand.u32 %v252, 4294901760
    %3406 = vmatmul.mubr.f32.gmra.mxu0 %v3405
    %v3407 = vpop.f32.mrf.mxu0
    %v3408 = vadd.f32 %v2956, %v3407
    %v3409 = vpop.f32.mrf.mxu0
    %3410 = vmatprep.mubr.f32.mxu0 0.0
    %v3411 = vand.u32 %v255, 4294901760
    %3412 = vmatmul.mubr.f32.gmra.mxu0 %v3411
    %v3413 = vpop.f32.mrf.mxu0
    %v3414 = vadd.f32 %v2962, %v3413
    %v3415 = vpop.f32.mrf.mxu0
    %3416 = vmatprep.mubr.f32.mxu0 0.0
    %v3417 = vand.u32 %v258, 4294901760
    %3418 = vmatmul.mubr.f32.gmra.mxu0 %v3417
    %v3419 = vpop.f32.mrf.mxu0
    %v3420 = vadd.f32 %v2968, %v3419
    %v3421 = vpop.f32.mrf.mxu0
    %3422 = vmatprep.mubr.f32.mxu0 0.0
    %v3423 = vand.u32 %v261, 4294901760
    %3424 = vmatmul.mubr.f32.gmra.mxu0 %v3423
    %v3425 = vpop.f32.mrf.mxu0
    %v3426 = vadd.f32 %v2974, %v3425
    %v3427 = vpop.f32.mrf.mxu0
    %3428 = vmatprep.mubr.f32.mxu0 0.0
    %v3429 = vand.u32 %v264, 4294901760
    %3430 = vmatmul.mubr.f32.gmra.mxu0 %v3429
    %v3431 = vpop.f32.mrf.mxu0
    %v3432 = vadd.f32 %v2980, %v3431
    %v3433 = vpop.f32.mrf.mxu0
    %3434 = vmatprep.mubr.f32.mxu0 0.0
    %v3435 = vand.u32 %v267, 4294901760
    %3436 = vmatmul.mubr.f32.gmra.mxu0 %v3435
    %v3437 = vpop.f32.mrf.mxu0
    %v3438 = vadd.f32 %v2986, %v3437
    %v3439 = vpop.f32.mrf.mxu0
    %3440 = vmatprep.mubr.f32.mxu0 0.0
    %v3441 = vand.u32 %v270, 4294901760
    %3442 = vmatmul.mubr.f32.gmra.mxu0 %v3441
    %v3443 = vpop.f32.mrf.mxu0
    %v3444 = vadd.f32 %v2992, %v3443
    %v3445 = vpop.f32.mrf.mxu0
    %3446 = vmatprep.mubr.f32.mxu0 0.0
    %v3447 = vand.u32 %v273, 4294901760
    %3448 = vmatmul.mubr.f32.gmra.mxu0 %v3447
    %v3449 = vpop.f32.mrf.mxu0
    %v3450 = vadd.f32 %v2998, %v3449
    %v3451 = vpop.f32.mrf.mxu0
    %3452 = vmatprep.mubr.f32.mxu0 0.0
    %v3453 = vand.u32 %v276, 4294901760
    %3454 = vmatmul.mubr.f32.gmra.mxu0 %v3453
    %v3455 = vpop.f32.mrf.mxu0
    %v3456 = vadd.f32 %v3004, %v3455
    %v3457 = vpop.f32.mrf.mxu0
    %3458 = vdwg.mxu0
    %v3459 = vld [vmem:[%s2] sm:$0xff]
    %v3460 = vld [vmem:[%s2 + $0x8] sm:$0xff]
    %v3461 = vld [vmem:[%s2 + $0x10] sm:$0xff]
    %v3462 = vld [vmem:[%s2 + $0x18] sm:$0xff]
    %v3463 = vld [vmem:[%s3] sm:$0xff]
    %3464 = vmatprep.subr.mxu0 0.0
    %v3465 = vand.u32 %v3168, 4294901760
    %3466 = vmatpush1.msra.mxu0 %v3465
    %3467 = vmatprep.subr.mxu0 0.0
    %v3468 = vand.u32 %v3162, 4294901760
    %3469 = vmatpush1.msra.mxu0 %v3468
    %3470 = vmatprep.subr.mxu0 0.0
    %v3471 = vand.u32 %v3156, 4294901760
    %3472 = vmatpush1.msra.mxu0 %v3471
    %3473 = vmatprep.subr.mxu0 0.0
    %v3474 = vand.u32 %v3150, 4294901760
    %3475 = vmatpush1.msra.mxu0 %v3474
    %3476 = vmatprep.subr.mxu0 0.0
    %v3477 = vand.u32 %v3144, 4294901760
    %3478 = vmatpush1.msra.mxu0 %v3477
    %3479 = vmatprep.subr.mxu0 0.0
    %v3480 = vand.u32 %v3138, 4294901760
    %3481 = vmatpush1.msra.mxu0 %v3480
    %3482 = vmatprep.subr.mxu0 0.0
    %v3483 = vand.u32 %v3132, 4294901760
    %3484 = vmatpush1.msra.mxu0 %v3483
    %3485 = vmatprep.subr.mxu0 0.0
    %v3486 = vand.u32 %v3126, 4294901760
    %3487 = vmatpush1.msra.mxu0 %v3486
    %3488 = vmatprep.subr.mxu0 0.0
    %v3489 = vand.u32 %v3120, 4294901760
    %3490 = vmatpush1.msra.mxu0 %v3489
    %3491 = vmatprep.subr.mxu0 0.0
    %v3492 = vand.u32 %v3114, 4294901760
    %3493 = vmatpush1.msra.mxu0 %v3492
    %3494 = vmatprep.subr.mxu0 0.0
    %v3495 = vand.u32 %v3108, 4294901760
    %3496 = vmatpush1.msra.mxu0 %v3495
    %3497 = vmatprep.subr.mxu0 0.0
    %v3498 = vand.u32 %v3102, 4294901760
    %3499 = vmatpush1.msra.mxu0 %v3498
    %3500 = vmatprep.subr.mxu0 0.0
    %v3501 = vand.u32 %v3096, 4294901760
    %3502 = vmatpush1.msra.mxu0 %v3501
    %3503 = vmatprep.subr.mxu0 0.0
    %v3504 = vand.u32 %v3090, 4294901760
    %3505 = vmatpush1.msra.mxu0 %v3504
    %3506 = vmatprep.subr.mxu0 0.0
    %v3507 = vand.u32 %v3084, 4294901760
    %3508 = vmatpush1.msra.mxu0 %v3507
    %3509 = vmatprep.subr.mxu0 0.0
    %v3510 = vand.u32 %v3078, 4294901760
    %3511 = vmatpush1.msra.mxu0 %v3510
    %3512 = vmatprep.subr.mxu0 0.0
    %v3513 = vand.u32 %v3264, 4294901760
    %3514 = vmatpush2.msra.mxu0 %v3513
    %3515 = vmatprep.subr.mxu0 0.0
    %v3516 = vand.u32 %v3258, 4294901760
    %3517 = vmatpush2.msra.mxu0 %v3516
    %3518 = vmatprep.subr.mxu0 0.0
    %v3519 = vand.u32 %v3252, 4294901760
    %3520 = vmatpush2.msra.mxu0 %v3519
    %3521 = vmatprep.subr.mxu0 0.0
    %v3522 = vand.u32 %v3246, 4294901760
    %3523 = vmatpush2.msra.mxu0 %v3522
    %3524 = vmatprep.subr.mxu0 0.0
    %v3525 = vand.u32 %v3240, 4294901760
    %3526 = vmatpush2.msra.mxu0 %v3525
    %3527 = vmatprep.subr.mxu0 0.0
    %v3528 = vand.u32 %v3234, 4294901760
    %3529 = vmatpush2.msra.mxu0 %v3528
    %3530 = vmatprep.subr.mxu0 0.0
    %v3531 = vand.u32 %v3228, 4294901760
    %3532 = vmatpush2.msra.mxu0 %v3531
    %3533 = vmatprep.subr.mxu0 0.0
    %v3534 = vand.u32 %v3222, 4294901760
    %3535 = vmatpush2.msra.mxu0 %v3534
    %3536 = vmatprep.subr.mxu0 0.0
    %v3537 = vand.u32 %v3216, 4294901760
    %3538 = vmatpush2.msra.mxu0 %v3537
    %3539 = vmatprep.subr.mxu0 0.0
    %v3540 = vand.u32 %v3210, 4294901760
    %3541 = vmatpush2.msra.mxu0 %v3540
    %3542 = vmatprep.subr.mxu0 0.0
    %v3543 = vand.u32 %v3204, 4294901760
    %3544 = vmatpush2.msra.mxu0 %v3543
    %3545 = vmatprep.subr.mxu0 0.0
    %v3546 = vand.u32 %v3198, 4294901760
    %3547 = vmatpush2.msra.mxu0 %v3546
    %3548 = vmatprep.subr.mxu0 0.0
    %v3549 = vand.u32 %v3192, 4294901760
    %3550 = vmatpush2.msra.mxu0 %v3549
    %3551 = vmatprep.subr.mxu0 0.0
    %v3552 = vand.u32 %v3186, 4294901760
    %3553 = vmatpush2.msra.mxu0 %v3552
    %3554 = vmatprep.subr.mxu0 0.0
    %v3555 = vand.u32 %v3180, 4294901760
    %3556 = vmatpush2.msra.mxu0 %v3555
    %3557 = vmatprep.subr.mxu0 0.0
    %v3558 = vand.u32 %v3174, 4294901760
    %3559 = vmatpush2.msra.mxu0 %v3558
    %v3560 = vand.u32 %v3460, 4294901760
    %v3561 = vsub.f32 %v3460, %v3560
    %v3562 = vand.u32 %v3561, 4294901760
    %v3563 = vsub.f32 %v3561, %v3562
    %v3564 = vand.u32 %v3563, 4294901760
    %3565 = vmatprep.mubr.f32.mxu0 %v3564
    %v3566 = vand.u32 %v3459, 4294901760
    %v3567 = vsub.f32 %v3459, %v3566
    %v3568 = vand.u32 %v3567, 4294901760
    %v3569 = vsub.f32 %v3567, %v3568
    %v3570 = vand.u32 %v3569, 4294901760
    %3571 = vmatmul.mubr.f32.gmra.mxu0 %v3570
    %v3572 = vpop.f32.mrf.mxu0
    %v3573 = vadd.f32 %v3463, %v3572
    %v3574 = vpop.f32.mrf.mxu0
    %3575 = vdwg.mxu0
    %3576 = vmatprep.subr.mxu0 0.0
    %v3577 = vand.u32 %v3168, 4294901760
    %v3578 = vsub.f32 %v3168, %v3577
    %v3579 = vand.u32 %v3578, 4294901760
    %v3580 = vsub.f32 %v3578, %v3579
    %v3581 = vand.u32 %v3580, 4294901760
    %3582 = vmatpush1.msra.mxu0 %v3581
    %3583 = vmatprep.subr.mxu0 0.0
    %v3584 = vand.u32 %v3162, 4294901760
    %v3585 = vsub.f32 %v3162, %v3584
    %v3586 = vand.u32 %v3585, 4294901760
    %v3587 = vsub.f32 %v3585, %v3586
    %v3588 = vand.u32 %v3587, 4294901760
    %3589 = vmatpush1.msra.mxu0 %v3588
    %3590 = vmatprep.subr.mxu0 0.0
    %v3591 = vand.u32 %v3156, 4294901760
    %v3592 = vsub.f32 %v3156, %v3591
    %v3593 = vand.u32 %v3592, 4294901760
    %v3594 = vsub.f32 %v3592, %v3593
    %v3595 = vand.u32 %v3594, 4294901760
    %3596 = vmatpush1.msra.mxu0 %v3595
    %3597 = vmatprep.subr.mxu0 0.0
    %v3598 = vand.u32 %v3150, 4294901760
    %v3599 = vsub.f32 %v3150, %v3598
    %v3600 = vand.u32 %v3599, 4294901760
    %v3601 = vsub.f32 %v3599, %v3600
    %v3602 = vand.u32 %v3601, 4294901760
    %3603 = vmatpush1.msra.mxu0 %v3602
    %3604 = vmatprep.subr.mxu0 0.0
    %v3605 = vand.u32 %v3144, 4294901760
    %v3606 = vsub.f32 %v3144, %v3605
    %v3607 = vand.u32 %v3606, 4294901760
    %v3608 = vsub.f32 %v3606, %v3607
    %v3609 = vand.u32 %v3608, 4294901760
    %3610 = vmatpush1.msra.mxu0 %v3609
    %3611 = vmatprep.subr.mxu0 0.0
    %v3612 = vand.u32 %v3138, 4294901760
    %v3613 = vsub.f32 %v3138, %v3612
    %v3614 = vand.u32 %v3613, 4294901760
    %v3615 = vsub.f32 %v3613, %v3614
    %v3616 = vand.u32 %v3615, 4294901760
    %3617 = vmatpush1.msra.mxu0 %v3616
    %3618 = vmatprep.subr.mxu0 0.0
    %v3619 = vand.u32 %v3132, 4294901760
    %v3620 = vsub.f32 %v3132, %v3619
    %v3621 = vand.u32 %v3620, 4294901760
    %v3622 = vsub.f32 %v3620, %v3621
    %v3623 = vand.u32 %v3622, 4294901760
    %3624 = vmatpush1.msra.mxu0 %v3623
    %3625 = vmatprep.subr.mxu0 0.0
    %v3626 = vand.u32 %v3126, 4294901760
    %v3627 = vsub.f32 %v3126, %v3626
    %v3628 = vand.u32 %v3627, 4294901760
    %v3629 = vsub.f32 %v3627, %v3628
    %v3630 = vand.u32 %v3629, 4294901760
    %3631 = vmatpush1.msra.mxu0 %v3630
    %3632 = vmatprep.subr.mxu0 0.0
    %v3633 = vand.u32 %v3120, 4294901760
    %v3634 = vsub.f32 %v3120, %v3633
    %v3635 = vand.u32 %v3634, 4294901760
    %v3636 = vsub.f32 %v3634, %v3635
    %v3637 = vand.u32 %v3636, 4294901760
    %3638 = vmatpush1.msra.mxu0 %v3637
    %3639 = vmatprep.subr.mxu0 0.0
    %v3640 = vand.u32 %v3114, 4294901760
    %v3641 = vsub.f32 %v3114, %v3640
    %v3642 = vand.u32 %v3641, 4294901760
    %v3643 = vsub.f32 %v3641, %v3642
    %v3644 = vand.u32 %v3643, 4294901760
    %3645 = vmatpush1.msra.mxu0 %v3644
    %3646 = vmatprep.subr.mxu0 0.0
    %v3647 = vand.u32 %v3108, 4294901760
    %v3648 = vsub.f32 %v3108, %v3647
    %v3649 = vand.u32 %v3648, 4294901760
    %v3650 = vsub.f32 %v3648, %v3649
    %v3651 = vand.u32 %v3650, 4294901760
    %3652 = vmatpush1.msra.mxu0 %v3651
    %3653 = vmatprep.subr.mxu0 0.0
    %v3654 = vand.u32 %v3102, 4294901760
    %v3655 = vsub.f32 %v3102, %v3654
    %v3656 = vand.u32 %v3655, 4294901760
    %v3657 = vsub.f32 %v3655, %v3656
    %v3658 = vand.u32 %v3657, 4294901760
    %3659 = vmatpush1.msra.mxu0 %v3658
    %3660 = vmatprep.subr.mxu0 0.0
    %v3661 = vand.u32 %v3096, 4294901760
    %v3662 = vsub.f32 %v3096, %v3661
    %v3663 = vand.u32 %v3662, 4294901760
    %v3664 = vsub.f32 %v3662, %v3663
    %v3665 = vand.u32 %v3664, 4294901760
    %3666 = vmatpush1.msra.mxu0 %v3665
    %3667 = vmatprep.subr.mxu0 0.0
    %v3668 = vand.u32 %v3090, 4294901760
    %v3669 = vsub.f32 %v3090, %v3668
    %v3670 = vand.u32 %v3669, 4294901760
    %v3671 = vsub.f32 %v3669, %v3670
    %v3672 = vand.u32 %v3671, 4294901760
    %3673 = vmatpush1.msra.mxu0 %v3672
    %3674 = vmatprep.subr.mxu0 0.0
    %v3675 = vand.u32 %v3084, 4294901760
    %v3676 = vsub.f32 %v3084, %v3675
    %v3677 = vand.u32 %v3676, 4294901760
    %v3678 = vsub.f32 %v3676, %v3677
    %v3679 = vand.u32 %v3678, 4294901760
    %3680 = vmatpush1.msra.mxu0 %v3679
    %3681 = vmatprep.subr.mxu0 0.0
    %v3682 = vand.u32 %v3078, 4294901760
    %v3683 = vsub.f32 %v3078, %v3682
    %v3684 = vand.u32 %v3683, 4294901760
    %v3685 = vsub.f32 %v3683, %v3684
    %v3686 = vand.u32 %v3685, 4294901760
    %3687 = vmatpush1.msra.mxu0 %v3686
    %3688 = vmatprep.subr.mxu0 0.0
    %v3689 = vand.u32 %v3264, 4294901760
    %v3690 = vsub.f32 %v3264, %v3689
    %v3691 = vand.u32 %v3690, 4294901760
    %v3692 = vsub.f32 %v3690, %v3691
    %v3693 = vand.u32 %v3692, 4294901760
    %3694 = vmatpush2.msra.mxu0 %v3693
    %3695 = vmatprep.subr.mxu0 0.0
    %v3696 = vand.u32 %v3258, 4294901760
    %v3697 = vsub.f32 %v3258, %v3696
    %v3698 = vand.u32 %v3697, 4294901760
    %v3699 = vsub.f32 %v3697, %v3698
    %v3700 = vand.u32 %v3699, 4294901760
    %3701 = vmatpush2.msra.mxu0 %v3700
    %3702 = vmatprep.subr.mxu0 0.0
    %v3703 = vand.u32 %v3252, 4294901760
    %v3704 = vsub.f32 %v3252, %v3703
    %v3705 = vand.u32 %v3704, 4294901760
    %v3706 = vsub.f32 %v3704, %v3705
    %v3707 = vand.u32 %v3706, 4294901760
    %3708 = vmatpush2.msra.mxu0 %v3707
    %3709 = vmatprep.subr.mxu0 0.0
    %v3710 = vand.u32 %v3246, 4294901760
    %v3711 = vsub.f32 %v3246, %v3710
    %v3712 = vand.u32 %v3711, 4294901760
    %v3713 = vsub.f32 %v3711, %v3712
    %v3714 = vand.u32 %v3713, 4294901760
    %3715 = vmatpush2.msra.mxu0 %v3714
    %3716 = vmatprep.subr.mxu0 0.0
    %v3717 = vand.u32 %v3240, 4294901760
    %v3718 = vsub.f32 %v3240, %v3717
    %v3719 = vand.u32 %v3718, 4294901760
    %v3720 = vsub.f32 %v3718, %v3719
    %v3721 = vand.u32 %v3720, 4294901760
    %3722 = vmatpush2.msra.mxu0 %v3721
    %3723 = vmatprep.subr.mxu0 0.0
    %v3724 = vand.u32 %v3234, 4294901760
    %v3725 = vsub.f32 %v3234, %v3724
    %v3726 = vand.u32 %v3725, 4294901760
    %v3727 = vsub.f32 %v3725, %v3726
    %v3728 = vand.u32 %v3727, 4294901760
    %3729 = vmatpush2.msra.mxu0 %v3728
    %3730 = vmatprep.subr.mxu0 0.0
    %v3731 = vand.u32 %v3228, 4294901760
    %v3732 = vsub.f32 %v3228, %v3731
    %v3733 = vand.u32 %v3732, 4294901760
    %v3734 = vsub.f32 %v3732, %v3733
    %v3735 = vand.u32 %v3734, 4294901760
    %3736 = vmatpush2.msra.mxu0 %v3735
    %3737 = vmatprep.subr.mxu0 0.0
    %v3738 = vand.u32 %v3222, 4294901760
    %v3739 = vsub.f32 %v3222, %v3738
    %v3740 = vand.u32 %v3739, 4294901760
    %v3741 = vsub.f32 %v3739, %v3740
    %v3742 = vand.u32 %v3741, 4294901760
    %3743 = vmatpush2.msra.mxu0 %v3742
    %3744 = vmatprep.subr.mxu0 0.0
    %v3745 = vand.u32 %v3216, 4294901760
    %v3746 = vsub.f32 %v3216, %v3745
    %v3747 = vand.u32 %v3746, 4294901760
    %v3748 = vsub.f32 %v3746, %v3747
    %v3749 = vand.u32 %v3748, 4294901760
    %3750 = vmatpush2.msra.mxu0 %v3749
    %3751 = vmatprep.subr.mxu0 0.0
    %v3752 = vand.u32 %v3210, 4294901760
    %v3753 = vsub.f32 %v3210, %v3752
    %v3754 = vand.u32 %v3753, 4294901760
    %v3755 = vsub.f32 %v3753, %v3754
    %v3756 = vand.u32 %v3755, 4294901760
    %3757 = vmatpush2.msra.mxu0 %v3756
    %3758 = vmatprep.subr.mxu0 0.0
    %v3759 = vand.u32 %v3204, 4294901760
    %v3760 = vsub.f32 %v3204, %v3759
    %v3761 = vand.u32 %v3760, 4294901760
    %v3762 = vsub.f32 %v3760, %v3761
    %v3763 = vand.u32 %v3762, 4294901760
    %3764 = vmatpush2.msra.mxu0 %v3763
    %3765 = vmatprep.subr.mxu0 0.0
    %v3766 = vand.u32 %v3198, 4294901760
    %v3767 = vsub.f32 %v3198, %v3766
    %v3768 = vand.u32 %v3767, 4294901760
    %v3769 = vsub.f32 %v3767, %v3768
    %v3770 = vand.u32 %v3769, 4294901760
    %3771 = vmatpush2.msra.mxu0 %v3770
    %3772 = vmatprep.subr.mxu0 0.0
    %v3773 = vand.u32 %v3192, 4294901760
    %v3774 = vsub.f32 %v3192, %v3773
    %v3775 = vand.u32 %v3774, 4294901760
    %v3776 = vsub.f32 %v3774, %v3775
    %v3777 = vand.u32 %v3776, 4294901760
    %3778 = vmatpush2.msra.mxu0 %v3777
    %3779 = vmatprep.subr.mxu0 0.0
    %v3780 = vand.u32 %v3186, 4294901760
    %v3781 = vsub.f32 %v3186, %v3780
    %v3782 = vand.u32 %v3781, 4294901760
    %v3783 = vsub.f32 %v3781, %v3782
    %v3784 = vand.u32 %v3783, 4294901760
    %3785 = vmatpush2.msra.mxu0 %v3784
    %3786 = vmatprep.subr.mxu0 0.0
    %v3787 = vand.u32 %v3180, 4294901760
    %v3788 = vsub.f32 %v3180, %v3787
    %v3789 = vand.u32 %v3788, 4294901760
    %v3790 = vsub.f32 %v3788, %v3789
    %v3791 = vand.u32 %v3790, 4294901760
    %3792 = vmatpush2.msra.mxu0 %v3791
    %3793 = vmatprep.subr.mxu0 0.0
    %v3794 = vand.u32 %v3174, 4294901760
    %v3795 = vsub.f32 %v3174, %v3794
    %v3796 = vand.u32 %v3795, 4294901760
    %v3797 = vsub.f32 %v3795, %v3796
    %v3798 = vand.u32 %v3797, 4294901760
    %3799 = vmatpush2.msra.mxu0 %v3798
    %v3800 = vand.u32 %v3460, 4294901760
    %3801 = vmatprep.mubr.f32.mxu0 %v3800
    %v3802 = vand.u32 %v3459, 4294901760
    %3803 = vmatmul.mubr.f32.gmra.mxu0 %v3802
    %v3804 = vpop.f32.mrf.mxu0
    %v3805 = vadd.f32 %v3573, %v3804
    %v3806 = vpop.f32.mrf.mxu0
    %3807 = vdwg.mxu0
    %3808 = vmatprep.subr.mxu0 0.0
    %v3809 = vand.u32 %v3168, 4294901760
    %v3810 = vsub.f32 %v3168, %v3809
    %3811 = vmatpush1.msra.mxu0 %v3810
    %3812 = vmatprep.subr.mxu0 0.0
    %v3813 = vand.u32 %v3162, 4294901760
    %v3814 = vsub.f32 %v3162, %v3813
    %3815 = vmatpush1.msra.mxu0 %v3814
    %3816 = vmatprep.subr.mxu0 0.0
    %v3817 = vand.u32 %v3156, 4294901760
    %v3818 = vsub.f32 %v3156, %v3817
    %3819 = vmatpush1.msra.mxu0 %v3818
    %3820 = vmatprep.subr.mxu0 0.0
    %v3821 = vand.u32 %v3150, 4294901760
    %v3822 = vsub.f32 %v3150, %v3821
    %3823 = vmatpush1.msra.mxu0 %v3822
    %3824 = vmatprep.subr.mxu0 0.0
    %v3825 = vand.u32 %v3144, 4294901760
    %v3826 = vsub.f32 %v3144, %v3825
    %3827 = vmatpush1.msra.mxu0 %v3826
    %3828 = vmatprep.subr.mxu0 0.0
    %v3829 = vand.u32 %v3138, 4294901760
    %v3830 = vsub.f32 %v3138, %v3829
    %3831 = vmatpush1.msra.mxu0 %v3830
    %3832 = vmatprep.subr.mxu0 0.0
    %v3833 = vand.u32 %v3132, 4294901760
    %v3834 = vsub.f32 %v3132, %v3833
    %3835 = vmatpush1.msra.mxu0 %v3834
    %3836 = vmatprep.subr.mxu0 0.0
    %v3837 = vand.u32 %v3126, 4294901760
    %v3838 = vsub.f32 %v3126, %v3837
    %3839 = vmatpush1.msra.mxu0 %v3838
    %3840 = vmatprep.subr.mxu0 0.0
    %v3841 = vand.u32 %v3120, 4294901760
    %v3842 = vsub.f32 %v3120, %v3841
    %3843 = vmatpush1.msra.mxu0 %v3842
    %3844 = vmatprep.subr.mxu0 0.0
    %v3845 = vand.u32 %v3114, 4294901760
    %v3846 = vsub.f32 %v3114, %v3845
    %3847 = vmatpush1.msra.mxu0 %v3846
    %3848 = vmatprep.subr.mxu0 0.0
    %v3849 = vand.u32 %v3108, 4294901760
    %v3850 = vsub.f32 %v3108, %v3849
    %3851 = vmatpush1.msra.mxu0 %v3850
    %3852 = vmatprep.subr.mxu0 0.0
    %v3853 = vand.u32 %v3102, 4294901760
    %v3854 = vsub.f32 %v3102, %v3853
    %3855 = vmatpush1.msra.mxu0 %v3854
    %3856 = vmatprep.subr.mxu0 0.0
    %v3857 = vand.u32 %v3096, 4294901760
    %v3858 = vsub.f32 %v3096, %v3857
    %3859 = vmatpush1.msra.mxu0 %v3858
    %3860 = vmatprep.subr.mxu0 0.0
    %v3861 = vand.u32 %v3090, 4294901760
    %v3862 = vsub.f32 %v3090, %v3861
    %3863 = vmatpush1.msra.mxu0 %v3862
    %3864 = vmatprep.subr.mxu0 0.0
    %v3865 = vand.u32 %v3084, 4294901760
    %v3866 = vsub.f32 %v3084, %v3865
    %3867 = vmatpush1.msra.mxu0 %v3866
    %3868 = vmatprep.subr.mxu0 0.0
    %v3869 = vand.u32 %v3078, 4294901760
    %v3870 = vsub.f32 %v3078, %v3869
    %3871 = vmatpush1.msra.mxu0 %v3870
    %3872 = vmatprep.subr.mxu0 0.0
    %v3873 = vand.u32 %v3264, 4294901760
    %v3874 = vsub.f32 %v3264, %v3873
    %3875 = vmatpush2.msra.mxu0 %v3874
    %3876 = vmatprep.subr.mxu0 0.0
    %v3877 = vand.u32 %v3258, 4294901760
    %v3878 = vsub.f32 %v3258, %v3877
    %3879 = vmatpush2.msra.mxu0 %v3878
    %3880 = vmatprep.subr.mxu0 0.0
    %v3881 = vand.u32 %v3252, 4294901760
    %v3882 = vsub.f32 %v3252, %v3881
    %3883 = vmatpush2.msra.mxu0 %v3882
    %3884 = vmatprep.subr.mxu0 0.0
    %v3885 = vand.u32 %v3246, 4294901760
    %v3886 = vsub.f32 %v3246, %v3885
    %3887 = vmatpush2.msra.mxu0 %v3886
    %3888 = vmatprep.subr.mxu0 0.0
    %v3889 = vand.u32 %v3240, 4294901760
    %v3890 = vsub.f32 %v3240, %v3889
    %3891 = vmatpush2.msra.mxu0 %v3890
    %3892 = vmatprep.subr.mxu0 0.0
    %v3893 = vand.u32 %v3234, 4294901760
    %v3894 = vsub.f32 %v3234, %v3893
    %3895 = vmatpush2.msra.mxu0 %v3894
    %3896 = vmatprep.subr.mxu0 0.0
    %v3897 = vand.u32 %v3228, 4294901760
    %v3898 = vsub.f32 %v3228, %v3897
    %3899 = vmatpush2.msra.mxu0 %v3898
    %3900 = vmatprep.subr.mxu0 0.0
    %v3901 = vand.u32 %v3222, 4294901760
    %v3902 = vsub.f32 %v3222, %v3901
    %3903 = vmatpush2.msra.mxu0 %v3902
    %3904 = vmatprep.subr.mxu0 0.0
    %v3905 = vand.u32 %v3216, 4294901760
    %v3906 = vsub.f32 %v3216, %v3905
    %3907 = vmatpush2.msra.mxu0 %v3906
    %3908 = vmatprep.subr.mxu0 0.0
    %v3909 = vand.u32 %v3210, 4294901760
    %v3910 = vsub.f32 %v3210, %v3909
    %3911 = vmatpush2.msra.mxu0 %v3910
    %3912 = vmatprep.subr.mxu0 0.0
    %v3913 = vand.u32 %v3204, 4294901760
    %v3914 = vsub.f32 %v3204, %v3913
    %3915 = vmatpush2.msra.mxu0 %v3914
    %3916 = vmatprep.subr.mxu0 0.0
    %v3917 = vand.u32 %v3198, 4294901760
    %v3918 = vsub.f32 %v3198, %v3917
    %3919 = vmatpush2.msra.mxu0 %v3918
    %3920 = vmatprep.subr.mxu0 0.0
    %v3921 = vand.u32 %v3192, 4294901760
    %v3922 = vsub.f32 %v3192, %v3921
    %3923 = vmatpush2.msra.mxu0 %v3922
    %3924 = vmatprep.subr.mxu0 0.0
    %v3925 = vand.u32 %v3186, 4294901760
    %v3926 = vsub.f32 %v3186, %v3925
    %3927 = vmatpush2.msra.mxu0 %v3926
    %3928 = vmatprep.subr.mxu0 0.0
    %v3929 = vand.u32 %v3180, 4294901760
    %v3930 = vsub.f32 %v3180, %v3929
    %3931 = vmatpush2.msra.mxu0 %v3930
    %3932 = vmatprep.subr.mxu0 0.0
    %v3933 = vand.u32 %v3174, 4294901760
    %v3934 = vsub.f32 %v3174, %v3933
    %3935 = vmatpush2.msra.mxu0 %v3934
    %v3936 = vand.u32 %v3460, 4294901760
    %v3937 = vsub.f32 %v3460, %v3936
    %3938 = vmatprep.mubr.f32.mxu0 %v3937
    %v3939 = vand.u32 %v3459, 4294901760
    %v3940 = vsub.f32 %v3459, %v3939
    %3941 = vmatmul.mubr.f32.gmra.mxu0 %v3940
    %v3942 = vpop.f32.mrf.mxu0
    %v3943 = vadd.f32 %v3805, %v3942
    %v3944 = vpop.f32.mrf.mxu0
    %3945 = vdwg.mxu0
    %3946 = vmatprep.subr.mxu0 0.0
    %v3947 = vand.u32 %v3168, 4294901760
    %3948 = vmatpush1.msra.mxu0 %v3947
    %3949 = vmatprep.subr.mxu0 0.0
    %v3950 = vand.u32 %v3162, 4294901760
    %3951 = vmatpush1.msra.mxu0 %v3950
    %3952 = vmatprep.subr.mxu0 0.0
    %v3953 = vand.u32 %v3156, 4294901760
    %3954 = vmatpush1.msra.mxu0 %v3953
    %3955 = vmatprep.subr.mxu0 0.0
    %v3956 = vand.u32 %v3150, 4294901760
    %3957 = vmatpush1.msra.mxu0 %v3956
    %3958 = vmatprep.subr.mxu0 0.0
    %v3959 = vand.u32 %v3144, 4294901760
    %3960 = vmatpush1.msra.mxu0 %v3959
    %3961 = vmatprep.subr.mxu0 0.0
    %v3962 = vand.u32 %v3138, 4294901760
    %3963 = vmatpush1.msra.mxu0 %v3962
    %3964 = vmatprep.subr.mxu0 0.0
    %v3965 = vand.u32 %v3132, 4294901760
    %3966 = vmatpush1.msra.mxu0 %v3965
    %3967 = vmatprep.subr.mxu0 0.0
    %v3968 = vand.u32 %v3126, 4294901760
    %3969 = vmatpush1.msra.mxu0 %v3968
    %3970 = vmatprep.subr.mxu0 0.0
    %v3971 = vand.u32 %v3120, 4294901760
    %3972 = vmatpush1.msra.mxu0 %v3971
    %3973 = vmatprep.subr.mxu0 0.0
    %v3974 = vand.u32 %v3114, 4294901760
    %3975 = vmatpush1.msra.mxu0 %v3974
    %3976 = vmatprep.subr.mxu0 0.0
    %v3977 = vand.u32 %v3108, 4294901760
    %3978 = vmatpush1.msra.mxu0 %v3977
    %3979 = vmatprep.subr.mxu0 0.0
    %v3980 = vand.u32 %v3102, 4294901760
    %3981 = vmatpush1.msra.mxu0 %v3980
    %3982 = vmatprep.subr.mxu0 0.0
    %v3983 = vand.u32 %v3096, 4294901760
    %3984 = vmatpush1.msra.mxu0 %v3983
    %3985 = vmatprep.subr.mxu0 0.0
    %v3986 = vand.u32 %v3090, 4294901760
    %3987 = vmatpush1.msra.mxu0 %v3986
    %3988 = vmatprep.subr.mxu0 0.0
    %v3989 = vand.u32 %v3084, 4294901760
    %3990 = vmatpush1.msra.mxu0 %v3989
    %3991 = vmatprep.subr.mxu0 0.0
    %v3992 = vand.u32 %v3078, 4294901760
    %3993 = vmatpush1.msra.mxu0 %v3992
    %3994 = vmatprep.subr.mxu0 0.0
    %v3995 = vand.u32 %v3264, 4294901760
    %3996 = vmatpush2.msra.mxu0 %v3995
    %3997 = vmatprep.subr.mxu0 0.0
    %v3998 = vand.u32 %v3258, 4294901760
    %3999 = vmatpush2.msra.mxu0 %v3998
    %4000 = vmatprep.subr.mxu0 0.0
    %v4001 = vand.u32 %v3252, 4294901760
    %4002 = vmatpush2.msra.mxu0 %v4001
    %4003 = vmatprep.subr.mxu0 0.0
    %v4004 = vand.u32 %v3246, 4294901760
    %4005 = vmatpush2.msra.mxu0 %v4004
    %4006 = vmatprep.subr.mxu0 0.0
    %v4007 = vand.u32 %v3240, 4294901760
    %4008 = vmatpush2.msra.mxu0 %v4007
    %4009 = vmatprep.subr.mxu0 0.0
    %v4010 = vand.u32 %v3234, 4294901760
    %4011 = vmatpush2.msra.mxu0 %v4010
    %4012 = vmatprep.subr.mxu0 0.0
    %v4013 = vand.u32 %v3228, 4294901760
    %4014 = vmatpush2.msra.mxu0 %v4013
    %4015 = vmatprep.subr.mxu0 0.0
    %v4016 = vand.u32 %v3222, 4294901760
    %4017 = vmatpush2.msra.mxu0 %v4016
    %4018 = vmatprep.subr.mxu0 0.0
    %v4019 = vand.u32 %v3216, 4294901760
    %4020 = vmatpush2.msra.mxu0 %v4019
    %4021 = vmatprep.subr.mxu0 0.0
    %v4022 = vand.u32 %v3210, 4294901760
    %4023 = vmatpush2.msra.mxu0 %v4022
    %4024 = vmatprep.subr.mxu0 0.0
    %v4025 = vand.u32 %v3204, 4294901760
    %4026 = vmatpush2.msra.mxu0 %v4025
    %4027 = vmatprep.subr.mxu0 0.0
    %v4028 = vand.u32 %v3198, 4294901760
    %4029 = vmatpush2.msra.mxu0 %v4028
    %4030 = vmatprep.subr.mxu0 0.0
    %v4031 = vand.u32 %v3192, 4294901760
    %4032 = vmatpush2.msra.mxu0 %v4031
    %4033 = vmatprep.subr.mxu0 0.0
    %v4034 = vand.u32 %v3186, 4294901760
    %4035 = vmatpush2.msra.mxu0 %v4034
    %4036 = vmatprep.subr.mxu0 0.0
    %v4037 = vand.u32 %v3180, 4294901760
    %4038 = vmatpush2.msra.mxu0 %v4037
    %4039 = vmatprep.subr.mxu0 0.0
    %v4040 = vand.u32 %v3174, 4294901760
    %4041 = vmatpush2.msra.mxu0 %v4040
    %v4042 = vand.u32 %v3460, 4294901760
    %v4043 = vsub.f32 %v3460, %v4042
    %v4044 = vand.u32 %v4043, 4294901760
    %4045 = vmatprep.mubr.f32.mxu0 %v4044
    %v4046 = vand.u32 %v3459, 4294901760
    %v4047 = vsub.f32 %v3459, %v4046
    %v4048 = vand.u32 %v4047, 4294901760
    %4049 = vmatmul.mubr.f32.gmra.mxu0 %v4048
    %v4050 = vpop.f32.mrf.mxu0
    %v4051 = vadd.f32 %v3943, %v4050
    %v4052 = vpop.f32.mrf.mxu0
    %4053 = vdwg.mxu0
    %4054 = vmatprep.subr.mxu0 0.0
    %v4055 = vand.u32 %v3168, 4294901760
    %v4056 = vsub.f32 %v3168, %v4055
    %v4057 = vand.u32 %v4056, 4294901760
    %4058 = vmatpush1.msra.mxu0 %v4057
    %4059 = vmatprep.subr.mxu0 0.0
    %v4060 = vand.u32 %v3162, 4294901760
    %v4061 = vsub.f32 %v3162, %v4060
    %v4062 = vand.u32 %v4061, 4294901760
    %4063 = vmatpush1.msra.mxu0 %v4062
    %4064 = vmatprep.subr.mxu0 0.0
    %v4065 = vand.u32 %v3156, 4294901760
    %v4066 = vsub.f32 %v3156, %v4065
    %v4067 = vand.u32 %v4066, 4294901760
    %4068 = vmatpush1.msra.mxu0 %v4067
    %4069 = vmatprep.subr.mxu0 0.0
    %v4070 = vand.u32 %v3150, 4294901760
    %v4071 = vsub.f32 %v3150, %v4070
    %v4072 = vand.u32 %v4071, 4294901760
    %4073 = vmatpush1.msra.mxu0 %v4072
    %4074 = vmatprep.subr.mxu0 0.0
    %v4075 = vand.u32 %v3144, 4294901760
    %v4076 = vsub.f32 %v3144, %v4075
    %v4077 = vand.u32 %v4076, 4294901760
    %4078 = vmatpush1.msra.mxu0 %v4077
    %4079 = vmatprep.subr.mxu0 0.0
    %v4080 = vand.u32 %v3138, 4294901760
    %v4081 = vsub.f32 %v3138, %v4080
    %v4082 = vand.u32 %v4081, 4294901760
    %4083 = vmatpush1.msra.mxu0 %v4082
    %4084 = vmatprep.subr.mxu0 0.0
    %v4085 = vand.u32 %v3132, 4294901760
    %v4086 = vsub.f32 %v3132, %v4085
    %v4087 = vand.u32 %v4086, 4294901760
    %4088 = vmatpush1.msra.mxu0 %v4087
    %4089 = vmatprep.subr.mxu0 0.0
    %v4090 = vand.u32 %v3126, 4294901760
    %v4091 = vsub.f32 %v3126, %v4090
    %v4092 = vand.u32 %v4091, 4294901760
    %4093 = vmatpush1.msra.mxu0 %v4092
    %4094 = vmatprep.subr.mxu0 0.0
    %v4095 = vand.u32 %v3120, 4294901760
    %v4096 = vsub.f32 %v3120, %v4095
    %v4097 = vand.u32 %v4096, 4294901760
    %4098 = vmatpush1.msra.mxu0 %v4097
    %4099 = vmatprep.subr.mxu0 0.0
    %v4100 = vand.u32 %v3114, 4294901760
    %v4101 = vsub.f32 %v3114, %v4100
    %v4102 = vand.u32 %v4101, 4294901760
    %4103 = vmatpush1.msra.mxu0 %v4102
    %4104 = vmatprep.subr.mxu0 0.0
    %v4105 = vand.u32 %v3108, 4294901760
    %v4106 = vsub.f32 %v3108, %v4105
    %v4107 = vand.u32 %v4106, 4294901760
    %4108 = vmatpush1.msra.mxu0 %v4107
    %4109 = vmatprep.subr.mxu0 0.0
    %v4110 = vand.u32 %v3102, 4294901760
    %v4111 = vsub.f32 %v3102, %v4110
    %v4112 = vand.u32 %v4111, 4294901760
    %4113 = vmatpush1.msra.mxu0 %v4112
    %4114 = vmatprep.subr.mxu0 0.0
    %v4115 = vand.u32 %v3096, 4294901760
    %v4116 = vsub.f32 %v3096, %v4115
    %v4117 = vand.u32 %v4116, 4294901760
    %4118 = vmatpush1.msra.mxu0 %v4117
    %4119 = vmatprep.subr.mxu0 0.0
    %v4120 = vand.u32 %v3090, 4294901760
    %v4121 = vsub.f32 %v3090, %v4120
    %v4122 = vand.u32 %v4121, 4294901760
    %4123 = vmatpush1.msra.mxu0 %v4122
    %4124 = vmatprep.subr.mxu0 0.0
    %v4125 = vand.u32 %v3084, 4294901760
    %v4126 = vsub.f32 %v3084, %v4125
    %v4127 = vand.u32 %v4126, 4294901760
    %4128 = vmatpush1.msra.mxu0 %v4127
    %4129 = vmatprep.subr.mxu0 0.0
    %v4130 = vand.u32 %v3078, 4294901760
    %v4131 = vsub.f32 %v3078, %v4130
    %v4132 = vand.u32 %v4131, 4294901760
    %4133 = vmatpush1.msra.mxu0 %v4132
    %4134 = vmatprep.subr.mxu0 0.0
    %v4135 = vand.u32 %v3264, 4294901760
    %v4136 = vsub.f32 %v3264, %v4135
    %v4137 = vand.u32 %v4136, 4294901760
    %4138 = vmatpush2.msra.mxu0 %v4137
    %4139 = vmatprep.subr.mxu0 0.0
    %v4140 = vand.u32 %v3258, 4294901760
    %v4141 = vsub.f32 %v3258, %v4140
    %v4142 = vand.u32 %v4141, 4294901760
    %4143 = vmatpush2.msra.mxu0 %v4142
    %4144 = vmatprep.subr.mxu0 0.0
    %v4145 = vand.u32 %v3252, 4294901760
    %v4146 = vsub.f32 %v3252, %v4145
    %v4147 = vand.u32 %v4146, 4294901760
    %4148 = vmatpush2.msra.mxu0 %v4147
    %4149 = vmatprep.subr.mxu0 0.0
    %v4150 = vand.u32 %v3246, 4294901760
    %v4151 = vsub.f32 %v3246, %v4150
    %v4152 = vand.u32 %v4151, 4294901760
    %4153 = vmatpush2.msra.mxu0 %v4152
    %4154 = vmatprep.subr.mxu0 0.0
    %v4155 = vand.u32 %v3240, 4294901760
    %v4156 = vsub.f32 %v3240, %v4155
    %v4157 = vand.u32 %v4156, 4294901760
    %4158 = vmatpush2.msra.mxu0 %v4157
    %4159 = vmatprep.subr.mxu0 0.0
    %v4160 = vand.u32 %v3234, 4294901760
    %v4161 = vsub.f32 %v3234, %v4160
    %v4162 = vand.u32 %v4161, 4294901760
    %4163 = vmatpush2.msra.mxu0 %v4162
    %4164 = vmatprep.subr.mxu0 0.0
    %v4165 = vand.u32 %v3228, 4294901760
    %v4166 = vsub.f32 %v3228, %v4165
    %v4167 = vand.u32 %v4166, 4294901760
    %4168 = vmatpush2.msra.mxu0 %v4167
    %4169 = vmatprep.subr.mxu0 0.0
    %v4170 = vand.u32 %v3222, 4294901760
    %v4171 = vsub.f32 %v3222, %v4170
    %v4172 = vand.u32 %v4171, 4294901760
    %4173 = vmatpush2.msra.mxu0 %v4172
    %4174 = vmatprep.subr.mxu0 0.0
    %v4175 = vand.u32 %v3216, 4294901760
    %v4176 = vsub.f32 %v3216, %v4175
    %v4177 = vand.u32 %v4176, 4294901760
    %4178 = vmatpush2.msra.mxu0 %v4177
    %4179 = vmatprep.subr.mxu0 0.0
    %v4180 = vand.u32 %v3210, 4294901760
    %v4181 = vsub.f32 %v3210, %v4180
    %v4182 = vand.u32 %v4181, 4294901760
    %4183 = vmatpush2.msra.mxu0 %v4182
    %4184 = vmatprep.subr.mxu0 0.0
    %v4185 = vand.u32 %v3204, 4294901760
    %v4186 = vsub.f32 %v3204, %v4185
    %v4187 = vand.u32 %v4186, 4294901760
    %4188 = vmatpush2.msra.mxu0 %v4187
    %4189 = vmatprep.subr.mxu0 0.0
    %v4190 = vand.u32 %v3198, 4294901760
    %v4191 = vsub.f32 %v3198, %v4190
    %v4192 = vand.u32 %v4191, 4294901760
    %4193 = vmatpush2.msra.mxu0 %v4192
    %4194 = vmatprep.subr.mxu0 0.0
    %v4195 = vand.u32 %v3192, 4294901760
    %v4196 = vsub.f32 %v3192, %v4195
    %v4197 = vand.u32 %v4196, 4294901760
    %4198 = vmatpush2.msra.mxu0 %v4197
    %4199 = vmatprep.subr.mxu0 0.0
    %v4200 = vand.u32 %v3186, 4294901760
    %v4201 = vsub.f32 %v3186, %v4200
    %v4202 = vand.u32 %v4201, 4294901760
    %4203 = vmatpush2.msra.mxu0 %v4202
    %4204 = vmatprep.subr.mxu0 0.0
    %v4205 = vand.u32 %v3180, 4294901760
    %v4206 = vsub.f32 %v3180, %v4205
    %v4207 = vand.u32 %v4206, 4294901760
    %4208 = vmatpush2.msra.mxu0 %v4207
    %4209 = vmatprep.subr.mxu0 0.0
    %v4210 = vand.u32 %v3174, 4294901760
    %v4211 = vsub.f32 %v3174, %v4210
    %v4212 = vand.u32 %v4211, 4294901760
    %4213 = vmatpush2.msra.mxu0 %v4212
    %v4214 = vand.u32 %v3460, 4294901760
    %4215 = vmatprep.mubr.f32.mxu0 %v4214
    %v4216 = vand.u32 %v3459, 4294901760
    %4217 = vmatmul.mubr.f32.gmra.mxu0 %v4216
    %v4218 = vpop.f32.mrf.mxu0
    %v4219 = vadd.f32 %v4051, %v4218
    %v4220 = vpop.f32.mrf.mxu0
    %4221 = vdwg.mxu0
    %4222 = vmatprep.subr.mxu0 0.0
    %v4223 = vand.u32 %v3168, 4294901760
    %4224 = vmatpush1.msra.mxu0 %v4223
    %4225 = vmatprep.subr.mxu0 0.0
    %v4226 = vand.u32 %v3162, 4294901760
    %4227 = vmatpush1.msra.mxu0 %v4226
    %4228 = vmatprep.subr.mxu0 0.0
    %v4229 = vand.u32 %v3156, 4294901760
    %4230 = vmatpush1.msra.mxu0 %v4229
    %4231 = vmatprep.subr.mxu0 0.0
    %v4232 = vand.u32 %v3150, 4294901760
    %4233 = vmatpush1.msra.mxu0 %v4232
    %4234 = vmatprep.subr.mxu0 0.0
    %v4235 = vand.u32 %v3144, 4294901760
    %4236 = vmatpush1.msra.mxu0 %v4235
    %4237 = vmatprep.subr.mxu0 0.0
    %v4238 = vand.u32 %v3138, 4294901760
    %4239 = vmatpush1.msra.mxu0 %v4238
    %4240 = vmatprep.subr.mxu0 0.0
    %v4241 = vand.u32 %v3132, 4294901760
    %4242 = vmatpush1.msra.mxu0 %v4241
    %4243 = vmatprep.subr.mxu0 0.0
    %v4244 = vand.u32 %v3126, 4294901760
    %4245 = vmatpush1.msra.mxu0 %v4244
    %4246 = vmatprep.subr.mxu0 0.0
    %v4247 = vand.u32 %v3120, 4294901760
    %4248 = vmatpush1.msra.mxu0 %v4247
    %4249 = vmatprep.subr.mxu0 0.0
    %v4250 = vand.u32 %v3114, 4294901760
    %4251 = vmatpush1.msra.mxu0 %v4250
    %4252 = vmatprep.subr.mxu0 0.0
    %v4253 = vand.u32 %v3108, 4294901760
    %4254 = vmatpush1.msra.mxu0 %v4253
    %4255 = vmatprep.subr.mxu0 0.0
    %v4256 = vand.u32 %v3102, 4294901760
    %4257 = vmatpush1.msra.mxu0 %v4256
    %4258 = vmatprep.subr.mxu0 0.0
    %v4259 = vand.u32 %v3096, 4294901760
    %4260 = vmatpush1.msra.mxu0 %v4259
    %4261 = vmatprep.subr.mxu0 0.0
    %v4262 = vand.u32 %v3090, 4294901760
    %4263 = vmatpush1.msra.mxu0 %v4262
    %4264 = vmatprep.subr.mxu0 0.0
    %v4265 = vand.u32 %v3084, 4294901760
    %4266 = vmatpush1.msra.mxu0 %v4265
    %4267 = vmatprep.subr.mxu0 0.0
    %v4268 = vand.u32 %v3078, 4294901760
    %4269 = vmatpush1.msra.mxu0 %v4268
    %4270 = vmatprep.subr.mxu0 0.0
    %v4271 = vand.u32 %v3264, 4294901760
    %4272 = vmatpush2.msra.mxu0 %v4271
    %4273 = vmatprep.subr.mxu0 0.0
    %v4274 = vand.u32 %v3258, 4294901760
    %4275 = vmatpush2.msra.mxu0 %v4274
    %4276 = vmatprep.subr.mxu0 0.0
    %v4277 = vand.u32 %v3252, 4294901760
    %4278 = vmatpush2.msra.mxu0 %v4277
    %4279 = vmatprep.subr.mxu0 0.0
    %v4280 = vand.u32 %v3246, 4294901760
    %4281 = vmatpush2.msra.mxu0 %v4280
    %4282 = vmatprep.subr.mxu0 0.0
    %v4283 = vand.u32 %v3240, 4294901760
    %4284 = vmatpush2.msra.mxu0 %v4283
    %4285 = vmatprep.subr.mxu0 0.0
    %v4286 = vand.u32 %v3234, 4294901760
    %4287 = vmatpush2.msra.mxu0 %v4286
    %4288 = vmatprep.subr.mxu0 0.0
    %v4289 = vand.u32 %v3228, 4294901760
    %4290 = vmatpush2.msra.mxu0 %v4289
    %4291 = vmatprep.subr.mxu0 0.0
    %v4292 = vand.u32 %v3222, 4294901760
    %4293 = vmatpush2.msra.mxu0 %v4292
    %4294 = vmatprep.subr.mxu0 0.0
    %v4295 = vand.u32 %v3216, 4294901760
    %4296 = vmatpush2.msra.mxu0 %v4295
    %4297 = vmatprep.subr.mxu0 0.0
    %v4298 = vand.u32 %v3210, 4294901760
    %4299 = vmatpush2.msra.mxu0 %v4298
    %4300 = vmatprep.subr.mxu0 0.0
    %v4301 = vand.u32 %v3204, 4294901760
    %4302 = vmatpush2.msra.mxu0 %v4301
    %4303 = vmatprep.subr.mxu0 0.0
    %v4304 = vand.u32 %v3198, 4294901760
    %4305 = vmatpush2.msra.mxu0 %v4304
    %4306 = vmatprep.subr.mxu0 0.0
    %v4307 = vand.u32 %v3192, 4294901760
    %4308 = vmatpush2.msra.mxu0 %v4307
    %4309 = vmatprep.subr.mxu0 0.0
    %v4310 = vand.u32 %v3186, 4294901760
    %4311 = vmatpush2.msra.mxu0 %v4310
    %4312 = vmatprep.subr.mxu0 0.0
    %v4313 = vand.u32 %v3180, 4294901760
    %4314 = vmatpush2.msra.mxu0 %v4313
    %4315 = vmatprep.subr.mxu0 0.0
    %v4316 = vand.u32 %v3174, 4294901760
    %4317 = vmatpush2.msra.mxu0 %v4316
    %v4318 = vand.u32 %v3460, 4294901760
    %4319 = vmatprep.mubr.f32.mxu0 %v4318
    %v4320 = vand.u32 %v3459, 4294901760
    %4321 = vmatmul.mubr.f32.gmra.mxu0 %v4320
    %v4322 = vpop.f32.mrf.mxu0
    %v4323 = vadd.f32 %v4219, %v4322
    %v4324 = vpop.f32.mrf.mxu0
    %4325 = vdwg.mxu0
    %4326 = vmatprep.subr.mxu0 0.0
    %v4327 = vand.u32 %v3360, 4294901760
    %4328 = vmatpush1.msra.mxu0 %v4327
    %4329 = vmatprep.subr.mxu0 0.0
    %v4330 = vand.u32 %v3354, 4294901760
    %4331 = vmatpush1.msra.mxu0 %v4330
    %4332 = vmatprep.subr.mxu0 0.0
    %v4333 = vand.u32 %v3348, 4294901760
    %4334 = vmatpush1.msra.mxu0 %v4333
    %4335 = vmatprep.subr.mxu0 0.0
    %v4336 = vand.u32 %v3342, 4294901760
    %4337 = vmatpush1.msra.mxu0 %v4336
    %4338 = vmatprep.subr.mxu0 0.0
    %v4339 = vand.u32 %v3336, 4294901760
    %4340 = vmatpush1.msra.mxu0 %v4339
    %4341 = vmatprep.subr.mxu0 0.0
    %v4342 = vand.u32 %v3330, 4294901760
    %4343 = vmatpush1.msra.mxu0 %v4342
    %4344 = vmatprep.subr.mxu0 0.0
    %v4345 = vand.u32 %v3324, 4294901760
    %4346 = vmatpush1.msra.mxu0 %v4345
    %4347 = vmatprep.subr.mxu0 0.0
    %v4348 = vand.u32 %v3318, 4294901760
    %4349 = vmatpush1.msra.mxu0 %v4348
    %4350 = vmatprep.subr.mxu0 0.0
    %v4351 = vand.u32 %v3312, 4294901760
    %4352 = vmatpush1.msra.mxu0 %v4351
    %4353 = vmatprep.subr.mxu0 0.0
    %v4354 = vand.u32 %v3306, 4294901760
    %4355 = vmatpush1.msra.mxu0 %v4354
    %4356 = vmatprep.subr.mxu0 0.0
    %v4357 = vand.u32 %v3300, 4294901760
    %4358 = vmatpush1.msra.mxu0 %v4357
    %4359 = vmatprep.subr.mxu0 0.0
    %v4360 = vand.u32 %v3294, 4294901760
    %4361 = vmatpush1.msra.mxu0 %v4360
    %4362 = vmatprep.subr.mxu0 0.0
    %v4363 = vand.u32 %v3288, 4294901760
    %4364 = vmatpush1.msra.mxu0 %v4363
    %4365 = vmatprep.subr.mxu0 0.0
    %v4366 = vand.u32 %v3282, 4294901760
    %4367 = vmatpush1.msra.mxu0 %v4366
    %4368 = vmatprep.subr.mxu0 0.0
    %v4369 = vand.u32 %v3276, 4294901760
    %4370 = vmatpush1.msra.mxu0 %v4369
    %4371 = vmatprep.subr.mxu0 0.0
    %v4372 = vand.u32 %v3270, 4294901760
    %4373 = vmatpush1.msra.mxu0 %v4372
    %4374 = vmatprep.subr.mxu0 0.0
    %v4375 = vand.u32 %v3456, 4294901760
    %4376 = vmatpush2.msra.mxu0 %v4375
    %4377 = vmatprep.subr.mxu0 0.0
    %v4378 = vand.u32 %v3450, 4294901760
    %4379 = vmatpush2.msra.mxu0 %v4378
    %4380 = vmatprep.subr.mxu0 0.0
    %v4381 = vand.u32 %v3444, 4294901760
    %4382 = vmatpush2.msra.mxu0 %v4381
    %4383 = vmatprep.subr.mxu0 0.0
    %v4384 = vand.u32 %v3438, 4294901760
    %4385 = vmatpush2.msra.mxu0 %v4384
    %4386 = vmatprep.subr.mxu0 0.0
    %v4387 = vand.u32 %v3432, 4294901760
    %4388 = vmatpush2.msra.mxu0 %v4387
    %4389 = vmatprep.subr.mxu0 0.0
    %v4390 = vand.u32 %v3426, 4294901760
    %4391 = vmatpush2.msra.mxu0 %v4390
    %4392 = vmatprep.subr.mxu0 0.0
    %v4393 = vand.u32 %v3420, 4294901760
    %4394 = vmatpush2.msra.mxu0 %v4393
    %4395 = vmatprep.subr.mxu0 0.0
    %v4396 = vand.u32 %v3414, 4294901760
    %4397 = vmatpush2.msra.mxu0 %v4396
    %4398 = vmatprep.subr.mxu0 0.0
    %v4399 = vand.u32 %v3408, 4294901760
    %4400 = vmatpush2.msra.mxu0 %v4399
    %4401 = vmatprep.subr.mxu0 0.0
    %v4402 = vand.u32 %v3402, 4294901760
    %4403 = vmatpush2.msra.mxu0 %v4402
    %4404 = vmatprep.subr.mxu0 0.0
    %v4405 = vand.u32 %v3396, 4294901760
    %4406 = vmatpush2.msra.mxu0 %v4405
    %4407 = vmatprep.subr.mxu0 0.0
    %v4408 = vand.u32 %v3390, 4294901760
    %4409 = vmatpush2.msra.mxu0 %v4408
    %4410 = vmatprep.subr.mxu0 0.0
    %v4411 = vand.u32 %v3384, 4294901760
    %4412 = vmatpush2.msra.mxu0 %v4411
    %4413 = vmatprep.subr.mxu0 0.0
    %v4414 = vand.u32 %v3378, 4294901760
    %4415 = vmatpush2.msra.mxu0 %v4414
    %4416 = vmatprep.subr.mxu0 0.0
    %v4417 = vand.u32 %v3372, 4294901760
    %4418 = vmatpush2.msra.mxu0 %v4417
    %4419 = vmatprep.subr.mxu0 0.0
    %v4420 = vand.u32 %v3366, 4294901760
    %4421 = vmatpush2.msra.mxu0 %v4420
    %v4422 = vand.u32 %v3462, 4294901760
    %v4423 = vsub.f32 %v3462, %v4422
    %v4424 = vand.u32 %v4423, 4294901760
    %v4425 = vsub.f32 %v4423, %v4424
    %v4426 = vand.u32 %v4425, 4294901760
    %4427 = vmatprep.mubr.f32.mxu0 %v4426
    %v4428 = vand.u32 %v3461, 4294901760
    %v4429 = vsub.f32 %v3461, %v4428
    %v4430 = vand.u32 %v4429, 4294901760
    %v4431 = vsub.f32 %v4429, %v4430
    %v4432 = vand.u32 %v4431, 4294901760
    %4433 = vmatmul.mubr.f32.gmra.mxu0 %v4432
    %v4434 = vpop.f32.mrf.mxu0
    %v4435 = vadd.f32 %v4323, %v4434
    %v4436 = vpop.f32.mrf.mxu0
    %4437 = vdwg.mxu0
    %4438 = vmatprep.subr.mxu0 0.0
    %v4439 = vand.u32 %v3360, 4294901760
    %v4440 = vsub.f32 %v3360, %v4439
    %v4441 = vand.u32 %v4440, 4294901760
    %v4442 = vsub.f32 %v4440, %v4441
    %v4443 = vand.u32 %v4442, 4294901760
    %4444 = vmatpush1.msra.mxu0 %v4443
    %4445 = vmatprep.subr.mxu0 0.0
    %v4446 = vand.u32 %v3354, 4294901760
    %v4447 = vsub.f32 %v3354, %v4446
    %v4448 = vand.u32 %v4447, 4294901760
    %v4449 = vsub.f32 %v4447, %v4448
    %v4450 = vand.u32 %v4449, 4294901760
    %4451 = vmatpush1.msra.mxu0 %v4450
    %4452 = vmatprep.subr.mxu0 0.0
    %v4453 = vand.u32 %v3348, 4294901760
    %v4454 = vsub.f32 %v3348, %v4453
    %v4455 = vand.u32 %v4454, 4294901760
    %v4456 = vsub.f32 %v4454, %v4455
    %v4457 = vand.u32 %v4456, 4294901760
    %4458 = vmatpush1.msra.mxu0 %v4457
    %4459 = vmatprep.subr.mxu0 0.0
    %v4460 = vand.u32 %v3342, 4294901760
    %v4461 = vsub.f32 %v3342, %v4460
    %v4462 = vand.u32 %v4461, 4294901760
    %v4463 = vsub.f32 %v4461, %v4462
    %v4464 = vand.u32 %v4463, 4294901760
    %4465 = vmatpush1.msra.mxu0 %v4464
    %4466 = vmatprep.subr.mxu0 0.0
    %v4467 = vand.u32 %v3336, 4294901760
    %v4468 = vsub.f32 %v3336, %v4467
    %v4469 = vand.u32 %v4468, 4294901760
    %v4470 = vsub.f32 %v4468, %v4469
    %v4471 = vand.u32 %v4470, 4294901760
    %4472 = vmatpush1.msra.mxu0 %v4471
    %4473 = vmatprep.subr.mxu0 0.0
    %v4474 = vand.u32 %v3330, 4294901760
    %v4475 = vsub.f32 %v3330, %v4474
    %v4476 = vand.u32 %v4475, 4294901760
    %v4477 = vsub.f32 %v4475, %v4476
    %v4478 = vand.u32 %v4477, 4294901760
    %4479 = vmatpush1.msra.mxu0 %v4478
    %4480 = vmatprep.subr.mxu0 0.0
    %v4481 = vand.u32 %v3324, 4294901760
    %v4482 = vsub.f32 %v3324, %v4481
    %v4483 = vand.u32 %v4482, 4294901760
    %v4484 = vsub.f32 %v4482, %v4483
    %v4485 = vand.u32 %v4484, 4294901760
    %4486 = vmatpush1.msra.mxu0 %v4485
    %4487 = vmatprep.subr.mxu0 0.0
    %v4488 = vand.u32 %v3318, 4294901760
    %v4489 = vsub.f32 %v3318, %v4488
    %v4490 = vand.u32 %v4489, 4294901760
    %v4491 = vsub.f32 %v4489, %v4490
    %v4492 = vand.u32 %v4491, 4294901760
    %4493 = vmatpush1.msra.mxu0 %v4492
    %4494 = vmatprep.subr.mxu0 0.0
    %v4495 = vand.u32 %v3312, 4294901760
    %v4496 = vsub.f32 %v3312, %v4495
    %v4497 = vand.u32 %v4496, 4294901760
    %v4498 = vsub.f32 %v4496, %v4497
    %v4499 = vand.u32 %v4498, 4294901760
    %4500 = vmatpush1.msra.mxu0 %v4499
    %4501 = vmatprep.subr.mxu0 0.0
    %v4502 = vand.u32 %v3306, 4294901760
    %v4503 = vsub.f32 %v3306, %v4502
    %v4504 = vand.u32 %v4503, 4294901760
    %v4505 = vsub.f32 %v4503, %v4504
    %v4506 = vand.u32 %v4505, 4294901760
    %4507 = vmatpush1.msra.mxu0 %v4506
    %4508 = vmatprep.subr.mxu0 0.0
    %v4509 = vand.u32 %v3300, 4294901760
    %v4510 = vsub.f32 %v3300, %v4509
    %v4511 = vand.u32 %v4510, 4294901760
    %v4512 = vsub.f32 %v4510, %v4511
    %v4513 = vand.u32 %v4512, 4294901760
    %4514 = vmatpush1.msra.mxu0 %v4513
    %4515 = vmatprep.subr.mxu0 0.0
    %v4516 = vand.u32 %v3294, 4294901760
    %v4517 = vsub.f32 %v3294, %v4516
    %v4518 = vand.u32 %v4517, 4294901760
    %v4519 = vsub.f32 %v4517, %v4518
    %v4520 = vand.u32 %v4519, 4294901760
    %4521 = vmatpush1.msra.mxu0 %v4520
    %4522 = vmatprep.subr.mxu0 0.0
    %v4523 = vand.u32 %v3288, 4294901760
    %v4524 = vsub.f32 %v3288, %v4523
    %v4525 = vand.u32 %v4524, 4294901760
    %v4526 = vsub.f32 %v4524, %v4525
    %v4527 = vand.u32 %v4526, 4294901760
    %4528 = vmatpush1.msra.mxu0 %v4527
    %4529 = vmatprep.subr.mxu0 0.0
    %v4530 = vand.u32 %v3282, 4294901760
    %v4531 = vsub.f32 %v3282, %v4530
    %v4532 = vand.u32 %v4531, 4294901760
    %v4533 = vsub.f32 %v4531, %v4532
    %v4534 = vand.u32 %v4533, 4294901760
    %4535 = vmatpush1.msra.mxu0 %v4534
    %4536 = vmatprep.subr.mxu0 0.0
    %v4537 = vand.u32 %v3276, 4294901760
    %v4538 = vsub.f32 %v3276, %v4537
    %v4539 = vand.u32 %v4538, 4294901760
    %v4540 = vsub.f32 %v4538, %v4539
    %v4541 = vand.u32 %v4540, 4294901760
    %4542 = vmatpush1.msra.mxu0 %v4541
    %4543 = vmatprep.subr.mxu0 0.0
    %v4544 = vand.u32 %v3270, 4294901760
    %v4545 = vsub.f32 %v3270, %v4544
    %v4546 = vand.u32 %v4545, 4294901760
    %v4547 = vsub.f32 %v4545, %v4546
    %v4548 = vand.u32 %v4547, 4294901760
    %4549 = vmatpush1.msra.mxu0 %v4548
    %4550 = vmatprep.subr.mxu0 0.0
    %v4551 = vand.u32 %v3456, 4294901760
    %v4552 = vsub.f32 %v3456, %v4551
    %v4553 = vand.u32 %v4552, 4294901760
    %v4554 = vsub.f32 %v4552, %v4553
    %v4555 = vand.u32 %v4554, 4294901760
    %4556 = vmatpush2.msra.mxu0 %v4555
    %4557 = vmatprep.subr.mxu0 0.0
    %v4558 = vand.u32 %v3450, 4294901760
    %v4559 = vsub.f32 %v3450, %v4558
    %v4560 = vand.u32 %v4559, 4294901760
    %v4561 = vsub.f32 %v4559, %v4560
    %v4562 = vand.u32 %v4561, 4294901760
    %4563 = vmatpush2.msra.mxu0 %v4562
    %4564 = vmatprep.subr.mxu0 0.0
    %v4565 = vand.u32 %v3444, 4294901760
    %v4566 = vsub.f32 %v3444, %v4565
    %v4567 = vand.u32 %v4566, 4294901760
    %v4568 = vsub.f32 %v4566, %v4567
    %v4569 = vand.u32 %v4568, 4294901760
    %4570 = vmatpush2.msra.mxu0 %v4569
    %4571 = vmatprep.subr.mxu0 0.0
    %v4572 = vand.u32 %v3438, 4294901760
    %v4573 = vsub.f32 %v3438, %v4572
    %v4574 = vand.u32 %v4573, 4294901760
    %v4575 = vsub.f32 %v4573, %v4574
    %v4576 = vand.u32 %v4575, 4294901760
    %4577 = vmatpush2.msra.mxu0 %v4576
    %4578 = vmatprep.subr.mxu0 0.0
    %v4579 = vand.u32 %v3432, 4294901760
    %v4580 = vsub.f32 %v3432, %v4579
    %v4581 = vand.u32 %v4580, 4294901760
    %v4582 = vsub.f32 %v4580, %v4581
    %v4583 = vand.u32 %v4582, 4294901760
    %4584 = vmatpush2.msra.mxu0 %v4583
    %4585 = vmatprep.subr.mxu0 0.0
    %v4586 = vand.u32 %v3426, 4294901760
    %v4587 = vsub.f32 %v3426, %v4586
    %v4588 = vand.u32 %v4587, 4294901760
    %v4589 = vsub.f32 %v4587, %v4588
    %v4590 = vand.u32 %v4589, 4294901760
    %4591 = vmatpush2.msra.mxu0 %v4590
    %4592 = vmatprep.subr.mxu0 0.0
    %v4593 = vand.u32 %v3420, 4294901760
    %v4594 = vsub.f32 %v3420, %v4593
    %v4595 = vand.u32 %v4594, 4294901760
    %v4596 = vsub.f32 %v4594, %v4595
    %v4597 = vand.u32 %v4596, 4294901760
    %4598 = vmatpush2.msra.mxu0 %v4597
    %4599 = vmatprep.subr.mxu0 0.0
    %v4600 = vand.u32 %v3414, 4294901760
    %v4601 = vsub.f32 %v3414, %v4600
    %v4602 = vand.u32 %v4601, 4294901760
    %v4603 = vsub.f32 %v4601, %v4602
    %v4604 = vand.u32 %v4603, 4294901760
    %4605 = vmatpush2.msra.mxu0 %v4604
    %4606 = vmatprep.subr.mxu0 0.0
    %v4607 = vand.u32 %v3408, 4294901760
    %v4608 = vsub.f32 %v3408, %v4607
    %v4609 = vand.u32 %v4608, 4294901760
    %v4610 = vsub.f32 %v4608, %v4609
    %v4611 = vand.u32 %v4610, 4294901760
    %4612 = vmatpush2.msra.mxu0 %v4611
    %4613 = vmatprep.subr.mxu0 0.0
    %v4614 = vand.u32 %v3402, 4294901760
    %v4615 = vsub.f32 %v3402, %v4614
    %v4616 = vand.u32 %v4615, 4294901760
    %v4617 = vsub.f32 %v4615, %v4616
    %v4618 = vand.u32 %v4617, 4294901760
    %4619 = vmatpush2.msra.mxu0 %v4618
    %4620 = vmatprep.subr.mxu0 0.0
    %v4621 = vand.u32 %v3396, 4294901760
    %v4622 = vsub.f32 %v3396, %v4621
    %v4623 = vand.u32 %v4622, 4294901760
    %v4624 = vsub.f32 %v4622, %v4623
    %v4625 = vand.u32 %v4624, 4294901760
    %4626 = vmatpush2.msra.mxu0 %v4625
    %4627 = vmatprep.subr.mxu0 0.0
    %v4628 = vand.u32 %v3390, 4294901760
    %v4629 = vsub.f32 %v3390, %v4628
    %v4630 = vand.u32 %v4629, 4294901760
    %v4631 = vsub.f32 %v4629, %v4630
    %v4632 = vand.u32 %v4631, 4294901760
    %4633 = vmatpush2.msra.mxu0 %v4632
    %4634 = vmatprep.subr.mxu0 0.0
    %v4635 = vand.u32 %v3384, 4294901760
    %v4636 = vsub.f32 %v3384, %v4635
    %v4637 = vand.u32 %v4636, 4294901760
    %v4638 = vsub.f32 %v4636, %v4637
    %v4639 = vand.u32 %v4638, 4294901760
    %4640 = vmatpush2.msra.mxu0 %v4639
    %4641 = vmatprep.subr.mxu0 0.0
    %v4642 = vand.u32 %v3378, 4294901760
    %v4643 = vsub.f32 %v3378, %v4642
    %v4644 = vand.u32 %v4643, 4294901760
    %v4645 = vsub.f32 %v4643, %v4644
    %v4646 = vand.u32 %v4645, 4294901760
    %4647 = vmatpush2.msra.mxu0 %v4646
    %4648 = vmatprep.subr.mxu0 0.0
    %v4649 = vand.u32 %v3372, 4294901760
    %v4650 = vsub.f32 %v3372, %v4649
    %v4651 = vand.u32 %v4650, 4294901760
    %v4652 = vsub.f32 %v4650, %v4651
    %v4653 = vand.u32 %v4652, 4294901760
    %4654 = vmatpush2.msra.mxu0 %v4653
    %4655 = vmatprep.subr.mxu0 0.0
    %v4656 = vand.u32 %v3366, 4294901760
    %v4657 = vsub.f32 %v3366, %v4656
    %v4658 = vand.u32 %v4657, 4294901760
    %v4659 = vsub.f32 %v4657, %v4658
    %v4660 = vand.u32 %v4659, 4294901760
    %4661 = vmatpush2.msra.mxu0 %v4660
    %v4662 = vand.u32 %v3462, 4294901760
    %4663 = vmatprep.mubr.f32.mxu0 %v4662
    %v4664 = vand.u32 %v3461, 4294901760
    %4665 = vmatmul.mubr.f32.gmra.mxu0 %v4664
    %v4666 = vpop.f32.mrf.mxu0
    %v4667 = vadd.f32 %v4435, %v4666
    %v4668 = vpop.f32.mrf.mxu0
    %4669 = vdwg.mxu0
    %4670 = vmatprep.subr.mxu0 0.0
    %v4671 = vand.u32 %v3360, 4294901760
    %v4672 = vsub.f32 %v3360, %v4671
    %4673 = vmatpush1.msra.mxu0 %v4672
    %4674 = vmatprep.subr.mxu0 0.0
    %v4675 = vand.u32 %v3354, 4294901760
    %v4676 = vsub.f32 %v3354, %v4675
    %4677 = vmatpush1.msra.mxu0 %v4676
    %4678 = vmatprep.subr.mxu0 0.0
    %v4679 = vand.u32 %v3348, 4294901760
    %v4680 = vsub.f32 %v3348, %v4679
    %4681 = vmatpush1.msra.mxu0 %v4680
    %4682 = vmatprep.subr.mxu0 0.0
    %v4683 = vand.u32 %v3342, 4294901760
    %v4684 = vsub.f32 %v3342, %v4683
    %4685 = vmatpush1.msra.mxu0 %v4684
    %4686 = vmatprep.subr.mxu0 0.0
    %v4687 = vand.u32 %v3336, 4294901760
    %v4688 = vsub.f32 %v3336, %v4687
    %4689 = vmatpush1.msra.mxu0 %v4688
    %4690 = vmatprep.subr.mxu0 0.0
    %v4691 = vand.u32 %v3330, 4294901760
    %v4692 = vsub.f32 %v3330, %v4691
    %4693 = vmatpush1.msra.mxu0 %v4692
    %4694 = vmatprep.subr.mxu0 0.0
    %v4695 = vand.u32 %v3324, 4294901760
    %v4696 = vsub.f32 %v3324, %v4695
    %4697 = vmatpush1.msra.mxu0 %v4696
    %4698 = vmatprep.subr.mxu0 0.0
    %v4699 = vand.u32 %v3318, 4294901760
    %v4700 = vsub.f32 %v3318, %v4699
    %4701 = vmatpush1.msra.mxu0 %v4700
    %4702 = vmatprep.subr.mxu0 0.0
    %v4703 = vand.u32 %v3312, 4294901760
    %v4704 = vsub.f32 %v3312, %v4703
    %4705 = vmatpush1.msra.mxu0 %v4704
    %4706 = vmatprep.subr.mxu0 0.0
    %v4707 = vand.u32 %v3306, 4294901760
    %v4708 = vsub.f32 %v3306, %v4707
    %4709 = vmatpush1.msra.mxu0 %v4708
    %4710 = vmatprep.subr.mxu0 0.0
    %v4711 = vand.u32 %v3300, 4294901760
    %v4712 = vsub.f32 %v3300, %v4711
    %4713 = vmatpush1.msra.mxu0 %v4712
    %4714 = vmatprep.subr.mxu0 0.0
    %v4715 = vand.u32 %v3294, 4294901760
    %v4716 = vsub.f32 %v3294, %v4715
    %4717 = vmatpush1.msra.mxu0 %v4716
    %4718 = vmatprep.subr.mxu0 0.0
    %v4719 = vand.u32 %v3288, 4294901760
    %v4720 = vsub.f32 %v3288, %v4719
    %4721 = vmatpush1.msra.mxu0 %v4720
    %4722 = vmatprep.subr.mxu0 0.0
    %v4723 = vand.u32 %v3282, 4294901760
    %v4724 = vsub.f32 %v3282, %v4723
    %4725 = vmatpush1.msra.mxu0 %v4724
    %4726 = vmatprep.subr.mxu0 0.0
    %v4727 = vand.u32 %v3276, 4294901760
    %v4728 = vsub.f32 %v3276, %v4727
    %4729 = vmatpush1.msra.mxu0 %v4728
    %4730 = vmatprep.subr.mxu0 0.0
    %v4731 = vand.u32 %v3270, 4294901760
    %v4732 = vsub.f32 %v3270, %v4731
    %4733 = vmatpush1.msra.mxu0 %v4732
    %4734 = vmatprep.subr.mxu0 0.0
    %v4735 = vand.u32 %v3456, 4294901760
    %v4736 = vsub.f32 %v3456, %v4735
    %4737 = vmatpush2.msra.mxu0 %v4736
    %4738 = vmatprep.subr.mxu0 0.0
    %v4739 = vand.u32 %v3450, 4294901760
    %v4740 = vsub.f32 %v3450, %v4739
    %4741 = vmatpush2.msra.mxu0 %v4740
    %4742 = vmatprep.subr.mxu0 0.0
    %v4743 = vand.u32 %v3444, 4294901760
    %v4744 = vsub.f32 %v3444, %v4743
    %4745 = vmatpush2.msra.mxu0 %v4744
    %4746 = vmatprep.subr.mxu0 0.0
    %v4747 = vand.u32 %v3438, 4294901760
    %v4748 = vsub.f32 %v3438, %v4747
    %4749 = vmatpush2.msra.mxu0 %v4748
    %4750 = vmatprep.subr.mxu0 0.0
    %v4751 = vand.u32 %v3432, 4294901760
    %v4752 = vsub.f32 %v3432, %v4751
    %4753 = vmatpush2.msra.mxu0 %v4752
    %4754 = vmatprep.subr.mxu0 0.0
    %v4755 = vand.u32 %v3426, 4294901760
    %v4756 = vsub.f32 %v3426, %v4755
    %4757 = vmatpush2.msra.mxu0 %v4756
    %4758 = vmatprep.subr.mxu0 0.0
    %v4759 = vand.u32 %v3420, 4294901760
    %v4760 = vsub.f32 %v3420, %v4759
    %4761 = vmatpush2.msra.mxu0 %v4760
    %4762 = vmatprep.subr.mxu0 0.0
    %v4763 = vand.u32 %v3414, 4294901760
    %v4764 = vsub.f32 %v3414, %v4763
    %4765 = vmatpush2.msra.mxu0 %v4764
    %4766 = vmatprep.subr.mxu0 0.0
    %v4767 = vand.u32 %v3408, 4294901760
    %v4768 = vsub.f32 %v3408, %v4767
    %4769 = vmatpush2.msra.mxu0 %v4768
    %4770 = vmatprep.subr.mxu0 0.0
    %v4771 = vand.u32 %v3402, 4294901760
    %v4772 = vsub.f32 %v3402, %v4771
    %4773 = vmatpush2.msra.mxu0 %v4772
    %4774 = vmatprep.subr.mxu0 0.0
    %v4775 = vand.u32 %v3396, 4294901760
    %v4776 = vsub.f32 %v3396, %v4775
    %4777 = vmatpush2.msra.mxu0 %v4776
    %4778 = vmatprep.subr.mxu0 0.0
    %v4779 = vand.u32 %v3390, 4294901760
    %v4780 = vsub.f32 %v3390, %v4779
    %4781 = vmatpush2.msra.mxu0 %v4780
    %4782 = vmatprep.subr.mxu0 0.0
    %v4783 = vand.u32 %v3384, 4294901760
    %v4784 = vsub.f32 %v3384, %v4783
    %4785 = vmatpush2.msra.mxu0 %v4784
    %4786 = vmatprep.subr.mxu0 0.0
    %v4787 = vand.u32 %v3378, 4294901760
    %v4788 = vsub.f32 %v3378, %v4787
    %4789 = vmatpush2.msra.mxu0 %v4788
    %4790 = vmatprep.subr.mxu0 0.0
    %v4791 = vand.u32 %v3372, 4294901760
    %v4792 = vsub.f32 %v3372, %v4791
    %4793 = vmatpush2.msra.mxu0 %v4792
    %4794 = vmatprep.subr.mxu0 0.0
    %v4795 = vand.u32 %v3366, 4294901760
    %v4796 = vsub.f32 %v3366, %v4795
    %4797 = vmatpush2.msra.mxu0 %v4796
    %v4798 = vand.u32 %v3462, 4294901760
    %v4799 = vsub.f32 %v3462, %v4798
    %4800 = vmatprep.mubr.f32.mxu0 %v4799
    %v4801 = vand.u32 %v3461, 4294901760
    %v4802 = vsub.f32 %v3461, %v4801
    %4803 = vmatmul.mubr.f32.gmra.mxu0 %v4802
    %v4804 = vpop.f32.mrf.mxu0
    %v4805 = vadd.f32 %v4667, %v4804
    %v4806 = vpop.f32.mrf.mxu0
    %4807 = vdwg.mxu0
    %4808 = vmatprep.subr.mxu0 0.0
    %v4809 = vand.u32 %v3360, 4294901760
    %4810 = vmatpush1.msra.mxu0 %v4809
    %4811 = vmatprep.subr.mxu0 0.0
    %v4812 = vand.u32 %v3354, 4294901760
    %4813 = vmatpush1.msra.mxu0 %v4812
    %4814 = vmatprep.subr.mxu0 0.0
    %v4815 = vand.u32 %v3348, 4294901760
    %4816 = vmatpush1.msra.mxu0 %v4815
    %4817 = vmatprep.subr.mxu0 0.0
    %v4818 = vand.u32 %v3342, 4294901760
    %4819 = vmatpush1.msra.mxu0 %v4818
    %4820 = vmatprep.subr.mxu0 0.0
    %v4821 = vand.u32 %v3336, 4294901760
    %4822 = vmatpush1.msra.mxu0 %v4821
    %4823 = vmatprep.subr.mxu0 0.0
    %v4824 = vand.u32 %v3330, 4294901760
    %4825 = vmatpush1.msra.mxu0 %v4824
    %4826 = vmatprep.subr.mxu0 0.0
    %v4827 = vand.u32 %v3324, 4294901760
    %4828 = vmatpush1.msra.mxu0 %v4827
    %4829 = vmatprep.subr.mxu0 0.0
    %v4830 = vand.u32 %v3318, 4294901760
    %4831 = vmatpush1.msra.mxu0 %v4830
    %4832 = vmatprep.subr.mxu0 0.0
    %v4833 = vand.u32 %v3312, 4294901760
    %4834 = vmatpush1.msra.mxu0 %v4833
    %4835 = vmatprep.subr.mxu0 0.0
    %v4836 = vand.u32 %v3306, 4294901760
    %4837 = vmatpush1.msra.mxu0 %v4836
    %4838 = vmatprep.subr.mxu0 0.0
    %v4839 = vand.u32 %v3300, 4294901760
    %4840 = vmatpush1.msra.mxu0 %v4839
    %4841 = vmatprep.subr.mxu0 0.0
    %v4842 = vand.u32 %v3294, 4294901760
    %4843 = vmatpush1.msra.mxu0 %v4842
    %4844 = vmatprep.subr.mxu0 0.0
    %v4845 = vand.u32 %v3288, 4294901760
    %4846 = vmatpush1.msra.mxu0 %v4845
    %4847 = vmatprep.subr.mxu0 0.0
    %v4848 = vand.u32 %v3282, 4294901760
    %4849 = vmatpush1.msra.mxu0 %v4848
    %4850 = vmatprep.subr.mxu0 0.0
    %v4851 = vand.u32 %v3276, 4294901760
    %4852 = vmatpush1.msra.mxu0 %v4851
    %4853 = vmatprep.subr.mxu0 0.0
    %v4854 = vand.u32 %v3270, 4294901760
    %4855 = vmatpush1.msra.mxu0 %v4854
    %4856 = vmatprep.subr.mxu0 0.0
    %v4857 = vand.u32 %v3456, 4294901760
    %4858 = vmatpush2.msra.mxu0 %v4857
    %4859 = vmatprep.subr.mxu0 0.0
    %v4860 = vand.u32 %v3450, 4294901760
    %4861 = vmatpush2.msra.mxu0 %v4860
    %4862 = vmatprep.subr.mxu0 0.0
    %v4863 = vand.u32 %v3444, 4294901760
    %4864 = vmatpush2.msra.mxu0 %v4863
    %4865 = vmatprep.subr.mxu0 0.0
    %v4866 = vand.u32 %v3438, 4294901760
    %4867 = vmatpush2.msra.mxu0 %v4866
    %4868 = vmatprep.subr.mxu0 0.0
    %v4869 = vand.u32 %v3432, 4294901760
    %4870 = vmatpush2.msra.mxu0 %v4869
    %4871 = vmatprep.subr.mxu0 0.0
    %v4872 = vand.u32 %v3426, 4294901760
    %4873 = vmatpush2.msra.mxu0 %v4872
    %4874 = vmatprep.subr.mxu0 0.0
    %v4875 = vand.u32 %v3420, 4294901760
    %4876 = vmatpush2.msra.mxu0 %v4875
    %4877 = vmatprep.subr.mxu0 0.0
    %v4878 = vand.u32 %v3414, 4294901760
    %4879 = vmatpush2.msra.mxu0 %v4878
    %4880 = vmatprep.subr.mxu0 0.0
    %v4881 = vand.u32 %v3408, 4294901760
    %4882 = vmatpush2.msra.mxu0 %v4881
    %4883 = vmatprep.subr.mxu0 0.0
    %v4884 = vand.u32 %v3402, 4294901760
    %4885 = vmatpush2.msra.mxu0 %v4884
    %4886 = vmatprep.subr.mxu0 0.0
    %v4887 = vand.u32 %v3396, 4294901760
    %4888 = vmatpush2.msra.mxu0 %v4887
    %4889 = vmatprep.subr.mxu0 0.0
    %v4890 = vand.u32 %v3390, 4294901760
    %4891 = vmatpush2.msra.mxu0 %v4890
    %4892 = vmatprep.subr.mxu0 0.0
    %v4893 = vand.u32 %v3384, 4294901760
    %4894 = vmatpush2.msra.mxu0 %v4893
    %4895 = vmatprep.subr.mxu0 0.0
    %v4896 = vand.u32 %v3378, 4294901760
    %4897 = vmatpush2.msra.mxu0 %v4896
    %4898 = vmatprep.subr.mxu0 0.0
    %v4899 = vand.u32 %v3372, 4294901760
    %4900 = vmatpush2.msra.mxu0 %v4899
    %4901 = vmatprep.subr.mxu0 0.0
    %v4902 = vand.u32 %v3366, 4294901760
    %4903 = vmatpush2.msra.mxu0 %v4902
    %v4904 = vand.u32 %v3462, 4294901760
    %v4905 = vsub.f32 %v3462, %v4904
    %v4906 = vand.u32 %v4905, 4294901760
    %4907 = vmatprep.mubr.f32.mxu0 %v4906
    %v4908 = vand.u32 %v3461, 4294901760
    %v4909 = vsub.f32 %v3461, %v4908
    %v4910 = vand.u32 %v4909, 4294901760
    %4911 = vmatmul.mubr.f32.gmra.mxu0 %v4910
    %v4912 = vpop.f32.mrf.mxu0
    %v4913 = vadd.f32 %v4805, %v4912
    %v4914 = vpop.f32.mrf.mxu0
    %4915 = vdwg.mxu0
    %4916 = vmatprep.subr.mxu0 0.0
    %v4917 = vand.u32 %v3360, 4294901760
    %v4918 = vsub.f32 %v3360, %v4917
    %v4919 = vand.u32 %v4918, 4294901760
    %4920 = vmatpush1.msra.mxu0 %v4919
    %4921 = vmatprep.subr.mxu0 0.0
    %v4922 = vand.u32 %v3354, 4294901760
    %v4923 = vsub.f32 %v3354, %v4922
    %v4924 = vand.u32 %v4923, 4294901760
    %4925 = vmatpush1.msra.mxu0 %v4924
    %4926 = vmatprep.subr.mxu0 0.0
    %v4927 = vand.u32 %v3348, 4294901760
    %v4928 = vsub.f32 %v3348, %v4927
    %v4929 = vand.u32 %v4928, 4294901760
    %4930 = vmatpush1.msra.mxu0 %v4929
    %4931 = vmatprep.subr.mxu0 0.0
    %v4932 = vand.u32 %v3342, 4294901760
    %v4933 = vsub.f32 %v3342, %v4932
    %v4934 = vand.u32 %v4933, 4294901760
    %4935 = vmatpush1.msra.mxu0 %v4934
    %4936 = vmatprep.subr.mxu0 0.0
    %v4937 = vand.u32 %v3336, 4294901760
    %v4938 = vsub.f32 %v3336, %v4937
    %v4939 = vand.u32 %v4938, 4294901760
    %4940 = vmatpush1.msra.mxu0 %v4939
    %4941 = vmatprep.subr.mxu0 0.0
    %v4942 = vand.u32 %v3330, 4294901760
    %v4943 = vsub.f32 %v3330, %v4942
    %v4944 = vand.u32 %v4943, 4294901760
    %4945 = vmatpush1.msra.mxu0 %v4944
    %4946 = vmatprep.subr.mxu0 0.0
    %v4947 = vand.u32 %v3324, 4294901760
    %v4948 = vsub.f32 %v3324, %v4947
    %v4949 = vand.u32 %v4948, 4294901760
    %4950 = vmatpush1.msra.mxu0 %v4949
    %4951 = vmatprep.subr.mxu0 0.0
    %v4952 = vand.u32 %v3318, 4294901760
    %v4953 = vsub.f32 %v3318, %v4952
    %v4954 = vand.u32 %v4953, 4294901760
    %4955 = vmatpush1.msra.mxu0 %v4954
    %4956 = vmatprep.subr.mxu0 0.0
    %v4957 = vand.u32 %v3312, 4294901760
    %v4958 = vsub.f32 %v3312, %v4957
    %v4959 = vand.u32 %v4958, 4294901760
    %4960 = vmatpush1.msra.mxu0 %v4959
    %4961 = vmatprep.subr.mxu0 0.0
    %v4962 = vand.u32 %v3306, 4294901760
    %v4963 = vsub.f32 %v3306, %v4962
    %v4964 = vand.u32 %v4963, 4294901760
    %4965 = vmatpush1.msra.mxu0 %v4964
    %4966 = vmatprep.subr.mxu0 0.0
    %v4967 = vand.u32 %v3300, 4294901760
    %v4968 = vsub.f32 %v3300, %v4967
    %v4969 = vand.u32 %v4968, 4294901760
    %4970 = vmatpush1.msra.mxu0 %v4969
    %4971 = vmatprep.subr.mxu0 0.0
    %v4972 = vand.u32 %v3294, 4294901760
    %v4973 = vsub.f32 %v3294, %v4972
    %v4974 = vand.u32 %v4973, 4294901760
    %4975 = vmatpush1.msra.mxu0 %v4974
    %4976 = vmatprep.subr.mxu0 0.0
    %v4977 = vand.u32 %v3288, 4294901760
    %v4978 = vsub.f32 %v3288, %v4977
    %v4979 = vand.u32 %v4978, 4294901760
    %4980 = vmatpush1.msra.mxu0 %v4979
    %4981 = vmatprep.subr.mxu0 0.0
    %v4982 = vand.u32 %v3282, 4294901760
    %v4983 = vsub.f32 %v3282, %v4982
    %v4984 = vand.u32 %v4983, 4294901760
    %4985 = vmatpush1.msra.mxu0 %v4984
    %4986 = vmatprep.subr.mxu0 0.0
    %v4987 = vand.u32 %v3276, 4294901760
    %v4988 = vsub.f32 %v3276, %v4987
    %v4989 = vand.u32 %v4988, 4294901760
    %4990 = vmatpush1.msra.mxu0 %v4989
    %4991 = vmatprep.subr.mxu0 0.0
    %v4992 = vand.u32 %v3270, 4294901760
    %v4993 = vsub.f32 %v3270, %v4992
    %v4994 = vand.u32 %v4993, 4294901760
    %4995 = vmatpush1.msra.mxu0 %v4994
    %4996 = vmatprep.subr.mxu0 0.0
    %v4997 = vand.u32 %v3456, 4294901760
    %v4998 = vsub.f32 %v3456, %v4997
    %v4999 = vand.u32 %v4998, 4294901760
    %5000 = vmatpush2.msra.mxu0 %v4999
    %5001 = vmatprep.subr.mxu0 0.0
    %v5002 = vand.u32 %v3450, 4294901760
    %v5003 = vsub.f32 %v3450, %v5002
    %v5004 = vand.u32 %v5003, 4294901760
    %5005 = vmatpush2.msra.mxu0 %v5004
    %5006 = vmatprep.subr.mxu0 0.0
    %v5007 = vand.u32 %v3444, 4294901760
    %v5008 = vsub.f32 %v3444, %v5007
    %v5009 = vand.u32 %v5008, 4294901760
    %5010 = vmatpush2.msra.mxu0 %v5009
    %5011 = vmatprep.subr.mxu0 0.0
    %v5012 = vand.u32 %v3438, 4294901760
    %v5013 = vsub.f32 %v3438, %v5012
    %v5014 = vand.u32 %v5013, 4294901760
    %5015 = vmatpush2.msra.mxu0 %v5014
    %5016 = vmatprep.subr.mxu0 0.0
    %v5017 = vand.u32 %v3432, 4294901760
    %v5018 = vsub.f32 %v3432, %v5017
    %v5019 = vand.u32 %v5018, 4294901760
    %5020 = vmatpush2.msra.mxu0 %v5019
    %5021 = vmatprep.subr.mxu0 0.0
    %v5022 = vand.u32 %v3426, 4294901760
    %v5023 = vsub.f32 %v3426, %v5022
    %v5024 = vand.u32 %v5023, 4294901760
    %5025 = vmatpush2.msra.mxu0 %v5024
    %5026 = vmatprep.subr.mxu0 0.0
    %v5027 = vand.u32 %v3420, 4294901760
    %v5028 = vsub.f32 %v3420, %v5027
    %v5029 = vand.u32 %v5028, 4294901760
    %5030 = vmatpush2.msra.mxu0 %v5029
    %5031 = vmatprep.subr.mxu0 0.0
    %v5032 = vand.u32 %v3414, 4294901760
    %v5033 = vsub.f32 %v3414, %v5032
    %v5034 = vand.u32 %v5033, 4294901760
    %5035 = vmatpush2.msra.mxu0 %v5034
    %5036 = vmatprep.subr.mxu0 0.0
    %v5037 = vand.u32 %v3408, 4294901760
    %v5038 = vsub.f32 %v3408, %v5037
    %v5039 = vand.u32 %v5038, 4294901760
    %5040 = vmatpush2.msra.mxu0 %v5039
    %5041 = vmatprep.subr.mxu0 0.0
    %v5042 = vand.u32 %v3402, 4294901760
    %v5043 = vsub.f32 %v3402, %v5042
    %v5044 = vand.u32 %v5043, 4294901760
    %5045 = vmatpush2.msra.mxu0 %v5044
    %5046 = vmatprep.subr.mxu0 0.0
    %v5047 = vand.u32 %v3396, 4294901760
    %v5048 = vsub.f32 %v3396, %v5047
    %v5049 = vand.u32 %v5048, 4294901760
    %5050 = vmatpush2.msra.mxu0 %v5049
    %5051 = vmatprep.subr.mxu0 0.0
    %v5052 = vand.u32 %v3390, 4294901760
    %v5053 = vsub.f32 %v3390, %v5052
    %v5054 = vand.u32 %v5053, 4294901760
    %5055 = vmatpush2.msra.mxu0 %v5054
    %5056 = vmatprep.subr.mxu0 0.0
    %v5057 = vand.u32 %v3384, 4294901760
    %v5058 = vsub.f32 %v3384, %v5057
    %v5059 = vand.u32 %v5058, 4294901760
    %5060 = vmatpush2.msra.mxu0 %v5059
    %5061 = vmatprep.subr.mxu0 0.0
    %v5062 = vand.u32 %v3378, 4294901760
    %v5063 = vsub.f32 %v3378, %v5062
    %v5064 = vand.u32 %v5063, 4294901760
    %5065 = vmatpush2.msra.mxu0 %v5064
    %5066 = vmatprep.subr.mxu0 0.0
    %v5067 = vand.u32 %v3372, 4294901760
    %v5068 = vsub.f32 %v3372, %v5067
    %v5069 = vand.u32 %v5068, 4294901760
    %5070 = vmatpush2.msra.mxu0 %v5069
    %5071 = vmatprep.subr.mxu0 0.0
    %v5072 = vand.u32 %v3366, 4294901760
    %v5073 = vsub.f32 %v3366, %v5072
    %v5074 = vand.u32 %v5073, 4294901760
    %5075 = vmatpush2.msra.mxu0 %v5074
    %v5076 = vand.u32 %v3462, 4294901760
    %5077 = vmatprep.mubr.f32.mxu0 %v5076
    %v5078 = vand.u32 %v3461, 4294901760
    %5079 = vmatmul.mubr.f32.gmra.mxu0 %v5078
    %v5080 = vpop.f32.mrf.mxu0
    %v5081 = vadd.f32 %v4913, %v5080
    %v5082 = vpop.f32.mrf.mxu0
    %5083 = vdwg.mxu0
    %5084 = vmatprep.subr.mxu0 0.0
    %v5085 = vand.u32 %v3360, 4294901760
    %5086 = vmatpush1.msra.mxu0 %v5085
    %5087 = vmatprep.subr.mxu0 0.0
    %v5088 = vand.u32 %v3354, 4294901760
    %5089 = vmatpush1.msra.mxu0 %v5088
    %5090 = vmatprep.subr.mxu0 0.0
    %v5091 = vand.u32 %v3348, 4294901760
    %5092 = vmatpush1.msra.mxu0 %v5091
    %5093 = vmatprep.subr.mxu0 0.0
    %v5094 = vand.u32 %v3342, 4294901760
    %5095 = vmatpush1.msra.mxu0 %v5094
    %5096 = vmatprep.subr.mxu0 0.0
    %v5097 = vand.u32 %v3336, 4294901760
    %5098 = vmatpush1.msra.mxu0 %v5097
    %5099 = vmatprep.subr.mxu0 0.0
    %v5100 = vand.u32 %v3330, 4294901760
    %5101 = vmatpush1.msra.mxu0 %v5100
    %5102 = vmatprep.subr.mxu0 0.0
    %v5103 = vand.u32 %v3324, 4294901760
    %5104 = vmatpush1.msra.mxu0 %v5103
    %5105 = vmatprep.subr.mxu0 0.0
    %v5106 = vand.u32 %v3318, 4294901760
    %5107 = vmatpush1.msra.mxu0 %v5106
    %5108 = vmatprep.subr.mxu0 0.0
    %v5109 = vand.u32 %v3312, 4294901760
    %5110 = vmatpush1.msra.mxu0 %v5109
    %5111 = vmatprep.subr.mxu0 0.0
    %v5112 = vand.u32 %v3306, 4294901760
    %5113 = vmatpush1.msra.mxu0 %v5112
    %5114 = vmatprep.subr.mxu0 0.0
    %v5115 = vand.u32 %v3300, 4294901760
    %5116 = vmatpush1.msra.mxu0 %v5115
    %5117 = vmatprep.subr.mxu0 0.0
    %v5118 = vand.u32 %v3294, 4294901760
    %5119 = vmatpush1.msra.mxu0 %v5118
    %5120 = vmatprep.subr.mxu0 0.0
    %v5121 = vand.u32 %v3288, 4294901760
    %5122 = vmatpush1.msra.mxu0 %v5121
    %5123 = vmatprep.subr.mxu0 0.0
    %v5124 = vand.u32 %v3282, 4294901760
    %5125 = vmatpush1.msra.mxu0 %v5124
    %5126 = vmatprep.subr.mxu0 0.0
    %v5127 = vand.u32 %v3276, 4294901760
    %5128 = vmatpush1.msra.mxu0 %v5127
    %5129 = vmatprep.subr.mxu0 0.0
    %v5130 = vand.u32 %v3270, 4294901760
    %5131 = vmatpush1.msra.mxu0 %v5130
    %5132 = vmatprep.subr.mxu0 0.0
    %v5133 = vand.u32 %v3456, 4294901760
    %5134 = vmatpush2.msra.mxu0 %v5133
    %5135 = vmatprep.subr.mxu0 0.0
    %v5136 = vand.u32 %v3450, 4294901760
    %5137 = vmatpush2.msra.mxu0 %v5136
    %5138 = vmatprep.subr.mxu0 0.0
    %v5139 = vand.u32 %v3444, 4294901760
    %5140 = vmatpush2.msra.mxu0 %v5139
    %5141 = vmatprep.subr.mxu0 0.0
    %v5142 = vand.u32 %v3438, 4294901760
    %5143 = vmatpush2.msra.mxu0 %v5142
    %5144 = vmatprep.subr.mxu0 0.0
    %v5145 = vand.u32 %v3432, 4294901760
    %5146 = vmatpush2.msra.mxu0 %v5145
    %5147 = vmatprep.subr.mxu0 0.0
    %v5148 = vand.u32 %v3426, 4294901760
    %5149 = vmatpush2.msra.mxu0 %v5148
    %5150 = vmatprep.subr.mxu0 0.0
    %v5151 = vand.u32 %v3420, 4294901760
    %5152 = vmatpush2.msra.mxu0 %v5151
    %5153 = vmatprep.subr.mxu0 0.0
    %v5154 = vand.u32 %v3414, 4294901760
    %5155 = vmatpush2.msra.mxu0 %v5154
    %5156 = vmatprep.subr.mxu0 0.0
    %v5157 = vand.u32 %v3408, 4294901760
    %5158 = vmatpush2.msra.mxu0 %v5157
    %5159 = vmatprep.subr.mxu0 0.0
    %v5160 = vand.u32 %v3402, 4294901760
    %5161 = vmatpush2.msra.mxu0 %v5160
    %5162 = vmatprep.subr.mxu0 0.0
    %v5163 = vand.u32 %v3396, 4294901760
    %5164 = vmatpush2.msra.mxu0 %v5163
    %5165 = vmatprep.subr.mxu0 0.0
    %v5166 = vand.u32 %v3390, 4294901760
    %5167 = vmatpush2.msra.mxu0 %v5166
    %5168 = vmatprep.subr.mxu0 0.0
    %v5169 = vand.u32 %v3384, 4294901760
    %5170 = vmatpush2.msra.mxu0 %v5169
    %5171 = vmatprep.subr.mxu0 0.0
    %v5172 = vand.u32 %v3378, 4294901760
    %5173 = vmatpush2.msra.mxu0 %v5172
    %5174 = vmatprep.subr.mxu0 0.0
    %v5175 = vand.u32 %v3372, 4294901760
    %5176 = vmatpush2.msra.mxu0 %v5175
    %5177 = vmatprep.subr.mxu0 0.0
    %v5178 = vand.u32 %v3366, 4294901760
    %5179 = vmatpush2.msra.mxu0 %v5178
    %v5180 = vand.u32 %v3462, 4294901760
    %5181 = vmatprep.mubr.f32.mxu0 %v5180
    %v5182 = vand.u32 %v3461, 4294901760
    %5183 = vmatmul.mubr.f32.gmra.mxu0 %v5182
    %v5184 = vpop.f32.mrf.mxu0
    %v5185 = vadd.f32 %v5081, %v5184
    %v5186 = vpop.f32.mrf.mxu0
    %5187 = vdwg.mxu0
    %v5188 = vmul.f32 %v5185, %v5185
    %v5190 = vrot.slane %v5188, 1
    %v5192 = vadd.f32 %v5188, %v5190
    %v5193 = vrot.slane %v5188, 2
    %v5195 = vadd.f32 %v5192, %v5193
    %v5196 = vmax.f32 %v5195, 1e-24
    %v5197 = vrsqrt.pop %v5196
    %v5198 = vlaneseq
    %v5199 = vshrl.u32 %v5198, 7
    %v5200 = vsub.s32 1, %v5199
    %v5201 = vrot.slane %v5197, %v5200
    %v5202 = vmul.f32 %v5185, %v5201
    %v5204 = vrot.slane %v5185, 3
    %v5206 = vmul.f32 %v5202, %v5204
    %v5208 = vrot.slane %v5206, 1
    %v5210 = vadd.f32 %v5206, %v5208
    %v5211 = vrot.slane %v5206, 2
    %v5213 = vadd.f32 %v5210, %v5211
    %v5214 = vlaneseq
    %v5215 = vshrl.u32 %v5214, 7
    %v5216 = vsub.s32 1, %v5215
    %v5217 = vrot.slane %v5213, %v5216
    %v5218 = vmul.f32 %v5217, %v5202
    %v5220 = vrot.slane %v5218, 5
    %v5222 = vsub.f32 %v5185, %v5220
    %v5223 = vmul.f32 %v5222, %v5222
    %v5225 = vrot.slane %v5223, 1
    %v5227 = vadd.f32 %v5223, %v5225
    %v5228 = vrot.slane %v5223, 2
    %v5230 = vadd.f32 %v5227, %v5228
    %v5231 = vmax.f32 %v5230, 1e-24
    %v5232 = vrsqrt.pop %v5231
    %v5233 = vlaneseq
    %v5234 = vshrl.u32 %v5233, 7
    %v5235 = vsub.s32 4, %v5234
    %v5236 = vrot.slane %v5232, %v5235
    %v5237 = vmul.f32 %v5222, %v5236
    %vm5238 = vcmask 1040384
    %v5239 = vsel %vm5238, %v5185, %v5202
    %vm5240 = vcmask 1043456
    %v5241 = vsel %vm5240, %v5239, %v5237
    %vm5242 = vcmask 1046528
    %v5243 = vsel %vm5242, %v5241, %v5185
    %5244 = vst [vmem:[#allocation2] sm:$0xff] %v5243
    // Predicated region
    $region18: #{tpu_custom_call.1} parent=1 // pred_check
      _
    $region19: #{tpu_custom_call.1} parent=1 // pred_check_branch
      %5246 = sbr.rel (0) target = $region21
    $region20: #{tpu_custom_call.1} parent=1 // pred_region
      %s5248 = ssub.s32 128, 128
      %5249 = vsyncadd [#allocation3], %s5248
      %s5251 = sshll.u32 [#allocation2], 4
      %s5252 = int_to_ptr.vmem [resolvable:$true] %s5251
      %5254 = dma.vmem_to_hbm [thread:$0]  %s5252, 128, %s4, [#allocation3]
    $region21: #{tpu_custom_call.1} parent=1 // pred_fallthru
      _
    // Predicated region
    $region22: #{tpu_custom_call.1} parent=1 // pred_check
      _
    $region23: #{tpu_custom_call.1} parent=1 // pred_check_branch
      %5256 = sbr.rel (0) target = $region25
    $region24: #{tpu_custom_call.1} parent=1 // pred_region
      %5257 = dma.done [#allocation3], 128
    $region25: #{tpu_custom_call.1} parent=1 // pred_fallthru
      _
    %5258 = vsyncpa [#allocation3], 1

</llo_original>
